<compile_context>
chip_gen: v6e
topology: v6e:2x2x1
jax: 0.10.0
libtpu: 0.0.40
codegen_flags: <defaults>
</compile_context>

<pallas_src>
import jax
import jax.numpy as jnp
from jax.experimental import pallas as pl
from jax.experimental.pallas import tpu as pltpu
import numpy as np


def _round_up(n, m):
    return ((n + m - 1) // m) * m


# torch gate order (i, f, g, o) -> kernel order (i, f, o, g)
_GATE_PERM = jnp.array([0, 1, 3, 2])


def _prep_gate_matrix(w, H, Hq, in_pad):
    """w: (4H, K) torch gate-stacked -> (K + in_pad, 4Hq), reordered to
    (i,f,o,g), i/f/o pre-scaled by 0.5 (sigmoid fold), per-gate zero-padded,
    transposed so the kernel computes h @ W."""
    K = w.shape[1]
    w4 = w.reshape(4, H, K)[_GATE_PERM]
    scale = jnp.array([0.5, 0.5, 0.5, 1.0], w.dtype).reshape(4, 1, 1)
    w4 = jnp.pad(w4 * scale, ((0, 0), (0, Hq - H), (0, 0)))
    wT = w4.reshape(4 * Hq, K).T                     # (K, 4Hq)
    return jnp.pad(wT, ((0, in_pad), (0, 0)))


def _prep_gate_bias(b, H, Hq):
    """b: (4H,) -> (1, 4Hq), reordered to (i,f,o,g), i/f/o pre-scaled by 0.5."""
    b4 = b.reshape(4, H)[_GATE_PERM]
    scale = jnp.array([0.5, 0.5, 0.5, 1.0], b.dtype).reshape(4, 1)
    b4 = jnp.pad(b4 * scale, ((0, 0), (0, Hq - H)))
    return b4.reshape(1, 4 * Hq)


def lstm_fc_kernel(x_ref, wih0_ref, b0_ref, whh0_ref, wih1_ref, whh1_ref,
                   b1_ref, wfc_ref, bfc_ref, out_ref):
    """Whole sequence processed in one kernel invocation (recurrence is serial)."""
    Bp, T = x_ref.shape
    G = whh0_ref.shape[1]
    Hq = G // 4

    def lstm_cell(gates, c_prev):
        # i/f/o weight+bias blocks were pre-scaled by 0.5 in the wrapper, so a
        # single full-width tanh (one EUP pass over one lane-vreg when Hq==32)
        # gives sigmoid via 0.5*y+0.5 (VPU) and tanh(g) directly.
        y = jnp.tanh(gates)                       # (Bp, G)
        s = 0.5 * y + 0.5
        i = s[:, 0 * Hq:1 * Hq]
        f = s[:, 1 * Hq:2 * Hq]
        o = s[:, 2 * Hq:3 * Hq]
        g = y[:, 3 * Hq:4 * Hq]
        c = f * c_prev + i * g
        h = o * jnp.tanh(c)
        return h, c

    z = jnp.zeros((Bp, Hq), jnp.float32)
    h0, c0, h1, c1 = z, z, z, z

    # T is a static Python int -> fully unrolled at trace time so the scheduler
    # can interleave consecutive steps' MXU/EUP/VPU work. Weight refs are read
    # at the use site (VMEM-resident; matmul operands stream from VMEM anyway).
    # TODO(synk): hold whh0 / wih1 / whh1 in MXU staging registers across the
    # unrolled loop via pltpu.matmul_push_rhs / matmul_acc_lhs / matmul_pop to
    # avoid re-pushing the same RHS every step.
    for t in range(T):
        # layer 0: input_size == 1 -> input contribution is one broadcast-mul.
        xt = x_ref[:, t:t + 1]                                   # (Bp, 1)
        gates0 = (xt * wih0_ref[...] + b0_ref[...]
                  + jnp.dot(h0, whh0_ref[...],
                            preferred_element_type=jnp.float32))
        h0, c0 = lstm_cell(gates0, c0)
        # layer 1: two dots summed (no lane-concat copy in the serial chain).
        gates1 = (jnp.dot(h0, wih1_ref[...], preferred_element_type=jnp.float32)
                  + jnp.dot(h1, whh1_ref[...], preferred_element_type=jnp.float32)
                  + b1_ref[...])
        h1, c1 = lstm_cell(gates1, c1)

    # final fully-connected layer on the last timestep of the top layer
    out_ref[...] = (jnp.dot(h1, wfc_ref[...], preferred_element_type=jnp.float32)
                    + bfc_ref[...]).astype(out_ref.dtype)


def prepare_params(params):
    """One-time, x-independent parameter prep (kept out of the per-call path)."""
    H = params["w_hh_l0"].shape[1]
    C = params["w_fc"].shape[0]
    Hq = _round_up(H, 32)                     # 4*Hq is a multiple of 128 lanes
    Cp = _round_up(max(C, 128), 128)          # lane-dense output store

    prep = dict(
        wih0=_prep_gate_matrix(params["w_ih_l0"], H, Hq, 0),               # (1, 4Hq)
        b0=_prep_gate_bias(params["b_ih_l0"] + params["b_hh_l0"], H, Hq),  # (1, 4Hq)
        whh0=_prep_gate_matrix(params["w_hh_l0"], H, Hq, Hq - H),          # (Hq, 4Hq)
        wih1=_prep_gate_matrix(params["w_ih_l1"], H, Hq, Hq - H),          # (Hq, 4Hq)
        whh1=_prep_gate_matrix(params["w_hh_l1"], H, Hq, Hq - H),          # (Hq, 4Hq)
        b1=_prep_gate_bias(params["b_ih_l1"] + params["b_hh_l1"], H, Hq),  # (1, 4Hq)
        wfc=jnp.pad(params["w_fc"].T, ((0, Hq - H), (0, Cp - C))),         # (Hq, Cp)
        bfc=jnp.pad(params["b_fc"], (0, Cp - C))[None, :],                 # (1, Cp)
    )
    meta = dict(H=H, C=C, Hq=Hq, Cp=Cp)
    return prep, meta


def make_forward(prep, meta):
    C, Cp = meta["C"], meta["Cp"]

    @jax.jit
    def forward(x):
        x = x.astype(jnp.float32)
        B, T = x.shape
        Bp = _round_up(max(B, 8), 8)
        x_pad = jnp.pad(x, ((0, Bp - B), (0, 0)))                # (Bp, T)

        vmem = pl.BlockSpec(memory_space=pltpu.MemorySpace.VMEM)
        out = pl.pallas_call(
            lstm_fc_kernel,
            out_shape=jax.ShapeDtypeStruct((Bp, Cp), jnp.float32),
            in_specs=[vmem] * 9,
            out_specs=vmem,
        )(x_pad, prep["wih0"], prep["b0"], prep["whh0"],
          prep["wih1"], prep["whh1"], prep["b1"], prep["wfc"], prep["bfc"])

        # TODO(synk): on v7x with Bp >= 16, add a leading batch grid axis with
        # dimension_semantics=("parallel",) to split the batch across the two
        # TensorCores; keep the grid-less form on v5e/v6e for small batches.
        return out[:B, :C]

    return forward


def rnn_model_forward(x, params):
    """Convenience one-shot path: x (B, input_length) f32 -> (B, num_classes)."""
    prep, meta = prepare_params(params)
    return make_forward(prep, meta)(x)


def init_params(key, num_classes, hidden_size):
    """Deterministic init matching torch.nn.LSTM / nn.Linear parameter shapes."""
    H = hidden_size
    bound = 1.0 / float(np.sqrt(H))
    keys = jax.random.split(key, 10)

    def u(k, shape):
        return jax.random.uniform(k, shape, jnp.float32, -bound, bound)

    return dict(
        w_ih_l0=u(keys[0], (4 * H, 1)),
        w_hh_l0=u(keys[1], (4 * H, H)),
        b_ih_l0=u(keys[2], (4 * H,)),
        b_hh_l0=u(keys[3], (4 * H,)),
        w_ih_l1=u(keys[4], (4 * H, H)),
        w_hh_l1=u(keys[5], (4 * H, H)),
        b_ih_l1=u(keys[6], (4 * H,)),
        b_hh_l1=u(keys[7], (4 * H,)),
        w_fc=u(keys[8], (num_classes, H)),
        b_fc=u(keys[9], (num_classes,)),
    )


def rnn_model_reference(x, params):
    """Pure-JAX reference replicating torch.nn.LSTM(num_layers=2) + Linear."""
    B, T = x.shape
    H = params["w_hh_l0"].shape[1]
    xs = x[:, :, None].astype(jnp.float32)

    def cell(gates, c_prev):
        i = jax.nn.sigmoid(gates[:, 0 * H:1 * H])
        f = jax.nn.sigmoid(gates[:, 1 * H:2 * H])
        g = jnp.tanh(gates[:, 2 * H:3 * H])
        o = jax.nn.sigmoid(gates[:, 3 * H:4 * H])
        c = f * c_prev + i * g
        return o * jnp.tanh(c), c

    h0 = c0 = h1 = c1 = jnp.zeros((B, H), jnp.float32)
    for t in range(T):
        xt = xs[:, t, :]
        g0 = (xt @ params["w_ih_l0"].T + h0 @ params["w_hh_l0"].T
              + params["b_ih_l0"] + params["b_hh_l0"])
        h0, c0 = cell(g0, c0)
        g1 = (h0 @ params["w_ih_l1"].T + h1 @ params["w_hh_l1"].T
              + params["b_ih_l1"] + params["b_hh_l1"])
        h1, c1 = cell(g1, c1)
    return h1 @ params["w_fc"].T + params["b_fc"]


if __name__ == "__main__":
    batch = 4
    input_length = 16     # sequence length (PyTorch x: (batch, input_length))
    hidden_size = 32
    num_classes = 5

    key = jax.random.PRNGKey(0)
    k_x, k_p = jax.random.split(key)
    x = jax.random.normal(k_x, (batch, input_length), jnp.float32)
    params = init_params(k_p, num_classes, hidden_size)

    prep, meta = prepare_params(params)          # one-time parameter prep
    forward = make_forward(prep, meta)

    out = jax.block_until_ready(forward(x))
    ref = jax.block_until_ready(rnn_model_reference(x, params))

    assert out.shape == (batch, num_classes)
    np.testing.assert_allclose(np.asarray(out), np.asarray(ref), rtol=1e-3, atol=1e-3)

    print("KERNEL_OK")
</pallas_src>

<mosaic_0001>
module attributes {stable_mosaic.version = 11 : i64} {
  func.func @lstm_fc_kernel(%arg0: memref<8x16xf32, #tpu.memory_space<vmem>>, %arg1: memref<1x128xf32, #tpu.memory_space<vmem>>, %arg2: memref<1x128xf32, #tpu.memory_space<vmem>>, %arg3: memref<32x128xf32, #tpu.memory_space<vmem>>, %arg4: memref<32x128xf32, #tpu.memory_space<vmem>>, %arg5: memref<32x128xf32, #tpu.memory_space<vmem>>, %arg6: memref<1x128xf32, #tpu.memory_space<vmem>>, %arg7: memref<32x128xf32, #tpu.memory_space<vmem>>, %arg8: memref<1x128xf32, #tpu.memory_space<vmem>>, %arg9: memref<8x128xf32, #tpu.memory_space<vmem>>) attributes {dimension_semantics = [], scalar_prefetch = 0 : i64, scratch_operands = 0 : i64, tpu.core_type = #tpu.core_type<tc>} {
    %cst = arith.constant 0.000000e+00 : f32
    %0 = vector.broadcast %cst : f32 to vector<8x32xf32>
    %c0 = arith.constant 0 : index
    %c0_0 = arith.constant 0 : index
    %1 = vector.load %arg0[%c0, %c0_0] : memref<8x16xf32, #tpu.memory_space<vmem>>, vector<8x1xf32>
    %c0_1 = arith.constant 0 : index
    %c0_2 = arith.constant 0 : index
    %2 = vector.load %arg1[%c0_1, %c0_2] : memref<1x128xf32, #tpu.memory_space<vmem>>, vector<1x128xf32>
    %3 = vector.broadcast %1 : vector<8x1xf32> to vector<8x128xf32>
    %4 = vector.broadcast %2 : vector<1x128xf32> to vector<8x128xf32>
    %5 = arith.mulf %3, %4 : vector<8x128xf32>
    %c0_3 = arith.constant 0 : index
    %c0_4 = arith.constant 0 : index
    %6 = vector.load %arg2[%c0_3, %c0_4] : memref<1x128xf32, #tpu.memory_space<vmem>>, vector<1x128xf32>
    %7 = vector.broadcast %6 : vector<1x128xf32> to vector<8x128xf32>
    %8 = arith.addf %5, %7 : vector<8x128xf32>
    %c0_5 = arith.constant 0 : index
    %c0_6 = arith.constant 0 : index
    %9 = vector.load %arg3[%c0_5, %c0_6] : memref<32x128xf32, #tpu.memory_space<vmem>>, vector<32x128xf32>
    %cst_7 = arith.constant dense<0.000000e+00> : vector<8x128xf32>
    %10 = tpu.matmul %0, %9, %cst_7 {dimension_numbers = #tpu.dot_dimension_numbers<[1], [0], [0], [1], [0, 0, 1, 1], [], []>} : vector<8x32xf32>, vector<32x128xf32>, vector<8x128xf32> -> vector<8x128xf32>
    %11 = arith.addf %8, %10 : vector<8x128xf32>
    %12 = math.tanh %11 : vector<8x128xf32>
    %cst_8 = arith.constant 5.000000e-01 : f32
    %13 = vector.broadcast %cst_8 : f32 to vector<8x128xf32>
    %14 = arith.mulf %13, %12 : vector<8x128xf32>
    %cst_9 = arith.constant 5.000000e-01 : f32
    %15 = vector.broadcast %cst_9 : f32 to vector<8x128xf32>
    %16 = arith.addf %14, %15 : vector<8x128xf32>
    %17 = vector.extract_strided_slice %16 {offsets = [0, 0], sizes = [8, 32], strides = [1, 1]} : vector<8x128xf32> to vector<8x32xf32>
    %18 = vector.extract_strided_slice %16 {offsets = [0, 32], sizes = [8, 32], strides = [1, 1]} : vector<8x128xf32> to vector<8x32xf32>
    %19 = vector.extract_strided_slice %16 {offsets = [0, 64], sizes = [8, 32], strides = [1, 1]} : vector<8x128xf32> to vector<8x32xf32>
    %20 = vector.extract_strided_slice %12 {offsets = [0, 96], sizes = [8, 32], strides = [1, 1]} : vector<8x128xf32> to vector<8x32xf32>
    %21 = arith.mulf %18, %0 : vector<8x32xf32>
    %22 = arith.mulf %17, %20 : vector<8x32xf32>
    %23 = arith.addf %21, %22 : vector<8x32xf32>
    %24 = math.tanh %23 : vector<8x32xf32>
    %25 = arith.mulf %19, %24 : vector<8x32xf32>
    %c0_10 = arith.constant 0 : index
    %c0_11 = arith.constant 0 : index
    %26 = vector.load %arg4[%c0_10, %c0_11] : memref<32x128xf32, #tpu.memory_space<vmem>>, vector<32x128xf32>
    %cst_12 = arith.constant dense<0.000000e+00> : vector<8x128xf32>
    %27 = tpu.matmul %25, %26, %cst_12 {dimension_numbers = #tpu.dot_dimension_numbers<[1], [0], [0], [1], [0, 0, 1, 1], [], []>} : vector<8x32xf32>, vector<32x128xf32>, vector<8x128xf32> -> vector<8x128xf32>
    %c0_13 = arith.constant 0 : index
    %c0_14 = arith.constant 0 : index
    %28 = vector.load %arg5[%c0_13, %c0_14] : memref<32x128xf32, #tpu.memory_space<vmem>>, vector<32x128xf32>
    %cst_15 = arith.constant dense<0.000000e+00> : vector<8x128xf32>
    %29 = tpu.matmul %0, %28, %cst_15 {dimension_numbers = #tpu.dot_dimension_numbers<[1], [0], [0], [1], [0, 0, 1, 1], [], []>} : vector<8x32xf32>, vector<32x128xf32>, vector<8x128xf32> -> vector<8x128xf32>
    %30 = arith.addf %27, %29 : vector<8x128xf32>
    %c0_16 = arith.constant 0 : index
    %c0_17 = arith.constant 0 : index
    %31 = vector.load %arg6[%c0_16, %c0_17] : memref<1x128xf32, #tpu.memory_space<vmem>>, vector<1x128xf32>
    %32 = vector.broadcast %31 : vector<1x128xf32> to vector<8x128xf32>
    %33 = arith.addf %30, %32 : vector<8x128xf32>
    %34 = math.tanh %33 : vector<8x128xf32>
    %cst_18 = arith.constant 5.000000e-01 : f32
    %35 = vector.broadcast %cst_18 : f32 to vector<8x128xf32>
    %36 = arith.mulf %35, %34 : vector<8x128xf32>
    %cst_19 = arith.constant 5.000000e-01 : f32
    %37 = vector.broadcast %cst_19 : f32 to vector<8x128xf32>
    %38 = arith.addf %36, %37 : vector<8x128xf32>
    %39 = vector.extract_strided_slice %38 {offsets = [0, 0], sizes = [8, 32], strides = [1, 1]} : vector<8x128xf32> to vector<8x32xf32>
    %40 = vector.extract_strided_slice %38 {offsets = [0, 32], sizes = [8, 32], strides = [1, 1]} : vector<8x128xf32> to vector<8x32xf32>
    %41 = vector.extract_strided_slice %38 {offsets = [0, 64], sizes = [8, 32], strides = [1, 1]} : vector<8x128xf32> to vector<8x32xf32>
    %42 = vector.extract_strided_slice %34 {offsets = [0, 96], sizes = [8, 32], strides = [1, 1]} : vector<8x128xf32> to vector<8x32xf32>
    %43 = arith.mulf %40, %0 : vector<8x32xf32>
    %44 = arith.mulf %39, %42 : vector<8x32xf32>
    %45 = arith.addf %43, %44 : vector<8x32xf32>
    %46 = math.tanh %45 : vector<8x32xf32>
    %47 = arith.mulf %41, %46 : vector<8x32xf32>
    %c0_20 = arith.constant 0 : index
    %c1 = arith.constant 1 : index
    %48 = vector.load %arg0[%c0_20, %c1] : memref<8x16xf32, #tpu.memory_space<vmem>>, vector<8x1xf32>
    %c0_21 = arith.constant 0 : index
    %c0_22 = arith.constant 0 : index
    %49 = vector.load %arg1[%c0_21, %c0_22] : memref<1x128xf32, #tpu.memory_space<vmem>>, vector<1x128xf32>
    %50 = vector.broadcast %48 : vector<8x1xf32> to vector<8x128xf32>
    %51 = vector.broadcast %49 : vector<1x128xf32> to vector<8x128xf32>
    %52 = arith.mulf %50, %51 : vector<8x128xf32>
    %c0_23 = arith.constant 0 : index
    %c0_24 = arith.constant 0 : index
    %53 = vector.load %arg2[%c0_23, %c0_24] : memref<1x128xf32, #tpu.memory_space<vmem>>, vector<1x128xf32>
    %54 = vector.broadcast %53 : vector<1x128xf32> to vector<8x128xf32>
    %55 = arith.addf %52, %54 : vector<8x128xf32>
    %c0_25 = arith.constant 0 : index
    %c0_26 = arith.constant 0 : index
    %56 = vector.load %arg3[%c0_25, %c0_26] : memref<32x128xf32, #tpu.memory_space<vmem>>, vector<32x128xf32>
    %cst_27 = arith.constant dense<0.000000e+00> : vector<8x128xf32>
    %57 = tpu.matmul %25, %56, %cst_27 {dimension_numbers = #tpu.dot_dimension_numbers<[1], [0], [0], [1], [0, 0, 1, 1], [], []>} : vector<8x32xf32>, vector<32x128xf32>, vector<8x128xf32> -> vector<8x128xf32>
    %58 = arith.addf %55, %57 : vector<8x128xf32>
    %59 = math.tanh %58 : vector<8x128xf32>
    %cst_28 = arith.constant 5.000000e-01 : f32
    %60 = vector.broadcast %cst_28 : f32 to vector<8x128xf32>
    %61 = arith.mulf %60, %59 : vector<8x128xf32>
    %cst_29 = arith.constant 5.000000e-01 : f32
    %62 = vector.broadcast %cst_29 : f32 to vector<8x128xf32>
    %63 = arith.addf %61, %62 : vector<8x128xf32>
    %64 = vector.extract_strided_slice %63 {offsets = [0, 0], sizes = [8, 32], strides = [1, 1]} : vector<8x128xf32> to vector<8x32xf32>
    %65 = vector.extract_strided_slice %63 {offsets = [0, 32], sizes = [8, 32], strides = [1, 1]} : vector<8x128xf32> to vector<8x32xf32>
    %66 = vector.extract_strided_slice %63 {offsets = [0, 64], sizes = [8, 32], strides = [1, 1]} : vector<8x128xf32> to vector<8x32xf32>
    %67 = vector.extract_strided_slice %59 {offsets = [0, 96], sizes = [8, 32], strides = [1, 1]} : vector<8x128xf32> to vector<8x32xf32>
    %68 = arith.mulf %65, %23 : vector<8x32xf32>
    %69 = arith.mulf %64, %67 : vector<8x32xf32>
    %70 = arith.addf %68, %69 : vector<8x32xf32>
    %71 = math.tanh %70 : vector<8x32xf32>
    %72 = arith.mulf %66, %71 : vector<8x32xf32>
    %c0_30 = arith.constant 0 : index
    %c0_31 = arith.constant 0 : index
    %73 = vector.load %arg4[%c0_30, %c0_31] : memref<32x128xf32, #tpu.memory_space<vmem>>, vector<32x128xf32>
    %cst_32 = arith.constant dense<0.000000e+00> : vector<8x128xf32>
    %74 = tpu.matmul %72, %73, %cst_32 {dimension_numbers = #tpu.dot_dimension_numbers<[1], [0], [0], [1], [0, 0, 1, 1], [], []>} : vector<8x32xf32>, vector<32x128xf32>, vector<8x128xf32> -> vector<8x128xf32>
    %c0_33 = arith.constant 0 : index
    %c0_34 = arith.constant 0 : index
    %75 = vector.load %arg5[%c0_33, %c0_34] : memref<32x128xf32, #tpu.memory_space<vmem>>, vector<32x128xf32>
    %cst_35 = arith.constant dense<0.000000e+00> : vector<8x128xf32>
    %76 = tpu.matmul %47, %75, %cst_35 {dimension_numbers = #tpu.dot_dimension_numbers<[1], [0], [0], [1], [0, 0, 1, 1], [], []>} : vector<8x32xf32>, vector<32x128xf32>, vector<8x128xf32> -> vector<8x128xf32>
    %77 = arith.addf %74, %76 : vector<8x128xf32>
    %c0_36 = arith.constant 0 : index
    %c0_37 = arith.constant 0 : index
    %78 = vector.load %arg6[%c0_36, %c0_37] : memref<1x128xf32, #tpu.memory_space<vmem>>, vector<1x128xf32>
    %79 = vector.broadcast %78 : vector<1x128xf32> to vector<8x128xf32>
    %80 = arith.addf %77, %79 : vector<8x128xf32>
    %81 = math.tanh %80 : vector<8x128xf32>
    %cst_38 = arith.constant 5.000000e-01 : f32
    %82 = vector.broadcast %cst_38 : f32 to vector<8x128xf32>
    %83 = arith.mulf %82, %81 : vector<8x128xf32>
    %cst_39 = arith.constant 5.000000e-01 : f32
    %84 = vector.broadcast %cst_39 : f32 to vector<8x128xf32>
    %85 = arith.addf %83, %84 : vector<8x128xf32>
    %86 = vector.extract_strided_slice %85 {offsets = [0, 0], sizes = [8, 32], strides = [1, 1]} : vector<8x128xf32> to vector<8x32xf32>
    %87 = vector.extract_strided_slice %85 {offsets = [0, 32], sizes = [8, 32], strides = [1, 1]} : vector<8x128xf32> to vector<8x32xf32>
    %88 = vector.extract_strided_slice %85 {offsets = [0, 64], sizes = [8, 32], strides = [1, 1]} : vector<8x128xf32> to vector<8x32xf32>
    %89 = vector.extract_strided_slice %81 {offsets = [0, 96], sizes = [8, 32], strides = [1, 1]} : vector<8x128xf32> to vector<8x32xf32>
    %90 = arith.mulf %87, %45 : vector<8x32xf32>
    %91 = arith.mulf %86, %89 : vector<8x32xf32>
    %92 = arith.addf %90, %91 : vector<8x32xf32>
    %93 = math.tanh %92 : vector<8x32xf32>
    %94 = arith.mulf %88, %93 : vector<8x32xf32>
    %c0_40 = arith.constant 0 : index
    %c2 = arith.constant 2 : index
    %95 = vector.load %arg0[%c0_40, %c2] : memref<8x16xf32, #tpu.memory_space<vmem>>, vector<8x1xf32>
    %c0_41 = arith.constant 0 : index
    %c0_42 = arith.constant 0 : index
    %96 = vector.load %arg1[%c0_41, %c0_42] : memref<1x128xf32, #tpu.memory_space<vmem>>, vector<1x128xf32>
    %97 = vector.broadcast %95 : vector<8x1xf32> to vector<8x128xf32>
    %98 = vector.broadcast %96 : vector<1x128xf32> to vector<8x128xf32>
    %99 = arith.mulf %97, %98 : vector<8x128xf32>
    %c0_43 = arith.constant 0 : index
    %c0_44 = arith.constant 0 : index
    %100 = vector.load %arg2[%c0_43, %c0_44] : memref<1x128xf32, #tpu.memory_space<vmem>>, vector<1x128xf32>
    %101 = vector.broadcast %100 : vector<1x128xf32> to vector<8x128xf32>
    %102 = arith.addf %99, %101 : vector<8x128xf32>
    %c0_45 = arith.constant 0 : index
    %c0_46 = arith.constant 0 : index
    %103 = vector.load %arg3[%c0_45, %c0_46] : memref<32x128xf32, #tpu.memory_space<vmem>>, vector<32x128xf32>
    %cst_47 = arith.constant dense<0.000000e+00> : vector<8x128xf32>
    %104 = tpu.matmul %72, %103, %cst_47 {dimension_numbers = #tpu.dot_dimension_numbers<[1], [0], [0], [1], [0, 0, 1, 1], [], []>} : vector<8x32xf32>, vector<32x128xf32>, vector<8x128xf32> -> vector<8x128xf32>
    %105 = arith.addf %102, %104 : vector<8x128xf32>
    %106 = math.tanh %105 : vector<8x128xf32>
    %cst_48 = arith.constant 5.000000e-01 : f32
    %107 = vector.broadcast %cst_48 : f32 to vector<8x128xf32>
    %108 = arith.mulf %107, %106 : vector<8x128xf32>
    %cst_49 = arith.constant 5.000000e-01 : f32
    %109 = vector.broadcast %cst_49 : f32 to vector<8x128xf32>
    %110 = arith.addf %108, %109 : vector<8x128xf32>
    %111 = vector.extract_strided_slice %110 {offsets = [0, 0], sizes = [8, 32], strides = [1, 1]} : vector<8x128xf32> to vector<8x32xf32>
    %112 = vector.extract_strided_slice %110 {offsets = [0, 32], sizes = [8, 32], strides = [1, 1]} : vector<8x128xf32> to vector<8x32xf32>
    %113 = vector.extract_strided_slice %110 {offsets = [0, 64], sizes = [8, 32], strides = [1, 1]} : vector<8x128xf32> to vector<8x32xf32>
    %114 = vector.extract_strided_slice %106 {offsets = [0, 96], sizes = [8, 32], strides = [1, 1]} : vector<8x128xf32> to vector<8x32xf32>
    %115 = arith.mulf %112, %70 : vector<8x32xf32>
    %116 = arith.mulf %111, %114 : vector<8x32xf32>
    %117 = arith.addf %115, %116 : vector<8x32xf32>
    %118 = math.tanh %117 : vector<8x32xf32>
    %119 = arith.mulf %113, %118 : vector<8x32xf32>
    %c0_50 = arith.constant 0 : index
    %c0_51 = arith.constant 0 : index
    %120 = vector.load %arg4[%c0_50, %c0_51] : memref<32x128xf32, #tpu.memory_space<vmem>>, vector<32x128xf32>
    %cst_52 = arith.constant dense<0.000000e+00> : vector<8x128xf32>
    %121 = tpu.matmul %119, %120, %cst_52 {dimension_numbers = #tpu.dot_dimension_numbers<[1], [0], [0], [1], [0, 0, 1, 1], [], []>} : vector<8x32xf32>, vector<32x128xf32>, vector<8x128xf32> -> vector<8x128xf32>
    %c0_53 = arith.constant 0 : index
    %c0_54 = arith.constant 0 : index
    %122 = vector.load %arg5[%c0_53, %c0_54] : memref<32x128xf32, #tpu.memory_space<vmem>>, vector<32x128xf32>
    %cst_55 = arith.constant dense<0.000000e+00> : vector<8x128xf32>
    %123 = tpu.matmul %94, %122, %cst_55 {dimension_numbers = #tpu.dot_dimension_numbers<[1], [0], [0], [1], [0, 0, 1, 1], [], []>} : vector<8x32xf32>, vector<32x128xf32>, vector<8x128xf32> -> vector<8x128xf32>
    %124 = arith.addf %121, %123 : vector<8x128xf32>
    %c0_56 = arith.constant 0 : index
    %c0_57 = arith.constant 0 : index
    %125 = vector.load %arg6[%c0_56, %c0_57] : memref<1x128xf32, #tpu.memory_space<vmem>>, vector<1x128xf32>
    %126 = vector.broadcast %125 : vector<1x128xf32> to vector<8x128xf32>
    %127 = arith.addf %124, %126 : vector<8x128xf32>
    %128 = math.tanh %127 : vector<8x128xf32>
    %cst_58 = arith.constant 5.000000e-01 : f32
    %129 = vector.broadcast %cst_58 : f32 to vector<8x128xf32>
    %130 = arith.mulf %129, %128 : vector<8x128xf32>
    %cst_59 = arith.constant 5.000000e-01 : f32
    %131 = vector.broadcast %cst_59 : f32 to vector<8x128xf32>
    %132 = arith.addf %130, %131 : vector<8x128xf32>
    %133 = vector.extract_strided_slice %132 {offsets = [0, 0], sizes = [8, 32], strides = [1, 1]} : vector<8x128xf32> to vector<8x32xf32>
    %134 = vector.extract_strided_slice %132 {offsets = [0, 32], sizes = [8, 32], strides = [1, 1]} : vector<8x128xf32> to vector<8x32xf32>
    %135 = vector.extract_strided_slice %132 {offsets = [0, 64], sizes = [8, 32], strides = [1, 1]} : vector<8x128xf32> to vector<8x32xf32>
    %136 = vector.extract_strided_slice %128 {offsets = [0, 96], sizes = [8, 32], strides = [1, 1]} : vector<8x128xf32> to vector<8x32xf32>
    %137 = arith.mulf %134, %92 : vector<8x32xf32>
    %138 = arith.mulf %133, %136 : vector<8x32xf32>
    %139 = arith.addf %137, %138 : vector<8x32xf32>
    %140 = math.tanh %139 : vector<8x32xf32>
    %141 = arith.mulf %135, %140 : vector<8x32xf32>
    %c0_60 = arith.constant 0 : index
    %c3 = arith.constant 3 : index
    %142 = vector.load %arg0[%c0_60, %c3] : memref<8x16xf32, #tpu.memory_space<vmem>>, vector<8x1xf32>
    %c0_61 = arith.constant 0 : index
    %c0_62 = arith.constant 0 : index
    %143 = vector.load %arg1[%c0_61, %c0_62] : memref<1x128xf32, #tpu.memory_space<vmem>>, vector<1x128xf32>
    %144 = vector.broadcast %142 : vector<8x1xf32> to vector<8x128xf32>
    %145 = vector.broadcast %143 : vector<1x128xf32> to vector<8x128xf32>
    %146 = arith.mulf %144, %145 : vector<8x128xf32>
    %c0_63 = arith.constant 0 : index
    %c0_64 = arith.constant 0 : index
    %147 = vector.load %arg2[%c0_63, %c0_64] : memref<1x128xf32, #tpu.memory_space<vmem>>, vector<1x128xf32>
    %148 = vector.broadcast %147 : vector<1x128xf32> to vector<8x128xf32>
    %149 = arith.addf %146, %148 : vector<8x128xf32>
    %c0_65 = arith.constant 0 : index
    %c0_66 = arith.constant 0 : index
    %150 = vector.load %arg3[%c0_65, %c0_66] : memref<32x128xf32, #tpu.memory_space<vmem>>, vector<32x128xf32>
    %cst_67 = arith.constant dense<0.000000e+00> : vector<8x128xf32>
    %151 = tpu.matmul %119, %150, %cst_67 {dimension_numbers = #tpu.dot_dimension_numbers<[1], [0], [0], [1], [0, 0, 1, 1], [], []>} : vector<8x32xf32>, vector<32x128xf32>, vector<8x128xf32> -> vector<8x128xf32>
    %152 = arith.addf %149, %151 : vector<8x128xf32>
    %153 = math.tanh %152 : vector<8x128xf32>
    %cst_68 = arith.constant 5.000000e-01 : f32
    %154 = vector.broadcast %cst_68 : f32 to vector<8x128xf32>
    %155 = arith.mulf %154, %153 : vector<8x128xf32>
    %cst_69 = arith.constant 5.000000e-01 : f32
    %156 = vector.broadcast %cst_69 : f32 to vector<8x128xf32>
    %157 = arith.addf %155, %156 : vector<8x128xf32>
    %158 = vector.extract_strided_slice %157 {offsets = [0, 0], sizes = [8, 32], strides = [1, 1]} : vector<8x128xf32> to vector<8x32xf32>
    %159 = vector.extract_strided_slice %157 {offsets = [0, 32], sizes = [8, 32], strides = [1, 1]} : vector<8x128xf32> to vector<8x32xf32>
    %160 = vector.extract_strided_slice %157 {offsets = [0, 64], sizes = [8, 32], strides = [1, 1]} : vector<8x128xf32> to vector<8x32xf32>
    %161 = vector.extract_strided_slice %153 {offsets = [0, 96], sizes = [8, 32], strides = [1, 1]} : vector<8x128xf32> to vector<8x32xf32>
    %162 = arith.mulf %159, %117 : vector<8x32xf32>
    %163 = arith.mulf %158, %161 : vector<8x32xf32>
    %164 = arith.addf %162, %163 : vector<8x32xf32>
    %165 = math.tanh %164 : vector<8x32xf32>
    %166 = arith.mulf %160, %165 : vector<8x32xf32>
    %c0_70 = arith.constant 0 : index
    %c0_71 = arith.constant 0 : index
    %167 = vector.load %arg4[%c0_70, %c0_71] : memref<32x128xf32, #tpu.memory_space<vmem>>, vector<32x128xf32>
    %cst_72 = arith.constant dense<0.000000e+00> : vector<8x128xf32>
    %168 = tpu.matmul %166, %167, %cst_72 {dimension_numbers = #tpu.dot_dimension_numbers<[1], [0], [0], [1], [0, 0, 1, 1], [], []>} : vector<8x32xf32>, vector<32x128xf32>, vector<8x128xf32> -> vector<8x128xf32>
    %c0_73 = arith.constant 0 : index
    %c0_74 = arith.constant 0 : index
    %169 = vector.load %arg5[%c0_73, %c0_74] : memref<32x128xf32, #tpu.memory_space<vmem>>, vector<32x128xf32>
    %cst_75 = arith.constant dense<0.000000e+00> : vector<8x128xf32>
    %170 = tpu.matmul %141, %169, %cst_75 {dimension_numbers = #tpu.dot_dimension_numbers<[1], [0], [0], [1], [0, 0, 1, 1], [], []>} : vector<8x32xf32>, vector<32x128xf32>, vector<8x128xf32> -> vector<8x128xf32>
    %171 = arith.addf %168, %170 : vector<8x128xf32>
    %c0_76 = arith.constant 0 : index
    %c0_77 = arith.constant 0 : index
    %172 = vector.load %arg6[%c0_76, %c0_77] : memref<1x128xf32, #tpu.memory_space<vmem>>, vector<1x128xf32>
    %173 = vector.broadcast %172 : vector<1x128xf32> to vector<8x128xf32>
    %174 = arith.addf %171, %173 : vector<8x128xf32>
    %175 = math.tanh %174 : vector<8x128xf32>
    %cst_78 = arith.constant 5.000000e-01 : f32
    %176 = vector.broadcast %cst_78 : f32 to vector<8x128xf32>
    %177 = arith.mulf %176, %175 : vector<8x128xf32>
    %cst_79 = arith.constant 5.000000e-01 : f32
    %178 = vector.broadcast %cst_79 : f32 to vector<8x128xf32>
    %179 = arith.addf %177, %178 : vector<8x128xf32>
    %180 = vector.extract_strided_slice %179 {offsets = [0, 0], sizes = [8, 32], strides = [1, 1]} : vector<8x128xf32> to vector<8x32xf32>
    %181 = vector.extract_strided_slice %179 {offsets = [0, 32], sizes = [8, 32], strides = [1, 1]} : vector<8x128xf32> to vector<8x32xf32>
    %182 = vector.extract_strided_slice %179 {offsets = [0, 64], sizes = [8, 32], strides = [1, 1]} : vector<8x128xf32> to vector<8x32xf32>
    %183 = vector.extract_strided_slice %175 {offsets = [0, 96], sizes = [8, 32], strides = [1, 1]} : vector<8x128xf32> to vector<8x32xf32>
    %184 = arith.mulf %181, %139 : vector<8x32xf32>
    %185 = arith.mulf %180, %183 : vector<8x32xf32>
    %186 = arith.addf %184, %185 : vector<8x32xf32>
    %187 = math.tanh %186 : vector<8x32xf32>
    %188 = arith.mulf %182, %187 : vector<8x32xf32>
    %c0_80 = arith.constant 0 : index
    %c4 = arith.constant 4 : index
    %189 = vector.load %arg0[%c0_80, %c4] : memref<8x16xf32, #tpu.memory_space<vmem>>, vector<8x1xf32>
    %c0_81 = arith.constant 0 : index
    %c0_82 = arith.constant 0 : index
    %190 = vector.load %arg1[%c0_81, %c0_82] : memref<1x128xf32, #tpu.memory_space<vmem>>, vector<1x128xf32>
    %191 = vector.broadcast %189 : vector<8x1xf32> to vector<8x128xf32>
    %192 = vector.broadcast %190 : vector<1x128xf32> to vector<8x128xf32>
    %193 = arith.mulf %191, %192 : vector<8x128xf32>
    %c0_83 = arith.constant 0 : index
    %c0_84 = arith.constant 0 : index
    %194 = vector.load %arg2[%c0_83, %c0_84] : memref<1x128xf32, #tpu.memory_space<vmem>>, vector<1x128xf32>
    %195 = vector.broadcast %194 : vector<1x128xf32> to vector<8x128xf32>
    %196 = arith.addf %193, %195 : vector<8x128xf32>
    %c0_85 = arith.constant 0 : index
    %c0_86 = arith.constant 0 : index
    %197 = vector.load %arg3[%c0_85, %c0_86] : memref<32x128xf32, #tpu.memory_space<vmem>>, vector<32x128xf32>
    %cst_87 = arith.constant dense<0.000000e+00> : vector<8x128xf32>
    %198 = tpu.matmul %166, %197, %cst_87 {dimension_numbers = #tpu.dot_dimension_numbers<[1], [0], [0], [1], [0, 0, 1, 1], [], []>} : vector<8x32xf32>, vector<32x128xf32>, vector<8x128xf32> -> vector<8x128xf32>
    %199 = arith.addf %196, %198 : vector<8x128xf32>
    %200 = math.tanh %199 : vector<8x128xf32>
    %cst_88 = arith.constant 5.000000e-01 : f32
    %201 = vector.broadcast %cst_88 : f32 to vector<8x128xf32>
    %202 = arith.mulf %201, %200 : vector<8x128xf32>
    %cst_89 = arith.constant 5.000000e-01 : f32
    %203 = vector.broadcast %cst_89 : f32 to vector<8x128xf32>
    %204 = arith.addf %202, %203 : vector<8x128xf32>
    %205 = vector.extract_strided_slice %204 {offsets = [0, 0], sizes = [8, 32], strides = [1, 1]} : vector<8x128xf32> to vector<8x32xf32>
    %206 = vector.extract_strided_slice %204 {offsets = [0, 32], sizes = [8, 32], strides = [1, 1]} : vector<8x128xf32> to vector<8x32xf32>
    %207 = vector.extract_strided_slice %204 {offsets = [0, 64], sizes = [8, 32], strides = [1, 1]} : vector<8x128xf32> to vector<8x32xf32>
    %208 = vector.extract_strided_slice %200 {offsets = [0, 96], sizes = [8, 32], strides = [1, 1]} : vector<8x128xf32> to vector<8x32xf32>
    %209 = arith.mulf %206, %164 : vector<8x32xf32>
    %210 = arith.mulf %205, %208 : vector<8x32xf32>
    %211 = arith.addf %209, %210 : vector<8x32xf32>
    %212 = math.tanh %211 : vector<8x32xf32>
    %213 = arith.mulf %207, %212 : vector<8x32xf32>
    %c0_90 = arith.constant 0 : index
    %c0_91 = arith.constant 0 : index
    %214 = vector.load %arg4[%c0_90, %c0_91] : memref<32x128xf32, #tpu.memory_space<vmem>>, vector<32x128xf32>
    %cst_92 = arith.constant dense<0.000000e+00> : vector<8x128xf32>
    %215 = tpu.matmul %213, %214, %cst_92 {dimension_numbers = #tpu.dot_dimension_numbers<[1], [0], [0], [1], [0, 0, 1, 1], [], []>} : vector<8x32xf32>, vector<32x128xf32>, vector<8x128xf32> -> vector<8x128xf32>
    %c0_93 = arith.constant 0 : index
    %c0_94 = arith.constant 0 : index
    %216 = vector.load %arg5[%c0_93, %c0_94] : memref<32x128xf32, #tpu.memory_space<vmem>>, vector<32x128xf32>
    %cst_95 = arith.constant dense<0.000000e+00> : vector<8x128xf32>
    %217 = tpu.matmul %188, %216, %cst_95 {dimension_numbers = #tpu.dot_dimension_numbers<[1], [0], [0], [1], [0, 0, 1, 1], [], []>} : vector<8x32xf32>, vector<32x128xf32>, vector<8x128xf32> -> vector<8x128xf32>
    %218 = arith.addf %215, %217 : vector<8x128xf32>
    %c0_96 = arith.constant 0 : index
    %c0_97 = arith.constant 0 : index
    %219 = vector.load %arg6[%c0_96, %c0_97] : memref<1x128xf32, #tpu.memory_space<vmem>>, vector<1x128xf32>
    %220 = vector.broadcast %219 : vector<1x128xf32> to vector<8x128xf32>
    %221 = arith.addf %218, %220 : vector<8x128xf32>
    %222 = math.tanh %221 : vector<8x128xf32>
    %cst_98 = arith.constant 5.000000e-01 : f32
    %223 = vector.broadcast %cst_98 : f32 to vector<8x128xf32>
    %224 = arith.mulf %223, %222 : vector<8x128xf32>
    %cst_99 = arith.constant 5.000000e-01 : f32
    %225 = vector.broadcast %cst_99 : f32 to vector<8x128xf32>
    %226 = arith.addf %224, %225 : vector<8x128xf32>
    %227 = vector.extract_strided_slice %226 {offsets = [0, 0], sizes = [8, 32], strides = [1, 1]} : vector<8x128xf32> to vector<8x32xf32>
    %228 = vector.extract_strided_slice %226 {offsets = [0, 32], sizes = [8, 32], strides = [1, 1]} : vector<8x128xf32> to vector<8x32xf32>
    %229 = vector.extract_strided_slice %226 {offsets = [0, 64], sizes = [8, 32], strides = [1, 1]} : vector<8x128xf32> to vector<8x32xf32>
    %230 = vector.extract_strided_slice %222 {offsets = [0, 96], sizes = [8, 32], strides = [1, 1]} : vector<8x128xf32> to vector<8x32xf32>
    %231 = arith.mulf %228, %186 : vector<8x32xf32>
    %232 = arith.mulf %227, %230 : vector<8x32xf32>
    %233 = arith.addf %231, %232 : vector<8x32xf32>
    %234 = math.tanh %233 : vector<8x32xf32>
    %235 = arith.mulf %229, %234 : vector<8x32xf32>
    %c0_100 = arith.constant 0 : index
    %c5 = arith.constant 5 : index
    %236 = vector.load %arg0[%c0_100, %c5] : memref<8x16xf32, #tpu.memory_space<vmem>>, vector<8x1xf32>
    %c0_101 = arith.constant 0 : index
    %c0_102 = arith.constant 0 : index
    %237 = vector.load %arg1[%c0_101, %c0_102] : memref<1x128xf32, #tpu.memory_space<vmem>>, vector<1x128xf32>
    %238 = vector.broadcast %236 : vector<8x1xf32> to vector<8x128xf32>
    %239 = vector.broadcast %237 : vector<1x128xf32> to vector<8x128xf32>
    %240 = arith.mulf %238, %239 : vector<8x128xf32>
    %c0_103 = arith.constant 0 : index
    %c0_104 = arith.constant 0 : index
    %241 = vector.load %arg2[%c0_103, %c0_104] : memref<1x128xf32, #tpu.memory_space<vmem>>, vector<1x128xf32>
    %242 = vector.broadcast %241 : vector<1x128xf32> to vector<8x128xf32>
    %243 = arith.addf %240, %242 : vector<8x128xf32>
    %c0_105 = arith.constant 0 : index
    %c0_106 = arith.constant 0 : index
    %244 = vector.load %arg3[%c0_105, %c0_106] : memref<32x128xf32, #tpu.memory_space<vmem>>, vector<32x128xf32>
    %cst_107 = arith.constant dense<0.000000e+00> : vector<8x128xf32>
    %245 = tpu.matmul %213, %244, %cst_107 {dimension_numbers = #tpu.dot_dimension_numbers<[1], [0], [0], [1], [0, 0, 1, 1], [], []>} : vector<8x32xf32>, vector<32x128xf32>, vector<8x128xf32> -> vector<8x128xf32>
    %246 = arith.addf %243, %245 : vector<8x128xf32>
    %247 = math.tanh %246 : vector<8x128xf32>
    %cst_108 = arith.constant 5.000000e-01 : f32
    %248 = vector.broadcast %cst_108 : f32 to vector<8x128xf32>
    %249 = arith.mulf %248, %247 : vector<8x128xf32>
    %cst_109 = arith.constant 5.000000e-01 : f32
    %250 = vector.broadcast %cst_109 : f32 to vector<8x128xf32>
    %251 = arith.addf %249, %250 : vector<8x128xf32>
    %252 = vector.extract_strided_slice %251 {offsets = [0, 0], sizes = [8, 32], strides = [1, 1]} : vector<8x128xf32> to vector<8x32xf32>
    %253 = vector.extract_strided_slice %251 {offsets = [0, 32], sizes = [8, 32], strides = [1, 1]} : vector<8x128xf32> to vector<8x32xf32>
    %254 = vector.extract_strided_slice %251 {offsets = [0, 64], sizes = [8, 32], strides = [1, 1]} : vector<8x128xf32> to vector<8x32xf32>
    %255 = vector.extract_strided_slice %247 {offsets = [0, 96], sizes = [8, 32], strides = [1, 1]} : vector<8x128xf32> to vector<8x32xf32>
    %256 = arith.mulf %253, %211 : vector<8x32xf32>
    %257 = arith.mulf %252, %255 : vector<8x32xf32>
    %258 = arith.addf %256, %257 : vector<8x32xf32>
    %259 = math.tanh %258 : vector<8x32xf32>
    %260 = arith.mulf %254, %259 : vector<8x32xf32>
    %c0_110 = arith.constant 0 : index
    %c0_111 = arith.constant 0 : index
    %261 = vector.load %arg4[%c0_110, %c0_111] : memref<32x128xf32, #tpu.memory_space<vmem>>, vector<32x128xf32>
    %cst_112 = arith.constant dense<0.000000e+00> : vector<8x128xf32>
    %262 = tpu.matmul %260, %261, %cst_112 {dimension_numbers = #tpu.dot_dimension_numbers<[1], [0], [0], [1], [0, 0, 1, 1], [], []>} : vector<8x32xf32>, vector<32x128xf32>, vector<8x128xf32> -> vector<8x128xf32>
    %c0_113 = arith.constant 0 : index
    %c0_114 = arith.constant 0 : index
    %263 = vector.load %arg5[%c0_113, %c0_114] : memref<32x128xf32, #tpu.memory_space<vmem>>, vector<32x128xf32>
    %cst_115 = arith.constant dense<0.000000e+00> : vector<8x128xf32>
    %264 = tpu.matmul %235, %263, %cst_115 {dimension_numbers = #tpu.dot_dimension_numbers<[1], [0], [0], [1], [0, 0, 1, 1], [], []>} : vector<8x32xf32>, vector<32x128xf32>, vector<8x128xf32> -> vector<8x128xf32>
    %265 = arith.addf %262, %264 : vector<8x128xf32>
    %c0_116 = arith.constant 0 : index
    %c0_117 = arith.constant 0 : index
    %266 = vector.load %arg6[%c0_116, %c0_117] : memref<1x128xf32, #tpu.memory_space<vmem>>, vector<1x128xf32>
    %267 = vector.broadcast %266 : vector<1x128xf32> to vector<8x128xf32>
    %268 = arith.addf %265, %267 : vector<8x128xf32>
    %269 = math.tanh %268 : vector<8x128xf32>
    %cst_118 = arith.constant 5.000000e-01 : f32
    %270 = vector.broadcast %cst_118 : f32 to vector<8x128xf32>
    %271 = arith.mulf %270, %269 : vector<8x128xf32>
    %cst_119 = arith.constant 5.000000e-01 : f32
    %272 = vector.broadcast %cst_119 : f32 to vector<8x128xf32>
    %273 = arith.addf %271, %272 : vector<8x128xf32>
    %274 = vector.extract_strided_slice %273 {offsets = [0, 0], sizes = [8, 32], strides = [1, 1]} : vector<8x128xf32> to vector<8x32xf32>
    %275 = vector.extract_strided_slice %273 {offsets = [0, 32], sizes = [8, 32], strides = [1, 1]} : vector<8x128xf32> to vector<8x32xf32>
    %276 = vector.extract_strided_slice %273 {offsets = [0, 64], sizes = [8, 32], strides = [1, 1]} : vector<8x128xf32> to vector<8x32xf32>
    %277 = vector.extract_strided_slice %269 {offsets = [0, 96], sizes = [8, 32], strides = [1, 1]} : vector<8x128xf32> to vector<8x32xf32>
    %278 = arith.mulf %275, %233 : vector<8x32xf32>
    %279 = arith.mulf %274, %277 : vector<8x32xf32>
    %280 = arith.addf %278, %279 : vector<8x32xf32>
    %281 = math.tanh %280 : vector<8x32xf32>
    %282 = arith.mulf %276, %281 : vector<8x32xf32>
    %c0_120 = arith.constant 0 : index
    %c6 = arith.constant 6 : index
    %283 = vector.load %arg0[%c0_120, %c6] : memref<8x16xf32, #tpu.memory_space<vmem>>, vector<8x1xf32>
    %c0_121 = arith.constant 0 : index
    %c0_122 = arith.constant 0 : index
    %284 = vector.load %arg1[%c0_121, %c0_122] : memref<1x128xf32, #tpu.memory_space<vmem>>, vector<1x128xf32>
    %285 = vector.broadcast %283 : vector<8x1xf32> to vector<8x128xf32>
    %286 = vector.broadcast %284 : vector<1x128xf32> to vector<8x128xf32>
    %287 = arith.mulf %285, %286 : vector<8x128xf32>
    %c0_123 = arith.constant 0 : index
    %c0_124 = arith.constant 0 : index
    %288 = vector.load %arg2[%c0_123, %c0_124] : memref<1x128xf32, #tpu.memory_space<vmem>>, vector<1x128xf32>
    %289 = vector.broadcast %288 : vector<1x128xf32> to vector<8x128xf32>
    %290 = arith.addf %287, %289 : vector<8x128xf32>
    %c0_125 = arith.constant 0 : index
    %c0_126 = arith.constant 0 : index
    %291 = vector.load %arg3[%c0_125, %c0_126] : memref<32x128xf32, #tpu.memory_space<vmem>>, vector<32x128xf32>
    %cst_127 = arith.constant dense<0.000000e+00> : vector<8x128xf32>
    %292 = tpu.matmul %260, %291, %cst_127 {dimension_numbers = #tpu.dot_dimension_numbers<[1], [0], [0], [1], [0, 0, 1, 1], [], []>} : vector<8x32xf32>, vector<32x128xf32>, vector<8x128xf32> -> vector<8x128xf32>
    %293 = arith.addf %290, %292 : vector<8x128xf32>
    %294 = math.tanh %293 : vector<8x128xf32>
    %cst_128 = arith.constant 5.000000e-01 : f32
    %295 = vector.broadcast %cst_128 : f32 to vector<8x128xf32>
    %296 = arith.mulf %295, %294 : vector<8x128xf32>
    %cst_129 = arith.constant 5.000000e-01 : f32
    %297 = vector.broadcast %cst_129 : f32 to vector<8x128xf32>
    %298 = arith.addf %296, %297 : vector<8x128xf32>
    %299 = vector.extract_strided_slice %298 {offsets = [0, 0], sizes = [8, 32], strides = [1, 1]} : vector<8x128xf32> to vector<8x32xf32>
    %300 = vector.extract_strided_slice %298 {offsets = [0, 32], sizes = [8, 32], strides = [1, 1]} : vector<8x128xf32> to vector<8x32xf32>
    %301 = vector.extract_strided_slice %298 {offsets = [0, 64], sizes = [8, 32], strides = [1, 1]} : vector<8x128xf32> to vector<8x32xf32>
    %302 = vector.extract_strided_slice %294 {offsets = [0, 96], sizes = [8, 32], strides = [1, 1]} : vector<8x128xf32> to vector<8x32xf32>
    %303 = arith.mulf %300, %258 : vector<8x32xf32>
    %304 = arith.mulf %299, %302 : vector<8x32xf32>
    %305 = arith.addf %303, %304 : vector<8x32xf32>
    %306 = math.tanh %305 : vector<8x32xf32>
    %307 = arith.mulf %301, %306 : vector<8x32xf32>
    %c0_130 = arith.constant 0 : index
    %c0_131 = arith.constant 0 : index
    %308 = vector.load %arg4[%c0_130, %c0_131] : memref<32x128xf32, #tpu.memory_space<vmem>>, vector<32x128xf32>
    %cst_132 = arith.constant dense<0.000000e+00> : vector<8x128xf32>
    %309 = tpu.matmul %307, %308, %cst_132 {dimension_numbers = #tpu.dot_dimension_numbers<[1], [0], [0], [1], [0, 0, 1, 1], [], []>} : vector<8x32xf32>, vector<32x128xf32>, vector<8x128xf32> -> vector<8x128xf32>
    %c0_133 = arith.constant 0 : index
    %c0_134 = arith.constant 0 : index
    %310 = vector.load %arg5[%c0_133, %c0_134] : memref<32x128xf32, #tpu.memory_space<vmem>>, vector<32x128xf32>
    %cst_135 = arith.constant dense<0.000000e+00> : vector<8x128xf32>
    %311 = tpu.matmul %282, %310, %cst_135 {dimension_numbers = #tpu.dot_dimension_numbers<[1], [0], [0], [1], [0, 0, 1, 1], [], []>} : vector<8x32xf32>, vector<32x128xf32>, vector<8x128xf32> -> vector<8x128xf32>
    %312 = arith.addf %309, %311 : vector<8x128xf32>
    %c0_136 = arith.constant 0 : index
    %c0_137 = arith.constant 0 : index
    %313 = vector.load %arg6[%c0_136, %c0_137] : memref<1x128xf32, #tpu.memory_space<vmem>>, vector<1x128xf32>
    %314 = vector.broadcast %313 : vector<1x128xf32> to vector<8x128xf32>
    %315 = arith.addf %312, %314 : vector<8x128xf32>
    %316 = math.tanh %315 : vector<8x128xf32>
    %cst_138 = arith.constant 5.000000e-01 : f32
    %317 = vector.broadcast %cst_138 : f32 to vector<8x128xf32>
    %318 = arith.mulf %317, %316 : vector<8x128xf32>
    %cst_139 = arith.constant 5.000000e-01 : f32
    %319 = vector.broadcast %cst_139 : f32 to vector<8x128xf32>
    %320 = arith.addf %318, %319 : vector<8x128xf32>
    %321 = vector.extract_strided_slice %320 {offsets = [0, 0], sizes = [8, 32], strides = [1, 1]} : vector<8x128xf32> to vector<8x32xf32>
    %322 = vector.extract_strided_slice %320 {offsets = [0, 32], sizes = [8, 32], strides = [1, 1]} : vector<8x128xf32> to vector<8x32xf32>
    %323 = vector.extract_strided_slice %320 {offsets = [0, 64], sizes = [8, 32], strides = [1, 1]} : vector<8x128xf32> to vector<8x32xf32>
    %324 = vector.extract_strided_slice %316 {offsets = [0, 96], sizes = [8, 32], strides = [1, 1]} : vector<8x128xf32> to vector<8x32xf32>
    %325 = arith.mulf %322, %280 : vector<8x32xf32>
    %326 = arith.mulf %321, %324 : vector<8x32xf32>
    %327 = arith.addf %325, %326 : vector<8x32xf32>
    %328 = math.tanh %327 : vector<8x32xf32>
    %329 = arith.mulf %323, %328 : vector<8x32xf32>
    %c0_140 = arith.constant 0 : index
    %c7 = arith.constant 7 : index
    %330 = vector.load %arg0[%c0_140, %c7] : memref<8x16xf32, #tpu.memory_space<vmem>>, vector<8x1xf32>
    %c0_141 = arith.constant 0 : index
    %c0_142 = arith.constant 0 : index
    %331 = vector.load %arg1[%c0_141, %c0_142] : memref<1x128xf32, #tpu.memory_space<vmem>>, vector<1x128xf32>
    %332 = vector.broadcast %330 : vector<8x1xf32> to vector<8x128xf32>
    %333 = vector.broadcast %331 : vector<1x128xf32> to vector<8x128xf32>
    %334 = arith.mulf %332, %333 : vector<8x128xf32>
    %c0_143 = arith.constant 0 : index
    %c0_144 = arith.constant 0 : index
    %335 = vector.load %arg2[%c0_143, %c0_144] : memref<1x128xf32, #tpu.memory_space<vmem>>, vector<1x128xf32>
    %336 = vector.broadcast %335 : vector<1x128xf32> to vector<8x128xf32>
    %337 = arith.addf %334, %336 : vector<8x128xf32>
    %c0_145 = arith.constant 0 : index
    %c0_146 = arith.constant 0 : index
    %338 = vector.load %arg3[%c0_145, %c0_146] : memref<32x128xf32, #tpu.memory_space<vmem>>, vector<32x128xf32>
    %cst_147 = arith.constant dense<0.000000e+00> : vector<8x128xf32>
    %339 = tpu.matmul %307, %338, %cst_147 {dimension_numbers = #tpu.dot_dimension_numbers<[1], [0], [0], [1], [0, 0, 1, 1], [], []>} : vector<8x32xf32>, vector<32x128xf32>, vector<8x128xf32> -> vector<8x128xf32>
    %340 = arith.addf %337, %339 : vector<8x128xf32>
    %341 = math.tanh %340 : vector<8x128xf32>
    %cst_148 = arith.constant 5.000000e-01 : f32
    %342 = vector.broadcast %cst_148 : f32 to vector<8x128xf32>
    %343 = arith.mulf %342, %341 : vector<8x128xf32>
    %cst_149 = arith.constant 5.000000e-01 : f32
    %344 = vector.broadcast %cst_149 : f32 to vector<8x128xf32>
    %345 = arith.addf %343, %344 : vector<8x128xf32>
    %346 = vector.extract_strided_slice %345 {offsets = [0, 0], sizes = [8, 32], strides = [1, 1]} : vector<8x128xf32> to vector<8x32xf32>
    %347 = vector.extract_strided_slice %345 {offsets = [0, 32], sizes = [8, 32], strides = [1, 1]} : vector<8x128xf32> to vector<8x32xf32>
    %348 = vector.extract_strided_slice %345 {offsets = [0, 64], sizes = [8, 32], strides = [1, 1]} : vector<8x128xf32> to vector<8x32xf32>
    %349 = vector.extract_strided_slice %341 {offsets = [0, 96], sizes = [8, 32], strides = [1, 1]} : vector<8x128xf32> to vector<8x32xf32>
    %350 = arith.mulf %347, %305 : vector<8x32xf32>
    %351 = arith.mulf %346, %349 : vector<8x32xf32>
    %352 = arith.addf %350, %351 : vector<8x32xf32>
    %353 = math.tanh %352 : vector<8x32xf32>
    %354 = arith.mulf %348, %353 : vector<8x32xf32>
    %c0_150 = arith.constant 0 : index
    %c0_151 = arith.constant 0 : index
    %355 = vector.load %arg4[%c0_150, %c0_151] : memref<32x128xf32, #tpu.memory_space<vmem>>, vector<32x128xf32>
    %cst_152 = arith.constant dense<0.000000e+00> : vector<8x128xf32>
    %356 = tpu.matmul %354, %355, %cst_152 {dimension_numbers = #tpu.dot_dimension_numbers<[1], [0], [0], [1], [0, 0, 1, 1], [], []>} : vector<8x32xf32>, vector<32x128xf32>, vector<8x128xf32> -> vector<8x128xf32>
    %c0_153 = arith.constant 0 : index
    %c0_154 = arith.constant 0 : index
    %357 = vector.load %arg5[%c0_153, %c0_154] : memref<32x128xf32, #tpu.memory_space<vmem>>, vector<32x128xf32>
    %cst_155 = arith.constant dense<0.000000e+00> : vector<8x128xf32>
    %358 = tpu.matmul %329, %357, %cst_155 {dimension_numbers = #tpu.dot_dimension_numbers<[1], [0], [0], [1], [0, 0, 1, 1], [], []>} : vector<8x32xf32>, vector<32x128xf32>, vector<8x128xf32> -> vector<8x128xf32>
    %359 = arith.addf %356, %358 : vector<8x128xf32>
    %c0_156 = arith.constant 0 : index
    %c0_157 = arith.constant 0 : index
    %360 = vector.load %arg6[%c0_156, %c0_157] : memref<1x128xf32, #tpu.memory_space<vmem>>, vector<1x128xf32>
    %361 = vector.broadcast %360 : vector<1x128xf32> to vector<8x128xf32>
    %362 = arith.addf %359, %361 : vector<8x128xf32>
    %363 = math.tanh %362 : vector<8x128xf32>
    %cst_158 = arith.constant 5.000000e-01 : f32
    %364 = vector.broadcast %cst_158 : f32 to vector<8x128xf32>
    %365 = arith.mulf %364, %363 : vector<8x128xf32>
    %cst_159 = arith.constant 5.000000e-01 : f32
    %366 = vector.broadcast %cst_159 : f32 to vector<8x128xf32>
    %367 = arith.addf %365, %366 : vector<8x128xf32>
    %368 = vector.extract_strided_slice %367 {offsets = [0, 0], sizes = [8, 32], strides = [1, 1]} : vector<8x128xf32> to vector<8x32xf32>
    %369 = vector.extract_strided_slice %367 {offsets = [0, 32], sizes = [8, 32], strides = [1, 1]} : vector<8x128xf32> to vector<8x32xf32>
    %370 = vector.extract_strided_slice %367 {offsets = [0, 64], sizes = [8, 32], strides = [1, 1]} : vector<8x128xf32> to vector<8x32xf32>
    %371 = vector.extract_strided_slice %363 {offsets = [0, 96], sizes = [8, 32], strides = [1, 1]} : vector<8x128xf32> to vector<8x32xf32>
    %372 = arith.mulf %369, %327 : vector<8x32xf32>
    %373 = arith.mulf %368, %371 : vector<8x32xf32>
    %374 = arith.addf %372, %373 : vector<8x32xf32>
    %375 = math.tanh %374 : vector<8x32xf32>
    %376 = arith.mulf %370, %375 : vector<8x32xf32>
    %c0_160 = arith.constant 0 : index
    %c8 = arith.constant 8 : index
    %377 = vector.load %arg0[%c0_160, %c8] : memref<8x16xf32, #tpu.memory_space<vmem>>, vector<8x1xf32>
    %c0_161 = arith.constant 0 : index
    %c0_162 = arith.constant 0 : index
    %378 = vector.load %arg1[%c0_161, %c0_162] : memref<1x128xf32, #tpu.memory_space<vmem>>, vector<1x128xf32>
    %379 = vector.broadcast %377 : vector<8x1xf32> to vector<8x128xf32>
    %380 = vector.broadcast %378 : vector<1x128xf32> to vector<8x128xf32>
    %381 = arith.mulf %379, %380 : vector<8x128xf32>
    %c0_163 = arith.constant 0 : index
    %c0_164 = arith.constant 0 : index
    %382 = vector.load %arg2[%c0_163, %c0_164] : memref<1x128xf32, #tpu.memory_space<vmem>>, vector<1x128xf32>
    %383 = vector.broadcast %382 : vector<1x128xf32> to vector<8x128xf32>
    %384 = arith.addf %381, %383 : vector<8x128xf32>
    %c0_165 = arith.constant 0 : index
    %c0_166 = arith.constant 0 : index
    %385 = vector.load %arg3[%c0_165, %c0_166] : memref<32x128xf32, #tpu.memory_space<vmem>>, vector<32x128xf32>
    %cst_167 = arith.constant dense<0.000000e+00> : vector<8x128xf32>
    %386 = tpu.matmul %354, %385, %cst_167 {dimension_numbers = #tpu.dot_dimension_numbers<[1], [0], [0], [1], [0, 0, 1, 1], [], []>} : vector<8x32xf32>, vector<32x128xf32>, vector<8x128xf32> -> vector<8x128xf32>
    %387 = arith.addf %384, %386 : vector<8x128xf32>
    %388 = math.tanh %387 : vector<8x128xf32>
    %cst_168 = arith.constant 5.000000e-01 : f32
    %389 = vector.broadcast %cst_168 : f32 to vector<8x128xf32>
    %390 = arith.mulf %389, %388 : vector<8x128xf32>
    %cst_169 = arith.constant 5.000000e-01 : f32
    %391 = vector.broadcast %cst_169 : f32 to vector<8x128xf32>
    %392 = arith.addf %390, %391 : vector<8x128xf32>
    %393 = vector.extract_strided_slice %392 {offsets = [0, 0], sizes = [8, 32], strides = [1, 1]} : vector<8x128xf32> to vector<8x32xf32>
    %394 = vector.extract_strided_slice %392 {offsets = [0, 32], sizes = [8, 32], strides = [1, 1]} : vector<8x128xf32> to vector<8x32xf32>
    %395 = vector.extract_strided_slice %392 {offsets = [0, 64], sizes = [8, 32], strides = [1, 1]} : vector<8x128xf32> to vector<8x32xf32>
    %396 = vector.extract_strided_slice %388 {offsets = [0, 96], sizes = [8, 32], strides = [1, 1]} : vector<8x128xf32> to vector<8x32xf32>
    %397 = arith.mulf %394, %352 : vector<8x32xf32>
    %398 = arith.mulf %393, %396 : vector<8x32xf32>
    %399 = arith.addf %397, %398 : vector<8x32xf32>
    %400 = math.tanh %399 : vector<8x32xf32>
    %401 = arith.mulf %395, %400 : vector<8x32xf32>
    %c0_170 = arith.constant 0 : index
    %c0_171 = arith.constant 0 : index
    %402 = vector.load %arg4[%c0_170, %c0_171] : memref<32x128xf32, #tpu.memory_space<vmem>>, vector<32x128xf32>
    %cst_172 = arith.constant dense<0.000000e+00> : vector<8x128xf32>
    %403 = tpu.matmul %401, %402, %cst_172 {dimension_numbers = #tpu.dot_dimension_numbers<[1], [0], [0], [1], [0, 0, 1, 1], [], []>} : vector<8x32xf32>, vector<32x128xf32>, vector<8x128xf32> -> vector<8x128xf32>
    %c0_173 = arith.constant 0 : index
    %c0_174 = arith.constant 0 : index
    %404 = vector.load %arg5[%c0_173, %c0_174] : memref<32x128xf32, #tpu.memory_space<vmem>>, vector<32x128xf32>
    %cst_175 = arith.constant dense<0.000000e+00> : vector<8x128xf32>
    %405 = tpu.matmul %376, %404, %cst_175 {dimension_numbers = #tpu.dot_dimension_numbers<[1], [0], [0], [1], [0, 0, 1, 1], [], []>} : vector<8x32xf32>, vector<32x128xf32>, vector<8x128xf32> -> vector<8x128xf32>
    %406 = arith.addf %403, %405 : vector<8x128xf32>
    %c0_176 = arith.constant 0 : index
    %c0_177 = arith.constant 0 : index
    %407 = vector.load %arg6[%c0_176, %c0_177] : memref<1x128xf32, #tpu.memory_space<vmem>>, vector<1x128xf32>
    %408 = vector.broadcast %407 : vector<1x128xf32> to vector<8x128xf32>
    %409 = arith.addf %406, %408 : vector<8x128xf32>
    %410 = math.tanh %409 : vector<8x128xf32>
    %cst_178 = arith.constant 5.000000e-01 : f32
    %411 = vector.broadcast %cst_178 : f32 to vector<8x128xf32>
    %412 = arith.mulf %411, %410 : vector<8x128xf32>
    %cst_179 = arith.constant 5.000000e-01 : f32
    %413 = vector.broadcast %cst_179 : f32 to vector<8x128xf32>
    %414 = arith.addf %412, %413 : vector<8x128xf32>
    %415 = vector.extract_strided_slice %414 {offsets = [0, 0], sizes = [8, 32], strides = [1, 1]} : vector<8x128xf32> to vector<8x32xf32>
    %416 = vector.extract_strided_slice %414 {offsets = [0, 32], sizes = [8, 32], strides = [1, 1]} : vector<8x128xf32> to vector<8x32xf32>
    %417 = vector.extract_strided_slice %414 {offsets = [0, 64], sizes = [8, 32], strides = [1, 1]} : vector<8x128xf32> to vector<8x32xf32>
    %418 = vector.extract_strided_slice %410 {offsets = [0, 96], sizes = [8, 32], strides = [1, 1]} : vector<8x128xf32> to vector<8x32xf32>
    %419 = arith.mulf %416, %374 : vector<8x32xf32>
    %420 = arith.mulf %415, %418 : vector<8x32xf32>
    %421 = arith.addf %419, %420 : vector<8x32xf32>
    %422 = math.tanh %421 : vector<8x32xf32>
    %423 = arith.mulf %417, %422 : vector<8x32xf32>
    %c0_180 = arith.constant 0 : index
    %c9 = arith.constant 9 : index
    %424 = vector.load %arg0[%c0_180, %c9] : memref<8x16xf32, #tpu.memory_space<vmem>>, vector<8x1xf32>
    %c0_181 = arith.constant 0 : index
    %c0_182 = arith.constant 0 : index
    %425 = vector.load %arg1[%c0_181, %c0_182] : memref<1x128xf32, #tpu.memory_space<vmem>>, vector<1x128xf32>
    %426 = vector.broadcast %424 : vector<8x1xf32> to vector<8x128xf32>
    %427 = vector.broadcast %425 : vector<1x128xf32> to vector<8x128xf32>
    %428 = arith.mulf %426, %427 : vector<8x128xf32>
    %c0_183 = arith.constant 0 : index
    %c0_184 = arith.constant 0 : index
    %429 = vector.load %arg2[%c0_183, %c0_184] : memref<1x128xf32, #tpu.memory_space<vmem>>, vector<1x128xf32>
    %430 = vector.broadcast %429 : vector<1x128xf32> to vector<8x128xf32>
    %431 = arith.addf %428, %430 : vector<8x128xf32>
    %c0_185 = arith.constant 0 : index
    %c0_186 = arith.constant 0 : index
    %432 = vector.load %arg3[%c0_185, %c0_186] : memref<32x128xf32, #tpu.memory_space<vmem>>, vector<32x128xf32>
    %cst_187 = arith.constant dense<0.000000e+00> : vector<8x128xf32>
    %433 = tpu.matmul %401, %432, %cst_187 {dimension_numbers = #tpu.dot_dimension_numbers<[1], [0], [0], [1], [0, 0, 1, 1], [], []>} : vector<8x32xf32>, vector<32x128xf32>, vector<8x128xf32> -> vector<8x128xf32>
    %434 = arith.addf %431, %433 : vector<8x128xf32>
    %435 = math.tanh %434 : vector<8x128xf32>
    %cst_188 = arith.constant 5.000000e-01 : f32
    %436 = vector.broadcast %cst_188 : f32 to vector<8x128xf32>
    %437 = arith.mulf %436, %435 : vector<8x128xf32>
    %cst_189 = arith.constant 5.000000e-01 : f32
    %438 = vector.broadcast %cst_189 : f32 to vector<8x128xf32>
    %439 = arith.addf %437, %438 : vector<8x128xf32>
    %440 = vector.extract_strided_slice %439 {offsets = [0, 0], sizes = [8, 32], strides = [1, 1]} : vector<8x128xf32> to vector<8x32xf32>
    %441 = vector.extract_strided_slice %439 {offsets = [0, 32], sizes = [8, 32], strides = [1, 1]} : vector<8x128xf32> to vector<8x32xf32>
    %442 = vector.extract_strided_slice %439 {offsets = [0, 64], sizes = [8, 32], strides = [1, 1]} : vector<8x128xf32> to vector<8x32xf32>
    %443 = vector.extract_strided_slice %435 {offsets = [0, 96], sizes = [8, 32], strides = [1, 1]} : vector<8x128xf32> to vector<8x32xf32>
    %444 = arith.mulf %441, %399 : vector<8x32xf32>
    %445 = arith.mulf %440, %443 : vector<8x32xf32>
    %446 = arith.addf %444, %445 : vector<8x32xf32>
    %447 = math.tanh %446 : vector<8x32xf32>
    %448 = arith.mulf %442, %447 : vector<8x32xf32>
    %c0_190 = arith.constant 0 : index
    %c0_191 = arith.constant 0 : index
    %449 = vector.load %arg4[%c0_190, %c0_191] : memref<32x128xf32, #tpu.memory_space<vmem>>, vector<32x128xf32>
    %cst_192 = arith.constant dense<0.000000e+00> : vector<8x128xf32>
    %450 = tpu.matmul %448, %449, %cst_192 {dimension_numbers = #tpu.dot_dimension_numbers<[1], [0], [0], [1], [0, 0, 1, 1], [], []>} : vector<8x32xf32>, vector<32x128xf32>, vector<8x128xf32> -> vector<8x128xf32>
    %c0_193 = arith.constant 0 : index
    %c0_194 = arith.constant 0 : index
    %451 = vector.load %arg5[%c0_193, %c0_194] : memref<32x128xf32, #tpu.memory_space<vmem>>, vector<32x128xf32>
    %cst_195 = arith.constant dense<0.000000e+00> : vector<8x128xf32>
    %452 = tpu.matmul %423, %451, %cst_195 {dimension_numbers = #tpu.dot_dimension_numbers<[1], [0], [0], [1], [0, 0, 1, 1], [], []>} : vector<8x32xf32>, vector<32x128xf32>, vector<8x128xf32> -> vector<8x128xf32>
    %453 = arith.addf %450, %452 : vector<8x128xf32>
    %c0_196 = arith.constant 0 : index
    %c0_197 = arith.constant 0 : index
    %454 = vector.load %arg6[%c0_196, %c0_197] : memref<1x128xf32, #tpu.memory_space<vmem>>, vector<1x128xf32>
    %455 = vector.broadcast %454 : vector<1x128xf32> to vector<8x128xf32>
    %456 = arith.addf %453, %455 : vector<8x128xf32>
    %457 = math.tanh %456 : vector<8x128xf32>
    %cst_198 = arith.constant 5.000000e-01 : f32
    %458 = vector.broadcast %cst_198 : f32 to vector<8x128xf32>
    %459 = arith.mulf %458, %457 : vector<8x128xf32>
    %cst_199 = arith.constant 5.000000e-01 : f32
    %460 = vector.broadcast %cst_199 : f32 to vector<8x128xf32>
    %461 = arith.addf %459, %460 : vector<8x128xf32>
    %462 = vector.extract_strided_slice %461 {offsets = [0, 0], sizes = [8, 32], strides = [1, 1]} : vector<8x128xf32> to vector<8x32xf32>
    %463 = vector.extract_strided_slice %461 {offsets = [0, 32], sizes = [8, 32], strides = [1, 1]} : vector<8x128xf32> to vector<8x32xf32>
    %464 = vector.extract_strided_slice %461 {offsets = [0, 64], sizes = [8, 32], strides = [1, 1]} : vector<8x128xf32> to vector<8x32xf32>
    %465 = vector.extract_strided_slice %457 {offsets = [0, 96], sizes = [8, 32], strides = [1, 1]} : vector<8x128xf32> to vector<8x32xf32>
    %466 = arith.mulf %463, %421 : vector<8x32xf32>
    %467 = arith.mulf %462, %465 : vector<8x32xf32>
    %468 = arith.addf %466, %467 : vector<8x32xf32>
    %469 = math.tanh %468 : vector<8x32xf32>
    %470 = arith.mulf %464, %469 : vector<8x32xf32>
    %c0_200 = arith.constant 0 : index
    %c10 = arith.constant 10 : index
    %471 = vector.load %arg0[%c0_200, %c10] : memref<8x16xf32, #tpu.memory_space<vmem>>, vector<8x1xf32>
    %c0_201 = arith.constant 0 : index
    %c0_202 = arith.constant 0 : index
    %472 = vector.load %arg1[%c0_201, %c0_202] : memref<1x128xf32, #tpu.memory_space<vmem>>, vector<1x128xf32>
    %473 = vector.broadcast %471 : vector<8x1xf32> to vector<8x128xf32>
    %474 = vector.broadcast %472 : vector<1x128xf32> to vector<8x128xf32>
    %475 = arith.mulf %473, %474 : vector<8x128xf32>
    %c0_203 = arith.constant 0 : index
    %c0_204 = arith.constant 0 : index
    %476 = vector.load %arg2[%c0_203, %c0_204] : memref<1x128xf32, #tpu.memory_space<vmem>>, vector<1x128xf32>
    %477 = vector.broadcast %476 : vector<1x128xf32> to vector<8x128xf32>
    %478 = arith.addf %475, %477 : vector<8x128xf32>
    %c0_205 = arith.constant 0 : index
    %c0_206 = arith.constant 0 : index
    %479 = vector.load %arg3[%c0_205, %c0_206] : memref<32x128xf32, #tpu.memory_space<vmem>>, vector<32x128xf32>
    %cst_207 = arith.constant dense<0.000000e+00> : vector<8x128xf32>
    %480 = tpu.matmul %448, %479, %cst_207 {dimension_numbers = #tpu.dot_dimension_numbers<[1], [0], [0], [1], [0, 0, 1, 1], [], []>} : vector<8x32xf32>, vector<32x128xf32>, vector<8x128xf32> -> vector<8x128xf32>
    %481 = arith.addf %478, %480 : vector<8x128xf32>
    %482 = math.tanh %481 : vector<8x128xf32>
    %cst_208 = arith.constant 5.000000e-01 : f32
    %483 = vector.broadcast %cst_208 : f32 to vector<8x128xf32>
    %484 = arith.mulf %483, %482 : vector<8x128xf32>
    %cst_209 = arith.constant 5.000000e-01 : f32
    %485 = vector.broadcast %cst_209 : f32 to vector<8x128xf32>
    %486 = arith.addf %484, %485 : vector<8x128xf32>
    %487 = vector.extract_strided_slice %486 {offsets = [0, 0], sizes = [8, 32], strides = [1, 1]} : vector<8x128xf32> to vector<8x32xf32>
    %488 = vector.extract_strided_slice %486 {offsets = [0, 32], sizes = [8, 32], strides = [1, 1]} : vector<8x128xf32> to vector<8x32xf32>
    %489 = vector.extract_strided_slice %486 {offsets = [0, 64], sizes = [8, 32], strides = [1, 1]} : vector<8x128xf32> to vector<8x32xf32>
    %490 = vector.extract_strided_slice %482 {offsets = [0, 96], sizes = [8, 32], strides = [1, 1]} : vector<8x128xf32> to vector<8x32xf32>
    %491 = arith.mulf %488, %446 : vector<8x32xf32>
    %492 = arith.mulf %487, %490 : vector<8x32xf32>
    %493 = arith.addf %491, %492 : vector<8x32xf32>
    %494 = math.tanh %493 : vector<8x32xf32>
    %495 = arith.mulf %489, %494 : vector<8x32xf32>
    %c0_210 = arith.constant 0 : index
    %c0_211 = arith.constant 0 : index
    %496 = vector.load %arg4[%c0_210, %c0_211] : memref<32x128xf32, #tpu.memory_space<vmem>>, vector<32x128xf32>
    %cst_212 = arith.constant dense<0.000000e+00> : vector<8x128xf32>
    %497 = tpu.matmul %495, %496, %cst_212 {dimension_numbers = #tpu.dot_dimension_numbers<[1], [0], [0], [1], [0, 0, 1, 1], [], []>} : vector<8x32xf32>, vector<32x128xf32>, vector<8x128xf32> -> vector<8x128xf32>
    %c0_213 = arith.constant 0 : index
    %c0_214 = arith.constant 0 : index
    %498 = vector.load %arg5[%c0_213, %c0_214] : memref<32x128xf32, #tpu.memory_space<vmem>>, vector<32x128xf32>
    %cst_215 = arith.constant dense<0.000000e+00> : vector<8x128xf32>
    %499 = tpu.matmul %470, %498, %cst_215 {dimension_numbers = #tpu.dot_dimension_numbers<[1], [0], [0], [1], [0, 0, 1, 1], [], []>} : vector<8x32xf32>, vector<32x128xf32>, vector<8x128xf32> -> vector<8x128xf32>
    %500 = arith.addf %497, %499 : vector<8x128xf32>
    %c0_216 = arith.constant 0 : index
    %c0_217 = arith.constant 0 : index
    %501 = vector.load %arg6[%c0_216, %c0_217] : memref<1x128xf32, #tpu.memory_space<vmem>>, vector<1x128xf32>
    %502 = vector.broadcast %501 : vector<1x128xf32> to vector<8x128xf32>
    %503 = arith.addf %500, %502 : vector<8x128xf32>
    %504 = math.tanh %503 : vector<8x128xf32>
    %cst_218 = arith.constant 5.000000e-01 : f32
    %505 = vector.broadcast %cst_218 : f32 to vector<8x128xf32>
    %506 = arith.mulf %505, %504 : vector<8x128xf32>
    %cst_219 = arith.constant 5.000000e-01 : f32
    %507 = vector.broadcast %cst_219 : f32 to vector<8x128xf32>
    %508 = arith.addf %506, %507 : vector<8x128xf32>
    %509 = vector.extract_strided_slice %508 {offsets = [0, 0], sizes = [8, 32], strides = [1, 1]} : vector<8x128xf32> to vector<8x32xf32>
    %510 = vector.extract_strided_slice %508 {offsets = [0, 32], sizes = [8, 32], strides = [1, 1]} : vector<8x128xf32> to vector<8x32xf32>
    %511 = vector.extract_strided_slice %508 {offsets = [0, 64], sizes = [8, 32], strides = [1, 1]} : vector<8x128xf32> to vector<8x32xf32>
    %512 = vector.extract_strided_slice %504 {offsets = [0, 96], sizes = [8, 32], strides = [1, 1]} : vector<8x128xf32> to vector<8x32xf32>
    %513 = arith.mulf %510, %468 : vector<8x32xf32>
    %514 = arith.mulf %509, %512 : vector<8x32xf32>
    %515 = arith.addf %513, %514 : vector<8x32xf32>
    %516 = math.tanh %515 : vector<8x32xf32>
    %517 = arith.mulf %511, %516 : vector<8x32xf32>
    %c0_220 = arith.constant 0 : index
    %c11 = arith.constant 11 : index
    %518 = vector.load %arg0[%c0_220, %c11] : memref<8x16xf32, #tpu.memory_space<vmem>>, vector<8x1xf32>
    %c0_221 = arith.constant 0 : index
    %c0_222 = arith.constant 0 : index
    %519 = vector.load %arg1[%c0_221, %c0_222] : memref<1x128xf32, #tpu.memory_space<vmem>>, vector<1x128xf32>
    %520 = vector.broadcast %518 : vector<8x1xf32> to vector<8x128xf32>
    %521 = vector.broadcast %519 : vector<1x128xf32> to vector<8x128xf32>
    %522 = arith.mulf %520, %521 : vector<8x128xf32>
    %c0_223 = arith.constant 0 : index
    %c0_224 = arith.constant 0 : index
    %523 = vector.load %arg2[%c0_223, %c0_224] : memref<1x128xf32, #tpu.memory_space<vmem>>, vector<1x128xf32>
    %524 = vector.broadcast %523 : vector<1x128xf32> to vector<8x128xf32>
    %525 = arith.addf %522, %524 : vector<8x128xf32>
    %c0_225 = arith.constant 0 : index
    %c0_226 = arith.constant 0 : index
    %526 = vector.load %arg3[%c0_225, %c0_226] : memref<32x128xf32, #tpu.memory_space<vmem>>, vector<32x128xf32>
    %cst_227 = arith.constant dense<0.000000e+00> : vector<8x128xf32>
    %527 = tpu.matmul %495, %526, %cst_227 {dimension_numbers = #tpu.dot_dimension_numbers<[1], [0], [0], [1], [0, 0, 1, 1], [], []>} : vector<8x32xf32>, vector<32x128xf32>, vector<8x128xf32> -> vector<8x128xf32>
    %528 = arith.addf %525, %527 : vector<8x128xf32>
    %529 = math.tanh %528 : vector<8x128xf32>
    %cst_228 = arith.constant 5.000000e-01 : f32
    %530 = vector.broadcast %cst_228 : f32 to vector<8x128xf32>
    %531 = arith.mulf %530, %529 : vector<8x128xf32>
    %cst_229 = arith.constant 5.000000e-01 : f32
    %532 = vector.broadcast %cst_229 : f32 to vector<8x128xf32>
    %533 = arith.addf %531, %532 : vector<8x128xf32>
    %534 = vector.extract_strided_slice %533 {offsets = [0, 0], sizes = [8, 32], strides = [1, 1]} : vector<8x128xf32> to vector<8x32xf32>
    %535 = vector.extract_strided_slice %533 {offsets = [0, 32], sizes = [8, 32], strides = [1, 1]} : vector<8x128xf32> to vector<8x32xf32>
    %536 = vector.extract_strided_slice %533 {offsets = [0, 64], sizes = [8, 32], strides = [1, 1]} : vector<8x128xf32> to vector<8x32xf32>
    %537 = vector.extract_strided_slice %529 {offsets = [0, 96], sizes = [8, 32], strides = [1, 1]} : vector<8x128xf32> to vector<8x32xf32>
    %538 = arith.mulf %535, %493 : vector<8x32xf32>
    %539 = arith.mulf %534, %537 : vector<8x32xf32>
    %540 = arith.addf %538, %539 : vector<8x32xf32>
    %541 = math.tanh %540 : vector<8x32xf32>
    %542 = arith.mulf %536, %541 : vector<8x32xf32>
    %c0_230 = arith.constant 0 : index
    %c0_231 = arith.constant 0 : index
    %543 = vector.load %arg4[%c0_230, %c0_231] : memref<32x128xf32, #tpu.memory_space<vmem>>, vector<32x128xf32>
    %cst_232 = arith.constant dense<0.000000e+00> : vector<8x128xf32>
    %544 = tpu.matmul %542, %543, %cst_232 {dimension_numbers = #tpu.dot_dimension_numbers<[1], [0], [0], [1], [0, 0, 1, 1], [], []>} : vector<8x32xf32>, vector<32x128xf32>, vector<8x128xf32> -> vector<8x128xf32>
    %c0_233 = arith.constant 0 : index
    %c0_234 = arith.constant 0 : index
    %545 = vector.load %arg5[%c0_233, %c0_234] : memref<32x128xf32, #tpu.memory_space<vmem>>, vector<32x128xf32>
    %cst_235 = arith.constant dense<0.000000e+00> : vector<8x128xf32>
    %546 = tpu.matmul %517, %545, %cst_235 {dimension_numbers = #tpu.dot_dimension_numbers<[1], [0], [0], [1], [0, 0, 1, 1], [], []>} : vector<8x32xf32>, vector<32x128xf32>, vector<8x128xf32> -> vector<8x128xf32>
    %547 = arith.addf %544, %546 : vector<8x128xf32>
    %c0_236 = arith.constant 0 : index
    %c0_237 = arith.constant 0 : index
    %548 = vector.load %arg6[%c0_236, %c0_237] : memref<1x128xf32, #tpu.memory_space<vmem>>, vector<1x128xf32>
    %549 = vector.broadcast %548 : vector<1x128xf32> to vector<8x128xf32>
    %550 = arith.addf %547, %549 : vector<8x128xf32>
    %551 = math.tanh %550 : vector<8x128xf32>
    %cst_238 = arith.constant 5.000000e-01 : f32
    %552 = vector.broadcast %cst_238 : f32 to vector<8x128xf32>
    %553 = arith.mulf %552, %551 : vector<8x128xf32>
    %cst_239 = arith.constant 5.000000e-01 : f32
    %554 = vector.broadcast %cst_239 : f32 to vector<8x128xf32>
    %555 = arith.addf %553, %554 : vector<8x128xf32>
    %556 = vector.extract_strided_slice %555 {offsets = [0, 0], sizes = [8, 32], strides = [1, 1]} : vector<8x128xf32> to vector<8x32xf32>
    %557 = vector.extract_strided_slice %555 {offsets = [0, 32], sizes = [8, 32], strides = [1, 1]} : vector<8x128xf32> to vector<8x32xf32>
    %558 = vector.extract_strided_slice %555 {offsets = [0, 64], sizes = [8, 32], strides = [1, 1]} : vector<8x128xf32> to vector<8x32xf32>
    %559 = vector.extract_strided_slice %551 {offsets = [0, 96], sizes = [8, 32], strides = [1, 1]} : vector<8x128xf32> to vector<8x32xf32>
    %560 = arith.mulf %557, %515 : vector<8x32xf32>
    %561 = arith.mulf %556, %559 : vector<8x32xf32>
    %562 = arith.addf %560, %561 : vector<8x32xf32>
    %563 = math.tanh %562 : vector<8x32xf32>
    %564 = arith.mulf %558, %563 : vector<8x32xf32>
    %c0_240 = arith.constant 0 : index
    %c12 = arith.constant 12 : index
    %565 = vector.load %arg0[%c0_240, %c12] : memref<8x16xf32, #tpu.memory_space<vmem>>, vector<8x1xf32>
    %c0_241 = arith.constant 0 : index
    %c0_242 = arith.constant 0 : index
    %566 = vector.load %arg1[%c0_241, %c0_242] : memref<1x128xf32, #tpu.memory_space<vmem>>, vector<1x128xf32>
    %567 = vector.broadcast %565 : vector<8x1xf32> to vector<8x128xf32>
    %568 = vector.broadcast %566 : vector<1x128xf32> to vector<8x128xf32>
    %569 = arith.mulf %567, %568 : vector<8x128xf32>
    %c0_243 = arith.constant 0 : index
    %c0_244 = arith.constant 0 : index
    %570 = vector.load %arg2[%c0_243, %c0_244] : memref<1x128xf32, #tpu.memory_space<vmem>>, vector<1x128xf32>
    %571 = vector.broadcast %570 : vector<1x128xf32> to vector<8x128xf32>
    %572 = arith.addf %569, %571 : vector<8x128xf32>
    %c0_245 = arith.constant 0 : index
    %c0_246 = arith.constant 0 : index
    %573 = vector.load %arg3[%c0_245, %c0_246] : memref<32x128xf32, #tpu.memory_space<vmem>>, vector<32x128xf32>
    %cst_247 = arith.constant dense<0.000000e+00> : vector<8x128xf32>
    %574 = tpu.matmul %542, %573, %cst_247 {dimension_numbers = #tpu.dot_dimension_numbers<[1], [0], [0], [1], [0, 0, 1, 1], [], []>} : vector<8x32xf32>, vector<32x128xf32>, vector<8x128xf32> -> vector<8x128xf32>
    %575 = arith.addf %572, %574 : vector<8x128xf32>
    %576 = math.tanh %575 : vector<8x128xf32>
    %cst_248 = arith.constant 5.000000e-01 : f32
    %577 = vector.broadcast %cst_248 : f32 to vector<8x128xf32>
    %578 = arith.mulf %577, %576 : vector<8x128xf32>
    %cst_249 = arith.constant 5.000000e-01 : f32
    %579 = vector.broadcast %cst_249 : f32 to vector<8x128xf32>
    %580 = arith.addf %578, %579 : vector<8x128xf32>
    %581 = vector.extract_strided_slice %580 {offsets = [0, 0], sizes = [8, 32], strides = [1, 1]} : vector<8x128xf32> to vector<8x32xf32>
    %582 = vector.extract_strided_slice %580 {offsets = [0, 32], sizes = [8, 32], strides = [1, 1]} : vector<8x128xf32> to vector<8x32xf32>
    %583 = vector.extract_strided_slice %580 {offsets = [0, 64], sizes = [8, 32], strides = [1, 1]} : vector<8x128xf32> to vector<8x32xf32>
    %584 = vector.extract_strided_slice %576 {offsets = [0, 96], sizes = [8, 32], strides = [1, 1]} : vector<8x128xf32> to vector<8x32xf32>
    %585 = arith.mulf %582, %540 : vector<8x32xf32>
    %586 = arith.mulf %581, %584 : vector<8x32xf32>
    %587 = arith.addf %585, %586 : vector<8x32xf32>
    %588 = math.tanh %587 : vector<8x32xf32>
    %589 = arith.mulf %583, %588 : vector<8x32xf32>
    %c0_250 = arith.constant 0 : index
    %c0_251 = arith.constant 0 : index
    %590 = vector.load %arg4[%c0_250, %c0_251] : memref<32x128xf32, #tpu.memory_space<vmem>>, vector<32x128xf32>
    %cst_252 = arith.constant dense<0.000000e+00> : vector<8x128xf32>
    %591 = tpu.matmul %589, %590, %cst_252 {dimension_numbers = #tpu.dot_dimension_numbers<[1], [0], [0], [1], [0, 0, 1, 1], [], []>} : vector<8x32xf32>, vector<32x128xf32>, vector<8x128xf32> -> vector<8x128xf32>
    %c0_253 = arith.constant 0 : index
    %c0_254 = arith.constant 0 : index
    %592 = vector.load %arg5[%c0_253, %c0_254] : memref<32x128xf32, #tpu.memory_space<vmem>>, vector<32x128xf32>
    %cst_255 = arith.constant dense<0.000000e+00> : vector<8x128xf32>
    %593 = tpu.matmul %564, %592, %cst_255 {dimension_numbers = #tpu.dot_dimension_numbers<[1], [0], [0], [1], [0, 0, 1, 1], [], []>} : vector<8x32xf32>, vector<32x128xf32>, vector<8x128xf32> -> vector<8x128xf32>
    %594 = arith.addf %591, %593 : vector<8x128xf32>
    %c0_256 = arith.constant 0 : index
    %c0_257 = arith.constant 0 : index
    %595 = vector.load %arg6[%c0_256, %c0_257] : memref<1x128xf32, #tpu.memory_space<vmem>>, vector<1x128xf32>
    %596 = vector.broadcast %595 : vector<1x128xf32> to vector<8x128xf32>
    %597 = arith.addf %594, %596 : vector<8x128xf32>
    %598 = math.tanh %597 : vector<8x128xf32>
    %cst_258 = arith.constant 5.000000e-01 : f32
    %599 = vector.broadcast %cst_258 : f32 to vector<8x128xf32>
    %600 = arith.mulf %599, %598 : vector<8x128xf32>
    %cst_259 = arith.constant 5.000000e-01 : f32
    %601 = vector.broadcast %cst_259 : f32 to vector<8x128xf32>
    %602 = arith.addf %600, %601 : vector<8x128xf32>
    %603 = vector.extract_strided_slice %602 {offsets = [0, 0], sizes = [8, 32], strides = [1, 1]} : vector<8x128xf32> to vector<8x32xf32>
    %604 = vector.extract_strided_slice %602 {offsets = [0, 32], sizes = [8, 32], strides = [1, 1]} : vector<8x128xf32> to vector<8x32xf32>
    %605 = vector.extract_strided_slice %602 {offsets = [0, 64], sizes = [8, 32], strides = [1, 1]} : vector<8x128xf32> to vector<8x32xf32>
    %606 = vector.extract_strided_slice %598 {offsets = [0, 96], sizes = [8, 32], strides = [1, 1]} : vector<8x128xf32> to vector<8x32xf32>
    %607 = arith.mulf %604, %562 : vector<8x32xf32>
    %608 = arith.mulf %603, %606 : vector<8x32xf32>
    %609 = arith.addf %607, %608 : vector<8x32xf32>
    %610 = math.tanh %609 : vector<8x32xf32>
    %611 = arith.mulf %605, %610 : vector<8x32xf32>
    %c0_260 = arith.constant 0 : index
    %c13 = arith.constant 13 : index
    %612 = vector.load %arg0[%c0_260, %c13] : memref<8x16xf32, #tpu.memory_space<vmem>>, vector<8x1xf32>
    %c0_261 = arith.constant 0 : index
    %c0_262 = arith.constant 0 : index
    %613 = vector.load %arg1[%c0_261, %c0_262] : memref<1x128xf32, #tpu.memory_space<vmem>>, vector<1x128xf32>
    %614 = vector.broadcast %612 : vector<8x1xf32> to vector<8x128xf32>
    %615 = vector.broadcast %613 : vector<1x128xf32> to vector<8x128xf32>
    %616 = arith.mulf %614, %615 : vector<8x128xf32>
    %c0_263 = arith.constant 0 : index
    %c0_264 = arith.constant 0 : index
    %617 = vector.load %arg2[%c0_263, %c0_264] : memref<1x128xf32, #tpu.memory_space<vmem>>, vector<1x128xf32>
    %618 = vector.broadcast %617 : vector<1x128xf32> to vector<8x128xf32>
    %619 = arith.addf %616, %618 : vector<8x128xf32>
    %c0_265 = arith.constant 0 : index
    %c0_266 = arith.constant 0 : index
    %620 = vector.load %arg3[%c0_265, %c0_266] : memref<32x128xf32, #tpu.memory_space<vmem>>, vector<32x128xf32>
    %cst_267 = arith.constant dense<0.000000e+00> : vector<8x128xf32>
    %621 = tpu.matmul %589, %620, %cst_267 {dimension_numbers = #tpu.dot_dimension_numbers<[1], [0], [0], [1], [0, 0, 1, 1], [], []>} : vector<8x32xf32>, vector<32x128xf32>, vector<8x128xf32> -> vector<8x128xf32>
    %622 = arith.addf %619, %621 : vector<8x128xf32>
    %623 = math.tanh %622 : vector<8x128xf32>
    %cst_268 = arith.constant 5.000000e-01 : f32
    %624 = vector.broadcast %cst_268 : f32 to vector<8x128xf32>
    %625 = arith.mulf %624, %623 : vector<8x128xf32>
    %cst_269 = arith.constant 5.000000e-01 : f32
    %626 = vector.broadcast %cst_269 : f32 to vector<8x128xf32>
    %627 = arith.addf %625, %626 : vector<8x128xf32>
    %628 = vector.extract_strided_slice %627 {offsets = [0, 0], sizes = [8, 32], strides = [1, 1]} : vector<8x128xf32> to vector<8x32xf32>
    %629 = vector.extract_strided_slice %627 {offsets = [0, 32], sizes = [8, 32], strides = [1, 1]} : vector<8x128xf32> to vector<8x32xf32>
    %630 = vector.extract_strided_slice %627 {offsets = [0, 64], sizes = [8, 32], strides = [1, 1]} : vector<8x128xf32> to vector<8x32xf32>
    %631 = vector.extract_strided_slice %623 {offsets = [0, 96], sizes = [8, 32], strides = [1, 1]} : vector<8x128xf32> to vector<8x32xf32>
    %632 = arith.mulf %629, %587 : vector<8x32xf32>
    %633 = arith.mulf %628, %631 : vector<8x32xf32>
    %634 = arith.addf %632, %633 : vector<8x32xf32>
    %635 = math.tanh %634 : vector<8x32xf32>
    %636 = arith.mulf %630, %635 : vector<8x32xf32>
    %c0_270 = arith.constant 0 : index
    %c0_271 = arith.constant 0 : index
    %637 = vector.load %arg4[%c0_270, %c0_271] : memref<32x128xf32, #tpu.memory_space<vmem>>, vector<32x128xf32>
    %cst_272 = arith.constant dense<0.000000e+00> : vector<8x128xf32>
    %638 = tpu.matmul %636, %637, %cst_272 {dimension_numbers = #tpu.dot_dimension_numbers<[1], [0], [0], [1], [0, 0, 1, 1], [], []>} : vector<8x32xf32>, vector<32x128xf32>, vector<8x128xf32> -> vector<8x128xf32>
    %c0_273 = arith.constant 0 : index
    %c0_274 = arith.constant 0 : index
    %639 = vector.load %arg5[%c0_273, %c0_274] : memref<32x128xf32, #tpu.memory_space<vmem>>, vector<32x128xf32>
    %cst_275 = arith.constant dense<0.000000e+00> : vector<8x128xf32>
    %640 = tpu.matmul %611, %639, %cst_275 {dimension_numbers = #tpu.dot_dimension_numbers<[1], [0], [0], [1], [0, 0, 1, 1], [], []>} : vector<8x32xf32>, vector<32x128xf32>, vector<8x128xf32> -> vector<8x128xf32>
    %641 = arith.addf %638, %640 : vector<8x128xf32>
    %c0_276 = arith.constant 0 : index
    %c0_277 = arith.constant 0 : index
    %642 = vector.load %arg6[%c0_276, %c0_277] : memref<1x128xf32, #tpu.memory_space<vmem>>, vector<1x128xf32>
    %643 = vector.broadcast %642 : vector<1x128xf32> to vector<8x128xf32>
    %644 = arith.addf %641, %643 : vector<8x128xf32>
    %645 = math.tanh %644 : vector<8x128xf32>
    %cst_278 = arith.constant 5.000000e-01 : f32
    %646 = vector.broadcast %cst_278 : f32 to vector<8x128xf32>
    %647 = arith.mulf %646, %645 : vector<8x128xf32>
    %cst_279 = arith.constant 5.000000e-01 : f32
    %648 = vector.broadcast %cst_279 : f32 to vector<8x128xf32>
    %649 = arith.addf %647, %648 : vector<8x128xf32>
    %650 = vector.extract_strided_slice %649 {offsets = [0, 0], sizes = [8, 32], strides = [1, 1]} : vector<8x128xf32> to vector<8x32xf32>
    %651 = vector.extract_strided_slice %649 {offsets = [0, 32], sizes = [8, 32], strides = [1, 1]} : vector<8x128xf32> to vector<8x32xf32>
    %652 = vector.extract_strided_slice %649 {offsets = [0, 64], sizes = [8, 32], strides = [1, 1]} : vector<8x128xf32> to vector<8x32xf32>
    %653 = vector.extract_strided_slice %645 {offsets = [0, 96], sizes = [8, 32], strides = [1, 1]} : vector<8x128xf32> to vector<8x32xf32>
    %654 = arith.mulf %651, %609 : vector<8x32xf32>
    %655 = arith.mulf %650, %653 : vector<8x32xf32>
    %656 = arith.addf %654, %655 : vector<8x32xf32>
    %657 = math.tanh %656 : vector<8x32xf32>
    %658 = arith.mulf %652, %657 : vector<8x32xf32>
    %c0_280 = arith.constant 0 : index
    %c14 = arith.constant 14 : index
    %659 = vector.load %arg0[%c0_280, %c14] : memref<8x16xf32, #tpu.memory_space<vmem>>, vector<8x1xf32>
    %c0_281 = arith.constant 0 : index
    %c0_282 = arith.constant 0 : index
    %660 = vector.load %arg1[%c0_281, %c0_282] : memref<1x128xf32, #tpu.memory_space<vmem>>, vector<1x128xf32>
    %661 = vector.broadcast %659 : vector<8x1xf32> to vector<8x128xf32>
    %662 = vector.broadcast %660 : vector<1x128xf32> to vector<8x128xf32>
    %663 = arith.mulf %661, %662 : vector<8x128xf32>
    %c0_283 = arith.constant 0 : index
    %c0_284 = arith.constant 0 : index
    %664 = vector.load %arg2[%c0_283, %c0_284] : memref<1x128xf32, #tpu.memory_space<vmem>>, vector<1x128xf32>
    %665 = vector.broadcast %664 : vector<1x128xf32> to vector<8x128xf32>
    %666 = arith.addf %663, %665 : vector<8x128xf32>
    %c0_285 = arith.constant 0 : index
    %c0_286 = arith.constant 0 : index
    %667 = vector.load %arg3[%c0_285, %c0_286] : memref<32x128xf32, #tpu.memory_space<vmem>>, vector<32x128xf32>
    %cst_287 = arith.constant dense<0.000000e+00> : vector<8x128xf32>
    %668 = tpu.matmul %636, %667, %cst_287 {dimension_numbers = #tpu.dot_dimension_numbers<[1], [0], [0], [1], [0, 0, 1, 1], [], []>} : vector<8x32xf32>, vector<32x128xf32>, vector<8x128xf32> -> vector<8x128xf32>
    %669 = arith.addf %666, %668 : vector<8x128xf32>
    %670 = math.tanh %669 : vector<8x128xf32>
    %cst_288 = arith.constant 5.000000e-01 : f32
    %671 = vector.broadcast %cst_288 : f32 to vector<8x128xf32>
    %672 = arith.mulf %671, %670 : vector<8x128xf32>
    %cst_289 = arith.constant 5.000000e-01 : f32
    %673 = vector.broadcast %cst_289 : f32 to vector<8x128xf32>
    %674 = arith.addf %672, %673 : vector<8x128xf32>
    %675 = vector.extract_strided_slice %674 {offsets = [0, 0], sizes = [8, 32], strides = [1, 1]} : vector<8x128xf32> to vector<8x32xf32>
    %676 = vector.extract_strided_slice %674 {offsets = [0, 32], sizes = [8, 32], strides = [1, 1]} : vector<8x128xf32> to vector<8x32xf32>
    %677 = vector.extract_strided_slice %674 {offsets = [0, 64], sizes = [8, 32], strides = [1, 1]} : vector<8x128xf32> to vector<8x32xf32>
    %678 = vector.extract_strided_slice %670 {offsets = [0, 96], sizes = [8, 32], strides = [1, 1]} : vector<8x128xf32> to vector<8x32xf32>
    %679 = arith.mulf %676, %634 : vector<8x32xf32>
    %680 = arith.mulf %675, %678 : vector<8x32xf32>
    %681 = arith.addf %679, %680 : vector<8x32xf32>
    %682 = math.tanh %681 : vector<8x32xf32>
    %683 = arith.mulf %677, %682 : vector<8x32xf32>
    %c0_290 = arith.constant 0 : index
    %c0_291 = arith.constant 0 : index
    %684 = vector.load %arg4[%c0_290, %c0_291] : memref<32x128xf32, #tpu.memory_space<vmem>>, vector<32x128xf32>
    %cst_292 = arith.constant dense<0.000000e+00> : vector<8x128xf32>
    %685 = tpu.matmul %683, %684, %cst_292 {dimension_numbers = #tpu.dot_dimension_numbers<[1], [0], [0], [1], [0, 0, 1, 1], [], []>} : vector<8x32xf32>, vector<32x128xf32>, vector<8x128xf32> -> vector<8x128xf32>
    %c0_293 = arith.constant 0 : index
    %c0_294 = arith.constant 0 : index
    %686 = vector.load %arg5[%c0_293, %c0_294] : memref<32x128xf32, #tpu.memory_space<vmem>>, vector<32x128xf32>
    %cst_295 = arith.constant dense<0.000000e+00> : vector<8x128xf32>
    %687 = tpu.matmul %658, %686, %cst_295 {dimension_numbers = #tpu.dot_dimension_numbers<[1], [0], [0], [1], [0, 0, 1, 1], [], []>} : vector<8x32xf32>, vector<32x128xf32>, vector<8x128xf32> -> vector<8x128xf32>
    %688 = arith.addf %685, %687 : vector<8x128xf32>
    %c0_296 = arith.constant 0 : index
    %c0_297 = arith.constant 0 : index
    %689 = vector.load %arg6[%c0_296, %c0_297] : memref<1x128xf32, #tpu.memory_space<vmem>>, vector<1x128xf32>
    %690 = vector.broadcast %689 : vector<1x128xf32> to vector<8x128xf32>
    %691 = arith.addf %688, %690 : vector<8x128xf32>
    %692 = math.tanh %691 : vector<8x128xf32>
    %cst_298 = arith.constant 5.000000e-01 : f32
    %693 = vector.broadcast %cst_298 : f32 to vector<8x128xf32>
    %694 = arith.mulf %693, %692 : vector<8x128xf32>
    %cst_299 = arith.constant 5.000000e-01 : f32
    %695 = vector.broadcast %cst_299 : f32 to vector<8x128xf32>
    %696 = arith.addf %694, %695 : vector<8x128xf32>
    %697 = vector.extract_strided_slice %696 {offsets = [0, 0], sizes = [8, 32], strides = [1, 1]} : vector<8x128xf32> to vector<8x32xf32>
    %698 = vector.extract_strided_slice %696 {offsets = [0, 32], sizes = [8, 32], strides = [1, 1]} : vector<8x128xf32> to vector<8x32xf32>
    %699 = vector.extract_strided_slice %696 {offsets = [0, 64], sizes = [8, 32], strides = [1, 1]} : vector<8x128xf32> to vector<8x32xf32>
    %700 = vector.extract_strided_slice %692 {offsets = [0, 96], sizes = [8, 32], strides = [1, 1]} : vector<8x128xf32> to vector<8x32xf32>
    %701 = arith.mulf %698, %656 : vector<8x32xf32>
    %702 = arith.mulf %697, %700 : vector<8x32xf32>
    %703 = arith.addf %701, %702 : vector<8x32xf32>
    %704 = math.tanh %703 : vector<8x32xf32>
    %705 = arith.mulf %699, %704 : vector<8x32xf32>
    %c0_300 = arith.constant 0 : index
    %c15 = arith.constant 15 : index
    %706 = vector.load %arg0[%c0_300, %c15] : memref<8x16xf32, #tpu.memory_space<vmem>>, vector<8x1xf32>
    %c0_301 = arith.constant 0 : index
    %c0_302 = arith.constant 0 : index
    %707 = vector.load %arg1[%c0_301, %c0_302] : memref<1x128xf32, #tpu.memory_space<vmem>>, vector<1x128xf32>
    %708 = vector.broadcast %706 : vector<8x1xf32> to vector<8x128xf32>
    %709 = vector.broadcast %707 : vector<1x128xf32> to vector<8x128xf32>
    %710 = arith.mulf %708, %709 : vector<8x128xf32>
    %c0_303 = arith.constant 0 : index
    %c0_304 = arith.constant 0 : index
    %711 = vector.load %arg2[%c0_303, %c0_304] : memref<1x128xf32, #tpu.memory_space<vmem>>, vector<1x128xf32>
    %712 = vector.broadcast %711 : vector<1x128xf32> to vector<8x128xf32>
    %713 = arith.addf %710, %712 : vector<8x128xf32>
    %c0_305 = arith.constant 0 : index
    %c0_306 = arith.constant 0 : index
    %714 = vector.load %arg3[%c0_305, %c0_306] : memref<32x128xf32, #tpu.memory_space<vmem>>, vector<32x128xf32>
    %cst_307 = arith.constant dense<0.000000e+00> : vector<8x128xf32>
    %715 = tpu.matmul %683, %714, %cst_307 {dimension_numbers = #tpu.dot_dimension_numbers<[1], [0], [0], [1], [0, 0, 1, 1], [], []>} : vector<8x32xf32>, vector<32x128xf32>, vector<8x128xf32> -> vector<8x128xf32>
    %716 = arith.addf %713, %715 : vector<8x128xf32>
    %717 = math.tanh %716 : vector<8x128xf32>
    %cst_308 = arith.constant 5.000000e-01 : f32
    %718 = vector.broadcast %cst_308 : f32 to vector<8x128xf32>
    %719 = arith.mulf %718, %717 : vector<8x128xf32>
    %cst_309 = arith.constant 5.000000e-01 : f32
    %720 = vector.broadcast %cst_309 : f32 to vector<8x128xf32>
    %721 = arith.addf %719, %720 : vector<8x128xf32>
    %722 = vector.extract_strided_slice %721 {offsets = [0, 0], sizes = [8, 32], strides = [1, 1]} : vector<8x128xf32> to vector<8x32xf32>
    %723 = vector.extract_strided_slice %721 {offsets = [0, 32], sizes = [8, 32], strides = [1, 1]} : vector<8x128xf32> to vector<8x32xf32>
    %724 = vector.extract_strided_slice %721 {offsets = [0, 64], sizes = [8, 32], strides = [1, 1]} : vector<8x128xf32> to vector<8x32xf32>
    %725 = vector.extract_strided_slice %717 {offsets = [0, 96], sizes = [8, 32], strides = [1, 1]} : vector<8x128xf32> to vector<8x32xf32>
    %726 = arith.mulf %723, %681 : vector<8x32xf32>
    %727 = arith.mulf %722, %725 : vector<8x32xf32>
    %728 = arith.addf %726, %727 : vector<8x32xf32>
    %729 = math.tanh %728 : vector<8x32xf32>
    %730 = arith.mulf %724, %729 : vector<8x32xf32>
    %c0_310 = arith.constant 0 : index
    %c0_311 = arith.constant 0 : index
    %731 = vector.load %arg4[%c0_310, %c0_311] : memref<32x128xf32, #tpu.memory_space<vmem>>, vector<32x128xf32>
    %cst_312 = arith.constant dense<0.000000e+00> : vector<8x128xf32>
    %732 = tpu.matmul %730, %731, %cst_312 {dimension_numbers = #tpu.dot_dimension_numbers<[1], [0], [0], [1], [0, 0, 1, 1], [], []>} : vector<8x32xf32>, vector<32x128xf32>, vector<8x128xf32> -> vector<8x128xf32>
    %c0_313 = arith.constant 0 : index
    %c0_314 = arith.constant 0 : index
    %733 = vector.load %arg5[%c0_313, %c0_314] : memref<32x128xf32, #tpu.memory_space<vmem>>, vector<32x128xf32>
    %cst_315 = arith.constant dense<0.000000e+00> : vector<8x128xf32>
    %734 = tpu.matmul %705, %733, %cst_315 {dimension_numbers = #tpu.dot_dimension_numbers<[1], [0], [0], [1], [0, 0, 1, 1], [], []>} : vector<8x32xf32>, vector<32x128xf32>, vector<8x128xf32> -> vector<8x128xf32>
    %735 = arith.addf %732, %734 : vector<8x128xf32>
    %c0_316 = arith.constant 0 : index
    %c0_317 = arith.constant 0 : index
    %736 = vector.load %arg6[%c0_316, %c0_317] : memref<1x128xf32, #tpu.memory_space<vmem>>, vector<1x128xf32>
    %737 = vector.broadcast %736 : vector<1x128xf32> to vector<8x128xf32>
    %738 = arith.addf %735, %737 : vector<8x128xf32>
    %739 = math.tanh %738 : vector<8x128xf32>
    %cst_318 = arith.constant 5.000000e-01 : f32
    %740 = vector.broadcast %cst_318 : f32 to vector<8x128xf32>
    %741 = arith.mulf %740, %739 : vector<8x128xf32>
    %cst_319 = arith.constant 5.000000e-01 : f32
    %742 = vector.broadcast %cst_319 : f32 to vector<8x128xf32>
    %743 = arith.addf %741, %742 : vector<8x128xf32>
    %744 = vector.extract_strided_slice %743 {offsets = [0, 0], sizes = [8, 32], strides = [1, 1]} : vector<8x128xf32> to vector<8x32xf32>
    %745 = vector.extract_strided_slice %743 {offsets = [0, 32], sizes = [8, 32], strides = [1, 1]} : vector<8x128xf32> to vector<8x32xf32>
    %746 = vector.extract_strided_slice %743 {offsets = [0, 64], sizes = [8, 32], strides = [1, 1]} : vector<8x128xf32> to vector<8x32xf32>
    %747 = vector.extract_strided_slice %739 {offsets = [0, 96], sizes = [8, 32], strides = [1, 1]} : vector<8x128xf32> to vector<8x32xf32>
    %748 = arith.mulf %745, %703 : vector<8x32xf32>
    %749 = arith.mulf %744, %747 : vector<8x32xf32>
    %750 = arith.addf %748, %749 : vector<8x32xf32>
    %751 = math.tanh %750 : vector<8x32xf32>
    %752 = arith.mulf %746, %751 : vector<8x32xf32>
    %c0_320 = arith.constant 0 : index
    %c0_321 = arith.constant 0 : index
    %753 = vector.load %arg7[%c0_320, %c0_321] : memref<32x128xf32, #tpu.memory_space<vmem>>, vector<32x128xf32>
    %cst_322 = arith.constant dense<0.000000e+00> : vector<8x128xf32>
    %754 = tpu.matmul %752, %753, %cst_322 {dimension_numbers = #tpu.dot_dimension_numbers<[1], [0], [0], [1], [0, 0, 1, 1], [], []>} : vector<8x32xf32>, vector<32x128xf32>, vector<8x128xf32> -> vector<8x128xf32>
    %c0_323 = arith.constant 0 : index
    %c0_324 = arith.constant 0 : index
    %755 = vector.load %arg8[%c0_323, %c0_324] : memref<1x128xf32, #tpu.memory_space<vmem>>, vector<1x128xf32>
    %756 = vector.broadcast %755 : vector<1x128xf32> to vector<8x128xf32>
    %757 = arith.addf %754, %756 : vector<8x128xf32>
    %c0_325 = arith.constant 0 : index
    %c0_326 = arith.constant 0 : index
    %758 = vector.load %arg9[%c0_325, %c0_326] : memref<8x128xf32, #tpu.memory_space<vmem>>, vector<8x128xf32>
    tpu.vector_store %arg9[%c0_325, %c0_326], %757 {strides = array<i32>} : memref<8x128xf32, #tpu.memory_space<vmem>>, vector<8x128xf32>,
    return
  }
}

</mosaic_0001>

<llo_original>
// kernel: forward.1
$region0: #{forward.1}
  #allocation0 [shape = 'u32[]', space=smem, size = 0x4, offset = 0x4, fixed_abs, tag = 'smem constant byte address 0x4 - core index']
  #allocation1 [shape = 'u32[144,128]{1,0:T(1,128)}', space=vmem, size = 0x12000, scoped, tag = 'internal scratch']
  %s0 = inlined_call_operand.vmem [shape: f32[8,16], index: 0, kind: input, shape index: {}]
  %s1 = inlined_call_operand.vmem [shape: f32[1,128], index: 1, kind: input, shape index: {}]
  %s2 = inlined_call_operand.vmem [shape: f32[1,128], index: 2, kind: input, shape index: {}]
  %s3 = inlined_call_operand.hbm [shape: f32[32,128], index: 3, kind: input, shape index: {}]
  %s4 = inlined_call_operand.hbm [shape: f32[32,128], index: 4, kind: input, shape index: {}]
  %s5 = inlined_call_operand.hbm [shape: f32[32,128], index: 5, kind: input, shape index: {}]
  %s6 = inlined_call_operand.vmem [shape: f32[1,128], index: 6, kind: input, shape index: {}]
  %s7 = inlined_call_operand.hbm [shape: f32[32,128], index: 7, kind: input, shape index: {}]
  %s8 = inlined_call_operand.vmem [shape: f32[1,128], index: 8, kind: input, shape index: {}]
  %s9 = inlined_call_operand.vmem [shape: f32[8,128], index: 9, kind: output, shape index: {}]
  %s10 = sld [smem:[#allocation0]]
  $region62: #{forward.1} parent=0
    _
  %s12 = ssub.s32 1, %s10
  %s13 = scalar_select 0, %s12, %s10
  $region1: #{forward.1} parent=0
    #allocation2 [shape = 'u8[16384]{0}', space=vmem, size = 0x4000, scoped, tag = 'input window, operand 3, single buffered']
    #allocation3 [shape = 's32[1]{0}', space=sflag, size = 0x4, scoped, tag = 'scoped memory for forward.1']
    #allocation4 [shape = 'u8[16384]{0}', space=vmem, size = 0x4000, scoped, tag = 'input window, operand 4, single buffered']
    #allocation5 [shape = 's32[1]{0}', space=sflag, size = 0x4, scoped, tag = 'scoped memory for forward.1']
    #allocation6 [shape = 'u8[16384]{0}', space=vmem, size = 0x4000, scoped, tag = 'input window, operand 5, single buffered']
    #allocation7 [shape = 'u8[16384]{0}', space=vmem, size = 0x4000, scoped, tag = 'input window, operand 7, single buffered']
    #allocation8 [shape = 's32[1]{0}', space=sflag, size = 0x4, scoped, tag = 'scoped memory for forward.1']
    %14 = vsyncpa [#allocation3], 0
    %15 = vsyncpa [#allocation5], 0
    %16 = vsyncpa [#allocation8], 0
    // Predicated region
    $region2: #{forward.1} parent=1 // pred_check
      _
    $region3: #{forward.1} parent=1 // pred_check_branch
      %18 = sbr.rel (0) target = $region5
    $region4: #{forward.1} parent=1 // pred_region
      _
    $region5: #{forward.1} parent=1 // pred_fallthru
      _
    // Predicated region
    $region6: #{forward.1} parent=1 // pred_check
      _
    $region7: #{forward.1} parent=1 // pred_check_branch
      %20 = sbr.rel (0) target = $region9
    $region8: #{forward.1} parent=1 // pred_region
      _
    $region9: #{forward.1} parent=1 // pred_fallthru
      _
    // Predicated region
    $region10: #{forward.1} parent=1 // pred_check
      _
    $region11: #{forward.1} parent=1 // pred_check_branch
      %22 = sbr.rel (0) target = $region13
    $region12: #{forward.1} parent=1 // pred_region
      _
    $region13: #{forward.1} parent=1 // pred_fallthru
      _
    // Predicated region
    $region14: #{forward.1} parent=1 // pred_check
      _
    $region15: #{forward.1} parent=1 // pred_check_branch
      %24 = sbr.rel (0) target = $region17
    $region16: #{forward.1} parent=1 // pred_region
      %s26 = ssub.s32 512, 512
      %27 = vsyncadd [#allocation3], %s26
      %s28 = sshll.u32 [#allocation2], 4
      %s29 = int_to_ptr.vmem [resolvable:$true] %s28
      %34 = dma.hbm_to_vmem [thread:$0]  %s3, 512, %s29, [#allocation3], 128, 128, 8
    $region17: #{forward.1} parent=1 // pred_fallthru
      _
    // Predicated region
    $region18: #{forward.1} parent=1 // pred_check
      _
    $region19: #{forward.1} parent=1 // pred_check_branch
      %36 = sbr.rel (0) target = $region21
    $region20: #{forward.1} parent=1 // pred_region
      %s38 = ssub.s32 512, 512
      %39 = vsyncadd [#allocation5], %s38
      %s40 = sshll.u32 [#allocation4], 4
      %s41 = int_to_ptr.vmem [resolvable:$true] %s40
      %46 = dma.hbm_to_vmem [thread:$0]  %s4, 512, %s41, [#allocation5], 128, 128, 8
    $region21: #{forward.1} parent=1 // pred_fallthru
      _
    // Predicated region
    $region22: #{forward.1} parent=1 // pred_check
      _
    $region23: #{forward.1} parent=1 // pred_check_branch
      %48 = sbr.rel (0) target = $region25
    $region24: #{forward.1} parent=1 // pred_region
      %s50 = ssub.s32 512, 512
      %51 = vsyncadd [#allocation5], %s50
      %s52 = sshll.u32 [#allocation6], 4
      %s53 = int_to_ptr.vmem [resolvable:$true] %s52
      %58 = dma.hbm_to_vmem [thread:$0]  %s5, 512, %s53, [#allocation5], 128, 128, 8
    $region25: #{forward.1} parent=1 // pred_fallthru
      _
    // Predicated region
    $region26: #{forward.1} parent=1 // pred_check
      _
    $region27: #{forward.1} parent=1 // pred_check_branch
      %60 = sbr.rel (0) target = $region29
    $region28: #{forward.1} parent=1 // pred_region
      _
    $region29: #{forward.1} parent=1 // pred_fallthru
      _
    // Predicated region
    $region30: #{forward.1} parent=1 // pred_check
      _
    $region31: #{forward.1} parent=1 // pred_check_branch
      %62 = sbr.rel (0) target = $region33
    $region32: #{forward.1} parent=1 // pred_region
      %s64 = ssub.s32 512, 512
      %65 = vsyncadd [#allocation8], %s64
      %s66 = sshll.u32 [#allocation7], 4
      %s67 = int_to_ptr.vmem [resolvable:$true] %s66
      %72 = dma.hbm_to_vmem [thread:$0]  %s7, 512, %s67, [#allocation8], 128, 128, 8
    $region33: #{forward.1} parent=1 // pred_fallthru
      _
    // Predicated region
    $region34: #{forward.1} parent=1 // pred_check
      _
    $region35: #{forward.1} parent=1 // pred_check_branch
      %74 = sbr.rel (0) target = $region37
    $region36: #{forward.1} parent=1 // pred_region
      _
    $region37: #{forward.1} parent=1 // pred_fallthru
      _
    // Predicated region
    $region38: #{forward.1} parent=1 // pred_check
      _
    $region39: #{forward.1} parent=1 // pred_check_branch
      %76 = sbr.rel (0) target = $region41
    $region40: #{forward.1} parent=1 // pred_region
      %77 = dma.done [#allocation3], 512
    $region41: #{forward.1} parent=1 // pred_fallthru
      _
    // Predicated region
    $region42: #{forward.1} parent=1 // pred_check
      _
    $region43: #{forward.1} parent=1 // pred_check_branch
      %79 = sbr.rel (0) target = $region45
    $region44: #{forward.1} parent=1 // pred_region
      %80 = dma.done [#allocation5], 512
    $region45: #{forward.1} parent=1 // pred_fallthru
      _
    // Predicated region
    $region46: #{forward.1} parent=1 // pred_check
      _
    $region47: #{forward.1} parent=1 // pred_check_branch
      %82 = sbr.rel (0) target = $region49
    $region48: #{forward.1} parent=1 // pred_region
      %83 = dma.done [#allocation5], 512
    $region49: #{forward.1} parent=1 // pred_fallthru
      _
    // Predicated region
    $region50: #{forward.1} parent=1 // pred_check
      _
    $region51: #{forward.1} parent=1 // pred_check_branch
      %85 = sbr.rel (0) target = $region53
    $region52: #{forward.1} parent=1 // pred_region
      %86 = dma.done [#allocation8], 512
    $region53: #{forward.1} parent=1 // pred_fallthru
      _
    %v87 = vld [vmem:[%s0] sm:$0xff]
    %v88 = vld [vmem:[%s1] sm:$0x1]
    %90 = vset.pattern.permute.xlu0 0
    %91 = vperm.xlu0 %90, %v87
    %v92 = vpop.permute.xlu0 %91
    %v95 = vlaneseq
    %v96 = vshrl.u32 %v95, 7
    %v97 = vsub.s32 0, %v96
    %v98 = vrot.slane %v88, %v97
    %v100 = vmul.f32 %v92, %v98
    %v101 = vld [vmem:[%s2] sm:$0x1]
    %v103 = vlaneseq
    %v104 = vshrl.u32 %v103, 7
    %v105 = vsub.s32 0, %v104
    %v106 = vrot.slane %v101, %v105
    %v108 = vadd.f32 %v100, %v106
    %v109 = vld [vmem:[#allocation2] sm:$0xff]
    %v110 = vld [vmem:[#allocation2 + $0x8] sm:$0xff]
    %v111 = vld [vmem:[#allocation2 + $0x10] sm:$0xff]
    %v112 = vld [vmem:[#allocation2 + $0x18] sm:$0xff]
    %vm113 = vcmask 261120
    %v115 = vsel %vm113, 0.0, 0
    %117 = vmatprep.subr.mxu0 0.0
    %118 = vmatpush1.msra.mxu0 0.0
    %119 = vmatprep.subr.mxu0 0.0
    %120 = vmatpush1.msra.mxu0 0.0
    %121 = vmatprep.subr.mxu0 0.0
    %122 = vmatpush1.msra.mxu0 0.0
    %123 = vmatprep.subr.mxu0 0.0
    %124 = vmatpush1.msra.mxu0 0.0
    %125 = vmatprep.subr.mxu0 0.0
    %126 = vmatpush1.msra.mxu0 0.0
    %127 = vmatprep.subr.mxu0 0.0
    %128 = vmatpush1.msra.mxu0 0.0
    %129 = vmatprep.subr.mxu0 0.0
    %130 = vmatpush1.msra.mxu0 0.0
    %131 = vmatprep.subr.mxu0 0.0
    %132 = vmatpush1.msra.mxu0 0.0
    %133 = vmatprep.subr.mxu0 0.0
    %134 = vmatpush1.msra.mxu0 0.0
    %135 = vmatprep.subr.mxu0 0.0
    %136 = vmatpush1.msra.mxu0 0.0
    %137 = vmatprep.subr.mxu0 0.0
    %138 = vmatpush1.msra.mxu0 0.0
    %139 = vmatprep.subr.mxu0 0.0
    %140 = vmatpush1.msra.mxu0 0.0
    %141 = vmatprep.subr.mxu0 0.0
    %142 = vmatpush1.msra.mxu0 %v112
    %143 = vmatprep.subr.mxu0 0.0
    %144 = vmatpush1.msra.mxu0 %v111
    %145 = vmatprep.subr.mxu0 0.0
    %146 = vmatpush1.msra.mxu0 %v110
    %147 = vmatprep.subr.mxu0 0.0
    %148 = vmatpush1.msra.mxu0 %v109
    %149 = vmatprep.subr.mxu0 0.0
    %150 = vmatpush2.msra.mxu0 0.0
    %151 = vmatprep.subr.mxu0 0.0
    %152 = vmatpush2.msra.mxu0 0.0
    %153 = vmatprep.subr.mxu0 0.0
    %154 = vmatpush2.msra.mxu0 0.0
    %155 = vmatprep.subr.mxu0 0.0
    %156 = vmatpush2.msra.mxu0 0.0
    %157 = vmatprep.subr.mxu0 0.0
    %158 = vmatpush2.msra.mxu0 0.0
    %159 = vmatprep.subr.mxu0 0.0
    %160 = vmatpush2.msra.mxu0 0.0
    %161 = vmatprep.subr.mxu0 0.0
    %162 = vmatpush2.msra.mxu0 0.0
    %163 = vmatprep.subr.mxu0 0.0
    %164 = vmatpush2.msra.mxu0 0.0
    %165 = vmatprep.subr.mxu0 0.0
    %166 = vmatpush2.msra.mxu0 0.0
    %167 = vmatprep.subr.mxu0 0.0
    %168 = vmatpush2.msra.mxu0 0.0
    %169 = vmatprep.subr.mxu0 0.0
    %170 = vmatpush2.msra.mxu0 0.0
    %171 = vmatprep.subr.mxu0 0.0
    %172 = vmatpush2.msra.mxu0 0.0
    %173 = vmatprep.subr.mxu0 0.0
    %174 = vmatpush2.msra.mxu0 0.0
    %175 = vmatprep.subr.mxu0 0.0
    %176 = vmatpush2.msra.mxu0 0.0
    %177 = vmatprep.subr.mxu0 0.0
    %178 = vmatpush2.msra.mxu0 0.0
    %179 = vmatprep.subr.mxu0 0.0
    %180 = vmatpush2.msra.mxu0 0.0
    %181 = vmatprep.mubr.f32.mxu0 0.0
    %182 = vmatmul.mubr.f32.gmra.mxu0 %v115
    %v183 = vpop.f32.mrf.mxu0
    %v184 = vadd.f32 0.0, %v183
    %v185 = vpop.f32.mrf.mxu0
    %186 = vdwg.mxu0
    %v187 = vadd.f32 %v108, %v184
    %v188 = vtanh.pop %v187
    %v189 = vmul.f32 %v188, 0.5
    %v190 = vadd.f32 %v189, 0.5
    %v191 = vmul.f32 %v190, 0.0
    %193 = vrot.lane.b32.xlu0 %v188, 32
    %v194 = vpop.permute.xlu0 %193
    %v196 = vmul.f32 %v190, %v194
    %198 = vrot.lane.b32.xlu0 %v196, 32
    %v199 = vpop.permute.xlu0 %198
    %v201 = vadd.f32 %v191, %v199
    %v202 = vtanh.pop %v201
    %204 = vrot.lane.b32.xlu0 %v202, 32
    %v205 = vpop.permute.xlu0 %204
    %v207 = vmul.f32 %v190, %v205
    %v208 = vld [vmem:[#allocation4] sm:$0xff]
    %v209 = vld [vmem:[#allocation4 + $0x8] sm:$0xff]
    %v210 = vld [vmem:[#allocation4 + $0x10] sm:$0xff]
    %v211 = vld [vmem:[#allocation4 + $0x18] sm:$0xff]
    %v212 = vld [vmem:[#allocation6] sm:$0xff]
    %v213 = vld [vmem:[#allocation6 + $0x8] sm:$0xff]
    %v214 = vld [vmem:[#allocation6 + $0x10] sm:$0xff]
    %v215 = vld [vmem:[#allocation6 + $0x18] sm:$0xff]
    %216 = vmatprep.subr.mxu0 0.0
    %217 = vmatpush1.msra.mxu0 0.0
    %218 = vmatprep.subr.mxu0 0.0
    %219 = vmatpush1.msra.mxu0 0.0
    %220 = vmatprep.subr.mxu0 0.0
    %221 = vmatpush1.msra.mxu0 0.0
    %222 = vmatprep.subr.mxu0 0.0
    %223 = vmatpush1.msra.mxu0 0.0
    %224 = vmatprep.subr.mxu0 0.0
    %225 = vmatpush1.msra.mxu0 0.0
    %226 = vmatprep.subr.mxu0 0.0
    %227 = vmatpush1.msra.mxu0 0.0
    %228 = vmatprep.subr.mxu0 0.0
    %229 = vmatpush1.msra.mxu0 0.0
    %230 = vmatprep.subr.mxu0 0.0
    %231 = vmatpush1.msra.mxu0 0.0
    %232 = vmatprep.subr.mxu0 0.0
    %233 = vmatpush1.msra.mxu0 0.0
    %234 = vmatprep.subr.mxu0 0.0
    %235 = vmatpush1.msra.mxu0 0.0
    %236 = vmatprep.subr.mxu0 0.0
    %237 = vmatpush1.msra.mxu0 0.0
    %238 = vmatprep.subr.mxu0 0.0
    %239 = vmatpush1.msra.mxu0 0.0
    %240 = vmatprep.subr.mxu0 0.0
    %241 = vmatpush1.msra.mxu0 %v215
    %242 = vmatprep.subr.mxu0 0.0
    %243 = vmatpush1.msra.mxu0 %v214
    %244 = vmatprep.subr.mxu0 0.0
    %245 = vmatpush1.msra.mxu0 %v213
    %246 = vmatprep.subr.mxu0 0.0
    %247 = vmatpush1.msra.mxu0 %v212
    %248 = vmatprep.subr.mxu0 0.0
    %249 = vmatpush2.msra.mxu0 0.0
    %250 = vmatprep.subr.mxu0 0.0
    %251 = vmatpush2.msra.mxu0 0.0
    %252 = vmatprep.subr.mxu0 0.0
    %253 = vmatpush2.msra.mxu0 0.0
    %254 = vmatprep.subr.mxu0 0.0
    %255 = vmatpush2.msra.mxu0 0.0
    %256 = vmatprep.subr.mxu0 0.0
    %257 = vmatpush2.msra.mxu0 0.0
    %258 = vmatprep.subr.mxu0 0.0
    %259 = vmatpush2.msra.mxu0 0.0
    %260 = vmatprep.subr.mxu0 0.0
    %261 = vmatpush2.msra.mxu0 0.0
    %262 = vmatprep.subr.mxu0 0.0
    %263 = vmatpush2.msra.mxu0 0.0
    %264 = vmatprep.subr.mxu0 0.0
    %265 = vmatpush2.msra.mxu0 0.0
    %266 = vmatprep.subr.mxu0 0.0
    %267 = vmatpush2.msra.mxu0 0.0
    %268 = vmatprep.subr.mxu0 0.0
    %269 = vmatpush2.msra.mxu0 0.0
    %270 = vmatprep.subr.mxu0 0.0
    %271 = vmatpush2.msra.mxu0 0.0
    %272 = vmatprep.subr.mxu0 0.0
    %273 = vmatpush2.msra.mxu0 0.0
    %274 = vmatprep.subr.mxu0 0.0
    %275 = vmatpush2.msra.mxu0 0.0
    %276 = vmatprep.subr.mxu0 0.0
    %277 = vmatpush2.msra.mxu0 0.0
    %278 = vmatprep.subr.mxu0 0.0
    %279 = vmatpush2.msra.mxu0 0.0
    %280 = vmatprep.mubr.f32.mxu0 0.0
    %281 = vmatmul.mubr.f32.gmra.mxu0 %v115
    %v282 = vpop.f32.mrf.mxu0
    %v283 = vadd.f32 0.0, %v282
    %v284 = vpop.f32.mrf.mxu0
    %285 = vdwg.mxu0
    %287 = vrot.lane.b32.xlu0 %v207, 64
    %v288 = vpop.permute.xlu0 %287
    %v289 = vsel %vm113, %v288, 0
    %291 = vmatprep.subr.mxu0 0.0
    %292 = vmatpush1.msra.mxu0 0.0
    %293 = vmatprep.subr.mxu0 0.0
    %294 = vmatpush1.msra.mxu0 0.0
    %295 = vmatprep.subr.mxu0 0.0
    %296 = vmatpush1.msra.mxu0 0.0
    %297 = vmatprep.subr.mxu0 0.0
    %298 = vmatpush1.msra.mxu0 0.0
    %299 = vmatprep.subr.mxu0 0.0
    %300 = vmatpush1.msra.mxu0 0.0
    %301 = vmatprep.subr.mxu0 0.0
    %302 = vmatpush1.msra.mxu0 0.0
    %303 = vmatprep.subr.mxu0 0.0
    %304 = vmatpush1.msra.mxu0 0.0
    %305 = vmatprep.subr.mxu0 0.0
    %306 = vmatpush1.msra.mxu0 0.0
    %307 = vmatprep.subr.mxu0 0.0
    %308 = vmatpush1.msra.mxu0 0.0
    %309 = vmatprep.subr.mxu0 0.0
    %310 = vmatpush1.msra.mxu0 0.0
    %311 = vmatprep.subr.mxu0 0.0
    %312 = vmatpush1.msra.mxu0 0.0
    %313 = vmatprep.subr.mxu0 0.0
    %314 = vmatpush1.msra.mxu0 0.0
    %315 = vmatprep.subr.mxu0 0.0
    %316 = vmatpush1.msra.mxu0 %v211
    %317 = vmatprep.subr.mxu0 0.0
    %318 = vmatpush1.msra.mxu0 %v210
    %319 = vmatprep.subr.mxu0 0.0
    %320 = vmatpush1.msra.mxu0 %v209
    %321 = vmatprep.subr.mxu0 0.0
    %322 = vmatpush1.msra.mxu0 %v208
    %323 = vmatprep.subr.mxu0 0.0
    %324 = vmatpush2.msra.mxu0 0.0
    %325 = vmatprep.subr.mxu0 0.0
    %326 = vmatpush2.msra.mxu0 0.0
    %327 = vmatprep.subr.mxu0 0.0
    %328 = vmatpush2.msra.mxu0 0.0
    %329 = vmatprep.subr.mxu0 0.0
    %330 = vmatpush2.msra.mxu0 0.0
    %331 = vmatprep.subr.mxu0 0.0
    %332 = vmatpush2.msra.mxu0 0.0
    %333 = vmatprep.subr.mxu0 0.0
    %334 = vmatpush2.msra.mxu0 0.0
    %335 = vmatprep.subr.mxu0 0.0
    %336 = vmatpush2.msra.mxu0 0.0
    %337 = vmatprep.subr.mxu0 0.0
    %338 = vmatpush2.msra.mxu0 0.0
    %339 = vmatprep.subr.mxu0 0.0
    %340 = vmatpush2.msra.mxu0 0.0
    %341 = vmatprep.subr.mxu0 0.0
    %342 = vmatpush2.msra.mxu0 0.0
    %343 = vmatprep.subr.mxu0 0.0
    %344 = vmatpush2.msra.mxu0 0.0
    %345 = vmatprep.subr.mxu0 0.0
    %346 = vmatpush2.msra.mxu0 0.0
    %347 = vmatprep.subr.mxu0 0.0
    %348 = vmatpush2.msra.mxu0 0.0
    %349 = vmatprep.subr.mxu0 0.0
    %350 = vmatpush2.msra.mxu0 0.0
    %351 = vmatprep.subr.mxu0 0.0
    %352 = vmatpush2.msra.mxu0 0.0
    %353 = vmatprep.subr.mxu0 0.0
    %354 = vmatpush2.msra.mxu0 0.0
    %355 = vmatprep.mubr.f32.mxu0 0.0
    %356 = vmatmul.mubr.f32.gmra.mxu0 %v289
    %v357 = vpop.f32.mrf.mxu0
    %v358 = vadd.f32 %v283, %v357
    %v359 = vpop.f32.mrf.mxu0
    %360 = vdwg.mxu0
    %v361 = vld [vmem:[%s6] sm:$0x1]
    %v363 = vlaneseq
    %v364 = vshrl.u32 %v363, 7
    %v365 = vsub.s32 0, %v364
    %v366 = vrot.slane %v361, %v365
    %v368 = vadd.f32 %v358, %v366
    %v369 = vtanh.pop %v368
    %v370 = vmul.f32 %v369, 0.5
    %v371 = vadd.f32 %v370, 0.5
    %v372 = vmul.f32 %v371, 0.0
    %374 = vrot.lane.b32.xlu0 %v369, 32
    %v375 = vpop.permute.xlu0 %374
    %v377 = vmul.f32 %v371, %v375
    %379 = vrot.lane.b32.xlu0 %v377, 32
    %v380 = vpop.permute.xlu0 %379
    %v382 = vadd.f32 %v372, %v380
    %v383 = vtanh.pop %v382
    %385 = vrot.lane.b32.xlu0 %v383, 32
    %v386 = vpop.permute.xlu0 %385
    %v388 = vmul.f32 %v371, %v386
    %389 = vset.pattern.permute.xlu0 1
    %390 = vperm.xlu0 %389, %v87
    %v391 = vpop.permute.xlu0 %390
    %v393 = vmul.f32 %v391, %v98
    %v394 = vadd.f32 %v393, %v106
    %395 = vmatprep.subr.mxu0 0.0
    %396 = vmatpush1.msra.mxu0 0.0
    %397 = vmatprep.subr.mxu0 0.0
    %398 = vmatpush1.msra.mxu0 0.0
    %399 = vmatprep.subr.mxu0 0.0
    %400 = vmatpush1.msra.mxu0 0.0
    %401 = vmatprep.subr.mxu0 0.0
    %402 = vmatpush1.msra.mxu0 0.0
    %403 = vmatprep.subr.mxu0 0.0
    %404 = vmatpush1.msra.mxu0 0.0
    %405 = vmatprep.subr.mxu0 0.0
    %406 = vmatpush1.msra.mxu0 0.0
    %407 = vmatprep.subr.mxu0 0.0
    %408 = vmatpush1.msra.mxu0 0.0
    %409 = vmatprep.subr.mxu0 0.0
    %410 = vmatpush1.msra.mxu0 0.0
    %411 = vmatprep.subr.mxu0 0.0
    %412 = vmatpush1.msra.mxu0 0.0
    %413 = vmatprep.subr.mxu0 0.0
    %414 = vmatpush1.msra.mxu0 0.0
    %415 = vmatprep.subr.mxu0 0.0
    %416 = vmatpush1.msra.mxu0 0.0
    %417 = vmatprep.subr.mxu0 0.0
    %418 = vmatpush1.msra.mxu0 0.0
    %419 = vmatprep.subr.mxu0 0.0
    %420 = vmatpush1.msra.mxu0 %v112
    %421 = vmatprep.subr.mxu0 0.0
    %422 = vmatpush1.msra.mxu0 %v111
    %423 = vmatprep.subr.mxu0 0.0
    %424 = vmatpush1.msra.mxu0 %v110
    %425 = vmatprep.subr.mxu0 0.0
    %426 = vmatpush1.msra.mxu0 %v109
    %427 = vmatprep.subr.mxu0 0.0
    %428 = vmatpush2.msra.mxu0 0.0
    %429 = vmatprep.subr.mxu0 0.0
    %430 = vmatpush2.msra.mxu0 0.0
    %431 = vmatprep.subr.mxu0 0.0
    %432 = vmatpush2.msra.mxu0 0.0
    %433 = vmatprep.subr.mxu0 0.0
    %434 = vmatpush2.msra.mxu0 0.0
    %435 = vmatprep.subr.mxu0 0.0
    %436 = vmatpush2.msra.mxu0 0.0
    %437 = vmatprep.subr.mxu0 0.0
    %438 = vmatpush2.msra.mxu0 0.0
    %439 = vmatprep.subr.mxu0 0.0
    %440 = vmatpush2.msra.mxu0 0.0
    %441 = vmatprep.subr.mxu0 0.0
    %442 = vmatpush2.msra.mxu0 0.0
    %443 = vmatprep.subr.mxu0 0.0
    %444 = vmatpush2.msra.mxu0 0.0
    %445 = vmatprep.subr.mxu0 0.0
    %446 = vmatpush2.msra.mxu0 0.0
    %447 = vmatprep.subr.mxu0 0.0
    %448 = vmatpush2.msra.mxu0 0.0
    %449 = vmatprep.subr.mxu0 0.0
    %450 = vmatpush2.msra.mxu0 0.0
    %451 = vmatprep.subr.mxu0 0.0
    %452 = vmatpush2.msra.mxu0 0.0
    %453 = vmatprep.subr.mxu0 0.0
    %454 = vmatpush2.msra.mxu0 0.0
    %455 = vmatprep.subr.mxu0 0.0
    %456 = vmatpush2.msra.mxu0 0.0
    %457 = vmatprep.subr.mxu0 0.0
    %458 = vmatpush2.msra.mxu0 0.0
    %459 = vmatprep.mubr.f32.mxu0 0.0
    %460 = vmatmul.mubr.f32.gmra.mxu0 %v289
    %v461 = vpop.f32.mrf.mxu0
    %v462 = vadd.f32 0.0, %v461
    %v463 = vpop.f32.mrf.mxu0
    %464 = vdwg.mxu0
    %v465 = vadd.f32 %v394, %v462
    %v466 = vtanh.pop %v465
    %v467 = vmul.f32 %v466, 0.5
    %v468 = vadd.f32 %v467, 0.5
    %v469 = vmul.f32 %v468, %v201
    %471 = vrot.lane.b32.xlu0 %v466, 32
    %v472 = vpop.permute.xlu0 %471
    %v474 = vmul.f32 %v468, %v472
    %476 = vrot.lane.b32.xlu0 %v474, 32
    %v477 = vpop.permute.xlu0 %476
    %v479 = vadd.f32 %v469, %v477
    %v480 = vtanh.pop %v479
    %482 = vrot.lane.b32.xlu0 %v480, 32
    %v483 = vpop.permute.xlu0 %482
    %v485 = vmul.f32 %v468, %v483
    %487 = vrot.lane.b32.xlu0 %v388, 64
    %v488 = vpop.permute.xlu0 %487
    %v489 = vsel %vm113, %v488, 0
    %491 = vmatprep.subr.mxu0 0.0
    %492 = vmatpush1.msra.mxu0 0.0
    %493 = vmatprep.subr.mxu0 0.0
    %494 = vmatpush1.msra.mxu0 0.0
    %495 = vmatprep.subr.mxu0 0.0
    %496 = vmatpush1.msra.mxu0 0.0
    %497 = vmatprep.subr.mxu0 0.0
    %498 = vmatpush1.msra.mxu0 0.0
    %499 = vmatprep.subr.mxu0 0.0
    %500 = vmatpush1.msra.mxu0 0.0
    %501 = vmatprep.subr.mxu0 0.0
    %502 = vmatpush1.msra.mxu0 0.0
    %503 = vmatprep.subr.mxu0 0.0
    %504 = vmatpush1.msra.mxu0 0.0
    %505 = vmatprep.subr.mxu0 0.0
    %506 = vmatpush1.msra.mxu0 0.0
    %507 = vmatprep.subr.mxu0 0.0
    %508 = vmatpush1.msra.mxu0 0.0
    %509 = vmatprep.subr.mxu0 0.0
    %510 = vmatpush1.msra.mxu0 0.0
    %511 = vmatprep.subr.mxu0 0.0
    %512 = vmatpush1.msra.mxu0 0.0
    %513 = vmatprep.subr.mxu0 0.0
    %514 = vmatpush1.msra.mxu0 0.0
    %515 = vmatprep.subr.mxu0 0.0
    %516 = vmatpush1.msra.mxu0 %v215
    %517 = vmatprep.subr.mxu0 0.0
    %518 = vmatpush1.msra.mxu0 %v214
    %519 = vmatprep.subr.mxu0 0.0
    %520 = vmatpush1.msra.mxu0 %v213
    %521 = vmatprep.subr.mxu0 0.0
    %522 = vmatpush1.msra.mxu0 %v212
    %523 = vmatprep.subr.mxu0 0.0
    %524 = vmatpush2.msra.mxu0 0.0
    %525 = vmatprep.subr.mxu0 0.0
    %526 = vmatpush2.msra.mxu0 0.0
    %527 = vmatprep.subr.mxu0 0.0
    %528 = vmatpush2.msra.mxu0 0.0
    %529 = vmatprep.subr.mxu0 0.0
    %530 = vmatpush2.msra.mxu0 0.0
    %531 = vmatprep.subr.mxu0 0.0
    %532 = vmatpush2.msra.mxu0 0.0
    %533 = vmatprep.subr.mxu0 0.0
    %534 = vmatpush2.msra.mxu0 0.0
    %535 = vmatprep.subr.mxu0 0.0
    %536 = vmatpush2.msra.mxu0 0.0
    %537 = vmatprep.subr.mxu0 0.0
    %538 = vmatpush2.msra.mxu0 0.0
    %539 = vmatprep.subr.mxu0 0.0
    %540 = vmatpush2.msra.mxu0 0.0
    %541 = vmatprep.subr.mxu0 0.0
    %542 = vmatpush2.msra.mxu0 0.0
    %543 = vmatprep.subr.mxu0 0.0
    %544 = vmatpush2.msra.mxu0 0.0
    %545 = vmatprep.subr.mxu0 0.0
    %546 = vmatpush2.msra.mxu0 0.0
    %547 = vmatprep.subr.mxu0 0.0
    %548 = vmatpush2.msra.mxu0 0.0
    %549 = vmatprep.subr.mxu0 0.0
    %550 = vmatpush2.msra.mxu0 0.0
    %551 = vmatprep.subr.mxu0 0.0
    %552 = vmatpush2.msra.mxu0 0.0
    %553 = vmatprep.subr.mxu0 0.0
    %554 = vmatpush2.msra.mxu0 0.0
    %555 = vmatprep.mubr.f32.mxu0 0.0
    %556 = vmatmul.mubr.f32.gmra.mxu0 %v489
    %v557 = vpop.f32.mrf.mxu0
    %v558 = vadd.f32 0.0, %v557
    %v559 = vpop.f32.mrf.mxu0
    %560 = vdwg.mxu0
    %562 = vrot.lane.b32.xlu0 %v485, 64
    %v563 = vpop.permute.xlu0 %562
    %v564 = vsel %vm113, %v563, 0
    %566 = vmatprep.subr.mxu0 0.0
    %567 = vmatpush1.msra.mxu0 0.0
    %568 = vmatprep.subr.mxu0 0.0
    %569 = vmatpush1.msra.mxu0 0.0
    %570 = vmatprep.subr.mxu0 0.0
    %571 = vmatpush1.msra.mxu0 0.0
    %572 = vmatprep.subr.mxu0 0.0
    %573 = vmatpush1.msra.mxu0 0.0
    %574 = vmatprep.subr.mxu0 0.0
    %575 = vmatpush1.msra.mxu0 0.0
    %576 = vmatprep.subr.mxu0 0.0
    %577 = vmatpush1.msra.mxu0 0.0
    %578 = vmatprep.subr.mxu0 0.0
    %579 = vmatpush1.msra.mxu0 0.0
    %580 = vmatprep.subr.mxu0 0.0
    %581 = vmatpush1.msra.mxu0 0.0
    %582 = vmatprep.subr.mxu0 0.0
    %583 = vmatpush1.msra.mxu0 0.0
    %584 = vmatprep.subr.mxu0 0.0
    %585 = vmatpush1.msra.mxu0 0.0
    %586 = vmatprep.subr.mxu0 0.0
    %587 = vmatpush1.msra.mxu0 0.0
    %588 = vmatprep.subr.mxu0 0.0
    %589 = vmatpush1.msra.mxu0 0.0
    %590 = vmatprep.subr.mxu0 0.0
    %591 = vmatpush1.msra.mxu0 %v211
    %592 = vmatprep.subr.mxu0 0.0
    %593 = vmatpush1.msra.mxu0 %v210
    %594 = vmatprep.subr.mxu0 0.0
    %595 = vmatpush1.msra.mxu0 %v209
    %596 = vmatprep.subr.mxu0 0.0
    %597 = vmatpush1.msra.mxu0 %v208
    %598 = vmatprep.subr.mxu0 0.0
    %599 = vmatpush2.msra.mxu0 0.0
    %600 = vmatprep.subr.mxu0 0.0
    %601 = vmatpush2.msra.mxu0 0.0
    %602 = vmatprep.subr.mxu0 0.0
    %603 = vmatpush2.msra.mxu0 0.0
    %604 = vmatprep.subr.mxu0 0.0
    %605 = vmatpush2.msra.mxu0 0.0
    %606 = vmatprep.subr.mxu0 0.0
    %607 = vmatpush2.msra.mxu0 0.0
    %608 = vmatprep.subr.mxu0 0.0
    %609 = vmatpush2.msra.mxu0 0.0
    %610 = vmatprep.subr.mxu0 0.0
    %611 = vmatpush2.msra.mxu0 0.0
    %612 = vmatprep.subr.mxu0 0.0
    %613 = vmatpush2.msra.mxu0 0.0
    %614 = vmatprep.subr.mxu0 0.0
    %615 = vmatpush2.msra.mxu0 0.0
    %616 = vmatprep.subr.mxu0 0.0
    %617 = vmatpush2.msra.mxu0 0.0
    %618 = vmatprep.subr.mxu0 0.0
    %619 = vmatpush2.msra.mxu0 0.0
    %620 = vmatprep.subr.mxu0 0.0
    %621 = vmatpush2.msra.mxu0 0.0
    %622 = vmatprep.subr.mxu0 0.0
    %623 = vmatpush2.msra.mxu0 0.0
    %624 = vmatprep.subr.mxu0 0.0
    %625 = vmatpush2.msra.mxu0 0.0
    %626 = vmatprep.subr.mxu0 0.0
    %627 = vmatpush2.msra.mxu0 0.0
    %628 = vmatprep.subr.mxu0 0.0
    %629 = vmatpush2.msra.mxu0 0.0
    %630 = vmatprep.mubr.f32.mxu0 0.0
    %631 = vmatmul.mubr.f32.gmra.mxu0 %v564
    %v632 = vpop.f32.mrf.mxu0
    %v633 = vadd.f32 %v558, %v632
    %v634 = vpop.f32.mrf.mxu0
    %635 = vdwg.mxu0
    %v636 = vadd.f32 %v633, %v366
    %v637 = vtanh.pop %v636
    %v638 = vmul.f32 %v637, 0.5
    %v639 = vadd.f32 %v638, 0.5
    %v640 = vmul.f32 %v639, %v382
    %642 = vrot.lane.b32.xlu0 %v637, 32
    %v643 = vpop.permute.xlu0 %642
    %v645 = vmul.f32 %v639, %v643
    %647 = vrot.lane.b32.xlu0 %v645, 32
    %v648 = vpop.permute.xlu0 %647
    %v650 = vadd.f32 %v640, %v648
    %v651 = vtanh.pop %v650
    %653 = vrot.lane.b32.xlu0 %v651, 32
    %v654 = vpop.permute.xlu0 %653
    %v656 = vmul.f32 %v639, %v654
    %657 = vset.pattern.permute.xlu0 2
    %658 = vperm.xlu0 %657, %v87
    %v659 = vpop.permute.xlu0 %658
    %v661 = vmul.f32 %v659, %v98
    %v662 = vadd.f32 %v661, %v106
    %663 = vmatprep.subr.mxu0 0.0
    %664 = vmatpush1.msra.mxu0 0.0
    %665 = vmatprep.subr.mxu0 0.0
    %666 = vmatpush1.msra.mxu0 0.0
    %667 = vmatprep.subr.mxu0 0.0
    %668 = vmatpush1.msra.mxu0 0.0
    %669 = vmatprep.subr.mxu0 0.0
    %670 = vmatpush1.msra.mxu0 0.0
    %671 = vmatprep.subr.mxu0 0.0
    %672 = vmatpush1.msra.mxu0 0.0
    %673 = vmatprep.subr.mxu0 0.0
    %674 = vmatpush1.msra.mxu0 0.0
    %675 = vmatprep.subr.mxu0 0.0
    %676 = vmatpush1.msra.mxu0 0.0
    %677 = vmatprep.subr.mxu0 0.0
    %678 = vmatpush1.msra.mxu0 0.0
    %679 = vmatprep.subr.mxu0 0.0
    %680 = vmatpush1.msra.mxu0 0.0
    %681 = vmatprep.subr.mxu0 0.0
    %682 = vmatpush1.msra.mxu0 0.0
    %683 = vmatprep.subr.mxu0 0.0
    %684 = vmatpush1.msra.mxu0 0.0
    %685 = vmatprep.subr.mxu0 0.0
    %686 = vmatpush1.msra.mxu0 0.0
    %687 = vmatprep.subr.mxu0 0.0
    %688 = vmatpush1.msra.mxu0 %v112
    %689 = vmatprep.subr.mxu0 0.0
    %690 = vmatpush1.msra.mxu0 %v111
    %691 = vmatprep.subr.mxu0 0.0
    %692 = vmatpush1.msra.mxu0 %v110
    %693 = vmatprep.subr.mxu0 0.0
    %694 = vmatpush1.msra.mxu0 %v109
    %695 = vmatprep.subr.mxu0 0.0
    %696 = vmatpush2.msra.mxu0 0.0
    %697 = vmatprep.subr.mxu0 0.0
    %698 = vmatpush2.msra.mxu0 0.0
    %699 = vmatprep.subr.mxu0 0.0
    %700 = vmatpush2.msra.mxu0 0.0
    %701 = vmatprep.subr.mxu0 0.0
    %702 = vmatpush2.msra.mxu0 0.0
    %703 = vmatprep.subr.mxu0 0.0
    %704 = vmatpush2.msra.mxu0 0.0
    %705 = vmatprep.subr.mxu0 0.0
    %706 = vmatpush2.msra.mxu0 0.0
    %707 = vmatprep.subr.mxu0 0.0
    %708 = vmatpush2.msra.mxu0 0.0
    %709 = vmatprep.subr.mxu0 0.0
    %710 = vmatpush2.msra.mxu0 0.0
    %711 = vmatprep.subr.mxu0 0.0
    %712 = vmatpush2.msra.mxu0 0.0
    %713 = vmatprep.subr.mxu0 0.0
    %714 = vmatpush2.msra.mxu0 0.0
    %715 = vmatprep.subr.mxu0 0.0
    %716 = vmatpush2.msra.mxu0 0.0
    %717 = vmatprep.subr.mxu0 0.0
    %718 = vmatpush2.msra.mxu0 0.0
    %719 = vmatprep.subr.mxu0 0.0
    %720 = vmatpush2.msra.mxu0 0.0
    %721 = vmatprep.subr.mxu0 0.0
    %722 = vmatpush2.msra.mxu0 0.0
    %723 = vmatprep.subr.mxu0 0.0
    %724 = vmatpush2.msra.mxu0 0.0
    %725 = vmatprep.subr.mxu0 0.0
    %726 = vmatpush2.msra.mxu0 0.0
    %727 = vmatprep.mubr.f32.mxu0 0.0
    %728 = vmatmul.mubr.f32.gmra.mxu0 %v564
    %v729 = vpop.f32.mrf.mxu0
    %v730 = vadd.f32 0.0, %v729
    %v731 = vpop.f32.mrf.mxu0
    %732 = vdwg.mxu0
    %v733 = vadd.f32 %v662, %v730
    %v734 = vtanh.pop %v733
    %v735 = vmul.f32 %v734, 0.5
    %v736 = vadd.f32 %v735, 0.5
    %v737 = vmul.f32 %v736, %v479
    %739 = vrot.lane.b32.xlu0 %v734, 32
    %v740 = vpop.permute.xlu0 %739
    %v742 = vmul.f32 %v736, %v740
    %744 = vrot.lane.b32.xlu0 %v742, 32
    %v745 = vpop.permute.xlu0 %744
    %v747 = vadd.f32 %v737, %v745
    %v748 = vtanh.pop %v747
    %750 = vrot.lane.b32.xlu0 %v748, 32
    %v751 = vpop.permute.xlu0 %750
    %v753 = vmul.f32 %v736, %v751
    %755 = vrot.lane.b32.xlu0 %v656, 64
    %v756 = vpop.permute.xlu0 %755
    %v757 = vsel %vm113, %v756, 0
    %759 = vmatprep.subr.mxu0 0.0
    %760 = vmatpush1.msra.mxu0 0.0
    %761 = vmatprep.subr.mxu0 0.0
    %762 = vmatpush1.msra.mxu0 0.0
    %763 = vmatprep.subr.mxu0 0.0
    %764 = vmatpush1.msra.mxu0 0.0
    %765 = vmatprep.subr.mxu0 0.0
    %766 = vmatpush1.msra.mxu0 0.0
    %767 = vmatprep.subr.mxu0 0.0
    %768 = vmatpush1.msra.mxu0 0.0
    %769 = vmatprep.subr.mxu0 0.0
    %770 = vmatpush1.msra.mxu0 0.0
    %771 = vmatprep.subr.mxu0 0.0
    %772 = vmatpush1.msra.mxu0 0.0
    %773 = vmatprep.subr.mxu0 0.0
    %774 = vmatpush1.msra.mxu0 0.0
    %775 = vmatprep.subr.mxu0 0.0
    %776 = vmatpush1.msra.mxu0 0.0
    %777 = vmatprep.subr.mxu0 0.0
    %778 = vmatpush1.msra.mxu0 0.0
    %779 = vmatprep.subr.mxu0 0.0
    %780 = vmatpush1.msra.mxu0 0.0
    %781 = vmatprep.subr.mxu0 0.0
    %782 = vmatpush1.msra.mxu0 0.0
    %783 = vmatprep.subr.mxu0 0.0
    %784 = vmatpush1.msra.mxu0 %v215
    %785 = vmatprep.subr.mxu0 0.0
    %786 = vmatpush1.msra.mxu0 %v214
    %787 = vmatprep.subr.mxu0 0.0
    %788 = vmatpush1.msra.mxu0 %v213
    %789 = vmatprep.subr.mxu0 0.0
    %790 = vmatpush1.msra.mxu0 %v212
    %791 = vmatprep.subr.mxu0 0.0
    %792 = vmatpush2.msra.mxu0 0.0
    %793 = vmatprep.subr.mxu0 0.0
    %794 = vmatpush2.msra.mxu0 0.0
    %795 = vmatprep.subr.mxu0 0.0
    %796 = vmatpush2.msra.mxu0 0.0
    %797 = vmatprep.subr.mxu0 0.0
    %798 = vmatpush2.msra.mxu0 0.0
    %799 = vmatprep.subr.mxu0 0.0
    %800 = vmatpush2.msra.mxu0 0.0
    %801 = vmatprep.subr.mxu0 0.0
    %802 = vmatpush2.msra.mxu0 0.0
    %803 = vmatprep.subr.mxu0 0.0
    %804 = vmatpush2.msra.mxu0 0.0
    %805 = vmatprep.subr.mxu0 0.0
    %806 = vmatpush2.msra.mxu0 0.0
    %807 = vmatprep.subr.mxu0 0.0
    %808 = vmatpush2.msra.mxu0 0.0
    %809 = vmatprep.subr.mxu0 0.0
    %810 = vmatpush2.msra.mxu0 0.0
    %811 = vmatprep.subr.mxu0 0.0
    %812 = vmatpush2.msra.mxu0 0.0
    %813 = vmatprep.subr.mxu0 0.0
    %814 = vmatpush2.msra.mxu0 0.0
    %815 = vmatprep.subr.mxu0 0.0
    %816 = vmatpush2.msra.mxu0 0.0
    %817 = vmatprep.subr.mxu0 0.0
    %818 = vmatpush2.msra.mxu0 0.0
    %819 = vmatprep.subr.mxu0 0.0
    %820 = vmatpush2.msra.mxu0 0.0
    %821 = vmatprep.subr.mxu0 0.0
    %822 = vmatpush2.msra.mxu0 0.0
    %823 = vmatprep.mubr.f32.mxu0 0.0
    %824 = vmatmul.mubr.f32.gmra.mxu0 %v757
    %v825 = vpop.f32.mrf.mxu0
    %v826 = vadd.f32 0.0, %v825
    %v827 = vpop.f32.mrf.mxu0
    %828 = vdwg.mxu0
    %830 = vrot.lane.b32.xlu0 %v753, 64
    %v831 = vpop.permute.xlu0 %830
    %v832 = vsel %vm113, %v831, 0
    %834 = vmatprep.subr.mxu0 0.0
    %835 = vmatpush1.msra.mxu0 0.0
    %836 = vmatprep.subr.mxu0 0.0
    %837 = vmatpush1.msra.mxu0 0.0
    %838 = vmatprep.subr.mxu0 0.0
    %839 = vmatpush1.msra.mxu0 0.0
    %840 = vmatprep.subr.mxu0 0.0
    %841 = vmatpush1.msra.mxu0 0.0
    %842 = vmatprep.subr.mxu0 0.0
    %843 = vmatpush1.msra.mxu0 0.0
    %844 = vmatprep.subr.mxu0 0.0
    %845 = vmatpush1.msra.mxu0 0.0
    %846 = vmatprep.subr.mxu0 0.0
    %847 = vmatpush1.msra.mxu0 0.0
    %848 = vmatprep.subr.mxu0 0.0
    %849 = vmatpush1.msra.mxu0 0.0
    %850 = vmatprep.subr.mxu0 0.0
    %851 = vmatpush1.msra.mxu0 0.0
    %852 = vmatprep.subr.mxu0 0.0
    %853 = vmatpush1.msra.mxu0 0.0
    %854 = vmatprep.subr.mxu0 0.0
    %855 = vmatpush1.msra.mxu0 0.0
    %856 = vmatprep.subr.mxu0 0.0
    %857 = vmatpush1.msra.mxu0 0.0
    %858 = vmatprep.subr.mxu0 0.0
    %859 = vmatpush1.msra.mxu0 %v211
    %860 = vmatprep.subr.mxu0 0.0
    %861 = vmatpush1.msra.mxu0 %v210
    %862 = vmatprep.subr.mxu0 0.0
    %863 = vmatpush1.msra.mxu0 %v209
    %864 = vmatprep.subr.mxu0 0.0
    %865 = vmatpush1.msra.mxu0 %v208
    %866 = vmatprep.subr.mxu0 0.0
    %867 = vmatpush2.msra.mxu0 0.0
    %868 = vmatprep.subr.mxu0 0.0
    %869 = vmatpush2.msra.mxu0 0.0
    %870 = vmatprep.subr.mxu0 0.0
    %871 = vmatpush2.msra.mxu0 0.0
    %872 = vmatprep.subr.mxu0 0.0
    %873 = vmatpush2.msra.mxu0 0.0
    %874 = vmatprep.subr.mxu0 0.0
    %875 = vmatpush2.msra.mxu0 0.0
    %876 = vmatprep.subr.mxu0 0.0
    %877 = vmatpush2.msra.mxu0 0.0
    %878 = vmatprep.subr.mxu0 0.0
    %879 = vmatpush2.msra.mxu0 0.0
    %880 = vmatprep.subr.mxu0 0.0
    %881 = vmatpush2.msra.mxu0 0.0
    %882 = vmatprep.subr.mxu0 0.0
    %883 = vmatpush2.msra.mxu0 0.0
    %884 = vmatprep.subr.mxu0 0.0
    %885 = vmatpush2.msra.mxu0 0.0
    %886 = vmatprep.subr.mxu0 0.0
    %887 = vmatpush2.msra.mxu0 0.0
    %888 = vmatprep.subr.mxu0 0.0
    %889 = vmatpush2.msra.mxu0 0.0
    %890 = vmatprep.subr.mxu0 0.0
    %891 = vmatpush2.msra.mxu0 0.0
    %892 = vmatprep.subr.mxu0 0.0
    %893 = vmatpush2.msra.mxu0 0.0
    %894 = vmatprep.subr.mxu0 0.0
    %895 = vmatpush2.msra.mxu0 0.0
    %896 = vmatprep.subr.mxu0 0.0
    %897 = vmatpush2.msra.mxu0 0.0
    %898 = vmatprep.mubr.f32.mxu0 0.0
    %899 = vmatmul.mubr.f32.gmra.mxu0 %v832
    %v900 = vpop.f32.mrf.mxu0
    %v901 = vadd.f32 %v826, %v900
    %v902 = vpop.f32.mrf.mxu0
    %903 = vdwg.mxu0
    %v904 = vadd.f32 %v901, %v366
    %v905 = vtanh.pop %v904
    %v906 = vmul.f32 %v905, 0.5
    %v907 = vadd.f32 %v906, 0.5
    %v908 = vmul.f32 %v907, %v650
    %910 = vrot.lane.b32.xlu0 %v905, 32
    %v911 = vpop.permute.xlu0 %910
    %v913 = vmul.f32 %v907, %v911
    %915 = vrot.lane.b32.xlu0 %v913, 32
    %v916 = vpop.permute.xlu0 %915
    %v918 = vadd.f32 %v908, %v916
    %v919 = vtanh.pop %v918
    %921 = vrot.lane.b32.xlu0 %v919, 32
    %v922 = vpop.permute.xlu0 %921
    %v924 = vmul.f32 %v907, %v922
    %925 = vset.pattern.permute.xlu0 3
    %926 = vperm.xlu0 %925, %v87
    %v927 = vpop.permute.xlu0 %926
    %v929 = vmul.f32 %v927, %v98
    %v930 = vadd.f32 %v929, %v106
    %931 = vmatprep.subr.mxu0 0.0
    %932 = vmatpush1.msra.mxu0 0.0
    %933 = vmatprep.subr.mxu0 0.0
    %934 = vmatpush1.msra.mxu0 0.0
    %935 = vmatprep.subr.mxu0 0.0
    %936 = vmatpush1.msra.mxu0 0.0
    %937 = vmatprep.subr.mxu0 0.0
    %938 = vmatpush1.msra.mxu0 0.0
    %939 = vmatprep.subr.mxu0 0.0
    %940 = vmatpush1.msra.mxu0 0.0
    %941 = vmatprep.subr.mxu0 0.0
    %942 = vmatpush1.msra.mxu0 0.0
    %943 = vmatprep.subr.mxu0 0.0
    %944 = vmatpush1.msra.mxu0 0.0
    %945 = vmatprep.subr.mxu0 0.0
    %946 = vmatpush1.msra.mxu0 0.0
    %947 = vmatprep.subr.mxu0 0.0
    %948 = vmatpush1.msra.mxu0 0.0
    %949 = vmatprep.subr.mxu0 0.0
    %950 = vmatpush1.msra.mxu0 0.0
    %951 = vmatprep.subr.mxu0 0.0
    %952 = vmatpush1.msra.mxu0 0.0
    %953 = vmatprep.subr.mxu0 0.0
    %954 = vmatpush1.msra.mxu0 0.0
    %955 = vmatprep.subr.mxu0 0.0
    %956 = vmatpush1.msra.mxu0 %v112
    %957 = vmatprep.subr.mxu0 0.0
    %958 = vmatpush1.msra.mxu0 %v111
    %959 = vmatprep.subr.mxu0 0.0
    %960 = vmatpush1.msra.mxu0 %v110
    %961 = vmatprep.subr.mxu0 0.0
    %962 = vmatpush1.msra.mxu0 %v109
    %963 = vmatprep.subr.mxu0 0.0
    %964 = vmatpush2.msra.mxu0 0.0
    %965 = vmatprep.subr.mxu0 0.0
    %966 = vmatpush2.msra.mxu0 0.0
    %967 = vmatprep.subr.mxu0 0.0
    %968 = vmatpush2.msra.mxu0 0.0
    %969 = vmatprep.subr.mxu0 0.0
    %970 = vmatpush2.msra.mxu0 0.0
    %971 = vmatprep.subr.mxu0 0.0
    %972 = vmatpush2.msra.mxu0 0.0
    %973 = vmatprep.subr.mxu0 0.0
    %974 = vmatpush2.msra.mxu0 0.0
    %975 = vmatprep.subr.mxu0 0.0
    %976 = vmatpush2.msra.mxu0 0.0
    %977 = vmatprep.subr.mxu0 0.0
    %978 = vmatpush2.msra.mxu0 0.0
    %979 = vmatprep.subr.mxu0 0.0
    %980 = vmatpush2.msra.mxu0 0.0
    %981 = vmatprep.subr.mxu0 0.0
    %982 = vmatpush2.msra.mxu0 0.0
    %983 = vmatprep.subr.mxu0 0.0
    %984 = vmatpush2.msra.mxu0 0.0
    %985 = vmatprep.subr.mxu0 0.0
    %986 = vmatpush2.msra.mxu0 0.0
    %987 = vmatprep.subr.mxu0 0.0
    %988 = vmatpush2.msra.mxu0 0.0
    %989 = vmatprep.subr.mxu0 0.0
    %990 = vmatpush2.msra.mxu0 0.0
    %991 = vmatprep.subr.mxu0 0.0
    %992 = vmatpush2.msra.mxu0 0.0
    %993 = vmatprep.subr.mxu0 0.0
    %994 = vmatpush2.msra.mxu0 0.0
    %995 = vmatprep.mubr.f32.mxu0 0.0
    %996 = vmatmul.mubr.f32.gmra.mxu0 %v832
    %v997 = vpop.f32.mrf.mxu0
    %v998 = vadd.f32 0.0, %v997
    %v999 = vpop.f32.mrf.mxu0
    %1000 = vdwg.mxu0
    %v1001 = vadd.f32 %v930, %v998
    %v1002 = vtanh.pop %v1001
    %v1003 = vmul.f32 %v1002, 0.5
    %v1004 = vadd.f32 %v1003, 0.5
    %v1005 = vmul.f32 %v1004, %v747
    %1007 = vrot.lane.b32.xlu0 %v1002, 32
    %v1008 = vpop.permute.xlu0 %1007
    %v1010 = vmul.f32 %v1004, %v1008
    %1012 = vrot.lane.b32.xlu0 %v1010, 32
    %v1013 = vpop.permute.xlu0 %1012
    %v1015 = vadd.f32 %v1005, %v1013
    %v1016 = vtanh.pop %v1015
    %1018 = vrot.lane.b32.xlu0 %v1016, 32
    %v1019 = vpop.permute.xlu0 %1018
    %v1021 = vmul.f32 %v1004, %v1019
    %1023 = vrot.lane.b32.xlu0 %v924, 64
    %v1024 = vpop.permute.xlu0 %1023
    %v1025 = vsel %vm113, %v1024, 0
    %1027 = vmatprep.subr.mxu0 0.0
    %1028 = vmatpush1.msra.mxu0 0.0
    %1029 = vmatprep.subr.mxu0 0.0
    %1030 = vmatpush1.msra.mxu0 0.0
    %1031 = vmatprep.subr.mxu0 0.0
    %1032 = vmatpush1.msra.mxu0 0.0
    %1033 = vmatprep.subr.mxu0 0.0
    %1034 = vmatpush1.msra.mxu0 0.0
    %1035 = vmatprep.subr.mxu0 0.0
    %1036 = vmatpush1.msra.mxu0 0.0
    %1037 = vmatprep.subr.mxu0 0.0
    %1038 = vmatpush1.msra.mxu0 0.0
    %1039 = vmatprep.subr.mxu0 0.0
    %1040 = vmatpush1.msra.mxu0 0.0
    %1041 = vmatprep.subr.mxu0 0.0
    %1042 = vmatpush1.msra.mxu0 0.0
    %1043 = vmatprep.subr.mxu0 0.0
    %1044 = vmatpush1.msra.mxu0 0.0
    %1045 = vmatprep.subr.mxu0 0.0
    %1046 = vmatpush1.msra.mxu0 0.0
    %1047 = vmatprep.subr.mxu0 0.0
    %1048 = vmatpush1.msra.mxu0 0.0
    %1049 = vmatprep.subr.mxu0 0.0
    %1050 = vmatpush1.msra.mxu0 0.0
    %1051 = vmatprep.subr.mxu0 0.0
    %1052 = vmatpush1.msra.mxu0 %v215
    %1053 = vmatprep.subr.mxu0 0.0
    %1054 = vmatpush1.msra.mxu0 %v214
    %1055 = vmatprep.subr.mxu0 0.0
    %1056 = vmatpush1.msra.mxu0 %v213
    %1057 = vmatprep.subr.mxu0 0.0
    %1058 = vmatpush1.msra.mxu0 %v212
    %1059 = vmatprep.subr.mxu0 0.0
    %1060 = vmatpush2.msra.mxu0 0.0
    %1061 = vmatprep.subr.mxu0 0.0
    %1062 = vmatpush2.msra.mxu0 0.0
    %1063 = vmatprep.subr.mxu0 0.0
    %1064 = vmatpush2.msra.mxu0 0.0
    %1065 = vmatprep.subr.mxu0 0.0
    %1066 = vmatpush2.msra.mxu0 0.0
    %1067 = vmatprep.subr.mxu0 0.0
    %1068 = vmatpush2.msra.mxu0 0.0
    %1069 = vmatprep.subr.mxu0 0.0
    %1070 = vmatpush2.msra.mxu0 0.0
    %1071 = vmatprep.subr.mxu0 0.0
    %1072 = vmatpush2.msra.mxu0 0.0
    %1073 = vmatprep.subr.mxu0 0.0
    %1074 = vmatpush2.msra.mxu0 0.0
    %1075 = vmatprep.subr.mxu0 0.0
    %1076 = vmatpush2.msra.mxu0 0.0
    %1077 = vmatprep.subr.mxu0 0.0
    %1078 = vmatpush2.msra.mxu0 0.0
    %1079 = vmatprep.subr.mxu0 0.0
    %1080 = vmatpush2.msra.mxu0 0.0
    %1081 = vmatprep.subr.mxu0 0.0
    %1082 = vmatpush2.msra.mxu0 0.0
    %1083 = vmatprep.subr.mxu0 0.0
    %1084 = vmatpush2.msra.mxu0 0.0
    %1085 = vmatprep.subr.mxu0 0.0
    %1086 = vmatpush2.msra.mxu0 0.0
    %1087 = vmatprep.subr.mxu0 0.0
    %1088 = vmatpush2.msra.mxu0 0.0
    %1089 = vmatprep.subr.mxu0 0.0
    %1090 = vmatpush2.msra.mxu0 0.0
    %1091 = vmatprep.mubr.f32.mxu0 0.0
    %1092 = vmatmul.mubr.f32.gmra.mxu0 %v1025
    %v1093 = vpop.f32.mrf.mxu0
    %v1094 = vadd.f32 0.0, %v1093
    %v1095 = vpop.f32.mrf.mxu0
    %1096 = vdwg.mxu0
    %1098 = vrot.lane.b32.xlu0 %v1021, 64
    %v1099 = vpop.permute.xlu0 %1098
    %v1100 = vsel %vm113, %v1099, 0
    %1102 = vmatprep.subr.mxu0 0.0
    %1103 = vmatpush1.msra.mxu0 0.0
    %1104 = vmatprep.subr.mxu0 0.0
    %1105 = vmatpush1.msra.mxu0 0.0
    %1106 = vmatprep.subr.mxu0 0.0
    %1107 = vmatpush1.msra.mxu0 0.0
    %1108 = vmatprep.subr.mxu0 0.0
    %1109 = vmatpush1.msra.mxu0 0.0
    %1110 = vmatprep.subr.mxu0 0.0
    %1111 = vmatpush1.msra.mxu0 0.0
    %1112 = vmatprep.subr.mxu0 0.0
    %1113 = vmatpush1.msra.mxu0 0.0
    %1114 = vmatprep.subr.mxu0 0.0
    %1115 = vmatpush1.msra.mxu0 0.0
    %1116 = vmatprep.subr.mxu0 0.0
    %1117 = vmatpush1.msra.mxu0 0.0
    %1118 = vmatprep.subr.mxu0 0.0
    %1119 = vmatpush1.msra.mxu0 0.0
    %1120 = vmatprep.subr.mxu0 0.0
    %1121 = vmatpush1.msra.mxu0 0.0
    %1122 = vmatprep.subr.mxu0 0.0
    %1123 = vmatpush1.msra.mxu0 0.0
    %1124 = vmatprep.subr.mxu0 0.0
    %1125 = vmatpush1.msra.mxu0 0.0
    %1126 = vmatprep.subr.mxu0 0.0
    %1127 = vmatpush1.msra.mxu0 %v211
    %1128 = vmatprep.subr.mxu0 0.0
    %1129 = vmatpush1.msra.mxu0 %v210
    %1130 = vmatprep.subr.mxu0 0.0
    %1131 = vmatpush1.msra.mxu0 %v209
    %1132 = vmatprep.subr.mxu0 0.0
    %1133 = vmatpush1.msra.mxu0 %v208
    %1134 = vmatprep.subr.mxu0 0.0
    %1135 = vmatpush2.msra.mxu0 0.0
    %1136 = vmatprep.subr.mxu0 0.0
    %1137 = vmatpush2.msra.mxu0 0.0
    %1138 = vmatprep.subr.mxu0 0.0
    %1139 = vmatpush2.msra.mxu0 0.0
    %1140 = vmatprep.subr.mxu0 0.0
    %1141 = vmatpush2.msra.mxu0 0.0
    %1142 = vmatprep.subr.mxu0 0.0
    %1143 = vmatpush2.msra.mxu0 0.0
    %1144 = vmatprep.subr.mxu0 0.0
    %1145 = vmatpush2.msra.mxu0 0.0
    %1146 = vmatprep.subr.mxu0 0.0
    %1147 = vmatpush2.msra.mxu0 0.0
    %1148 = vmatprep.subr.mxu0 0.0
    %1149 = vmatpush2.msra.mxu0 0.0
    %1150 = vmatprep.subr.mxu0 0.0
    %1151 = vmatpush2.msra.mxu0 0.0
    %1152 = vmatprep.subr.mxu0 0.0
    %1153 = vmatpush2.msra.mxu0 0.0
    %1154 = vmatprep.subr.mxu0 0.0
    %1155 = vmatpush2.msra.mxu0 0.0
    %1156 = vmatprep.subr.mxu0 0.0
    %1157 = vmatpush2.msra.mxu0 0.0
    %1158 = vmatprep.subr.mxu0 0.0
    %1159 = vmatpush2.msra.mxu0 0.0
    %1160 = vmatprep.subr.mxu0 0.0
    %1161 = vmatpush2.msra.mxu0 0.0
    %1162 = vmatprep.subr.mxu0 0.0
    %1163 = vmatpush2.msra.mxu0 0.0
    %1164 = vmatprep.subr.mxu0 0.0
    %1165 = vmatpush2.msra.mxu0 0.0
    %1166 = vmatprep.mubr.f32.mxu0 0.0
    %1167 = vmatmul.mubr.f32.gmra.mxu0 %v1100
    %v1168 = vpop.f32.mrf.mxu0
    %v1169 = vadd.f32 %v1094, %v1168
    %v1170 = vpop.f32.mrf.mxu0
    %1171 = vdwg.mxu0
    %v1172 = vadd.f32 %v1169, %v366
    %v1173 = vtanh.pop %v1172
    %v1174 = vmul.f32 %v1173, 0.5
    %v1175 = vadd.f32 %v1174, 0.5
    %v1176 = vmul.f32 %v1175, %v918
    %1178 = vrot.lane.b32.xlu0 %v1173, 32
    %v1179 = vpop.permute.xlu0 %1178
    %v1181 = vmul.f32 %v1175, %v1179
    %1183 = vrot.lane.b32.xlu0 %v1181, 32
    %v1184 = vpop.permute.xlu0 %1183
    %v1186 = vadd.f32 %v1176, %v1184
    %v1187 = vtanh.pop %v1186
    %1189 = vrot.lane.b32.xlu0 %v1187, 32
    %v1190 = vpop.permute.xlu0 %1189
    %v1192 = vmul.f32 %v1175, %v1190
    %1193 = vset.pattern.permute.xlu0 4
    %1194 = vperm.xlu0 %1193, %v87
    %v1195 = vpop.permute.xlu0 %1194
    %v1197 = vmul.f32 %v1195, %v98
    %v1198 = vadd.f32 %v1197, %v106
    %1199 = vmatprep.subr.mxu0 0.0
    %1200 = vmatpush1.msra.mxu0 0.0
    %1201 = vmatprep.subr.mxu0 0.0
    %1202 = vmatpush1.msra.mxu0 0.0
    %1203 = vmatprep.subr.mxu0 0.0
    %1204 = vmatpush1.msra.mxu0 0.0
    %1205 = vmatprep.subr.mxu0 0.0
    %1206 = vmatpush1.msra.mxu0 0.0
    %1207 = vmatprep.subr.mxu0 0.0
    %1208 = vmatpush1.msra.mxu0 0.0
    %1209 = vmatprep.subr.mxu0 0.0
    %1210 = vmatpush1.msra.mxu0 0.0
    %1211 = vmatprep.subr.mxu0 0.0
    %1212 = vmatpush1.msra.mxu0 0.0
    %1213 = vmatprep.subr.mxu0 0.0
    %1214 = vmatpush1.msra.mxu0 0.0
    %1215 = vmatprep.subr.mxu0 0.0
    %1216 = vmatpush1.msra.mxu0 0.0
    %1217 = vmatprep.subr.mxu0 0.0
    %1218 = vmatpush1.msra.mxu0 0.0
    %1219 = vmatprep.subr.mxu0 0.0
    %1220 = vmatpush1.msra.mxu0 0.0
    %1221 = vmatprep.subr.mxu0 0.0
    %1222 = vmatpush1.msra.mxu0 0.0
    %1223 = vmatprep.subr.mxu0 0.0
    %1224 = vmatpush1.msra.mxu0 %v112
    %1225 = vmatprep.subr.mxu0 0.0
    %1226 = vmatpush1.msra.mxu0 %v111
    %1227 = vmatprep.subr.mxu0 0.0
    %1228 = vmatpush1.msra.mxu0 %v110
    %1229 = vmatprep.subr.mxu0 0.0
    %1230 = vmatpush1.msra.mxu0 %v109
    %1231 = vmatprep.subr.mxu0 0.0
    %1232 = vmatpush2.msra.mxu0 0.0
    %1233 = vmatprep.subr.mxu0 0.0
    %1234 = vmatpush2.msra.mxu0 0.0
    %1235 = vmatprep.subr.mxu0 0.0
    %1236 = vmatpush2.msra.mxu0 0.0
    %1237 = vmatprep.subr.mxu0 0.0
    %1238 = vmatpush2.msra.mxu0 0.0
    %1239 = vmatprep.subr.mxu0 0.0
    %1240 = vmatpush2.msra.mxu0 0.0
    %1241 = vmatprep.subr.mxu0 0.0
    %1242 = vmatpush2.msra.mxu0 0.0
    %1243 = vmatprep.subr.mxu0 0.0
    %1244 = vmatpush2.msra.mxu0 0.0
    %1245 = vmatprep.subr.mxu0 0.0
    %1246 = vmatpush2.msra.mxu0 0.0
    %1247 = vmatprep.subr.mxu0 0.0
    %1248 = vmatpush2.msra.mxu0 0.0
    %1249 = vmatprep.subr.mxu0 0.0
    %1250 = vmatpush2.msra.mxu0 0.0
    %1251 = vmatprep.subr.mxu0 0.0
    %1252 = vmatpush2.msra.mxu0 0.0
    %1253 = vmatprep.subr.mxu0 0.0
    %1254 = vmatpush2.msra.mxu0 0.0
    %1255 = vmatprep.subr.mxu0 0.0
    %1256 = vmatpush2.msra.mxu0 0.0
    %1257 = vmatprep.subr.mxu0 0.0
    %1258 = vmatpush2.msra.mxu0 0.0
    %1259 = vmatprep.subr.mxu0 0.0
    %1260 = vmatpush2.msra.mxu0 0.0
    %1261 = vmatprep.subr.mxu0 0.0
    %1262 = vmatpush2.msra.mxu0 0.0
    %1263 = vmatprep.mubr.f32.mxu0 0.0
    %1264 = vmatmul.mubr.f32.gmra.mxu0 %v1100
    %v1265 = vpop.f32.mrf.mxu0
    %v1266 = vadd.f32 0.0, %v1265
    %v1267 = vpop.f32.mrf.mxu0
    %1268 = vdwg.mxu0
    %v1269 = vadd.f32 %v1198, %v1266
    %v1270 = vtanh.pop %v1269
    %v1271 = vmul.f32 %v1270, 0.5
    %v1272 = vadd.f32 %v1271, 0.5
    %v1273 = vmul.f32 %v1272, %v1015
    %1275 = vrot.lane.b32.xlu0 %v1270, 32
    %v1276 = vpop.permute.xlu0 %1275
    %v1278 = vmul.f32 %v1272, %v1276
    %1280 = vrot.lane.b32.xlu0 %v1278, 32
    %v1281 = vpop.permute.xlu0 %1280
    %v1283 = vadd.f32 %v1273, %v1281
    %v1284 = vtanh.pop %v1283
    %1286 = vrot.lane.b32.xlu0 %v1284, 32
    %v1287 = vpop.permute.xlu0 %1286
    %v1289 = vmul.f32 %v1272, %v1287
    %1291 = vrot.lane.b32.xlu0 %v1192, 64
    %v1292 = vpop.permute.xlu0 %1291
    %v1293 = vsel %vm113, %v1292, 0
    %1295 = vmatprep.subr.mxu0 0.0
    %1296 = vmatpush1.msra.mxu0 0.0
    %1297 = vmatprep.subr.mxu0 0.0
    %1298 = vmatpush1.msra.mxu0 0.0
    %1299 = vmatprep.subr.mxu0 0.0
    %1300 = vmatpush1.msra.mxu0 0.0
    %1301 = vmatprep.subr.mxu0 0.0
    %1302 = vmatpush1.msra.mxu0 0.0
    %1303 = vmatprep.subr.mxu0 0.0
    %1304 = vmatpush1.msra.mxu0 0.0
    %1305 = vmatprep.subr.mxu0 0.0
    %1306 = vmatpush1.msra.mxu0 0.0
    %1307 = vmatprep.subr.mxu0 0.0
    %1308 = vmatpush1.msra.mxu0 0.0
    %1309 = vmatprep.subr.mxu0 0.0
    %1310 = vmatpush1.msra.mxu0 0.0
    %1311 = vmatprep.subr.mxu0 0.0
    %1312 = vmatpush1.msra.mxu0 0.0
    %1313 = vmatprep.subr.mxu0 0.0
    %1314 = vmatpush1.msra.mxu0 0.0
    %1315 = vmatprep.subr.mxu0 0.0
    %1316 = vmatpush1.msra.mxu0 0.0
    %1317 = vmatprep.subr.mxu0 0.0
    %1318 = vmatpush1.msra.mxu0 0.0
    %1319 = vmatprep.subr.mxu0 0.0
    %1320 = vmatpush1.msra.mxu0 %v215
    %1321 = vmatprep.subr.mxu0 0.0
    %1322 = vmatpush1.msra.mxu0 %v214
    %1323 = vmatprep.subr.mxu0 0.0
    %1324 = vmatpush1.msra.mxu0 %v213
    %1325 = vmatprep.subr.mxu0 0.0
    %1326 = vmatpush1.msra.mxu0 %v212
    %1327 = vmatprep.subr.mxu0 0.0
    %1328 = vmatpush2.msra.mxu0 0.0
    %1329 = vmatprep.subr.mxu0 0.0
    %1330 = vmatpush2.msra.mxu0 0.0
    %1331 = vmatprep.subr.mxu0 0.0
    %1332 = vmatpush2.msra.mxu0 0.0
    %1333 = vmatprep.subr.mxu0 0.0
    %1334 = vmatpush2.msra.mxu0 0.0
    %1335 = vmatprep.subr.mxu0 0.0
    %1336 = vmatpush2.msra.mxu0 0.0
    %1337 = vmatprep.subr.mxu0 0.0
    %1338 = vmatpush2.msra.mxu0 0.0
    %1339 = vmatprep.subr.mxu0 0.0
    %1340 = vmatpush2.msra.mxu0 0.0
    %1341 = vmatprep.subr.mxu0 0.0
    %1342 = vmatpush2.msra.mxu0 0.0
    %1343 = vmatprep.subr.mxu0 0.0
    %1344 = vmatpush2.msra.mxu0 0.0
    %1345 = vmatprep.subr.mxu0 0.0
    %1346 = vmatpush2.msra.mxu0 0.0
    %1347 = vmatprep.subr.mxu0 0.0
    %1348 = vmatpush2.msra.mxu0 0.0
    %1349 = vmatprep.subr.mxu0 0.0
    %1350 = vmatpush2.msra.mxu0 0.0
    %1351 = vmatprep.subr.mxu0 0.0
    %1352 = vmatpush2.msra.mxu0 0.0
    %1353 = vmatprep.subr.mxu0 0.0
    %1354 = vmatpush2.msra.mxu0 0.0
    %1355 = vmatprep.subr.mxu0 0.0
    %1356 = vmatpush2.msra.mxu0 0.0
    %1357 = vmatprep.subr.mxu0 0.0
    %1358 = vmatpush2.msra.mxu0 0.0
    %1359 = vmatprep.mubr.f32.mxu0 0.0
    %1360 = vmatmul.mubr.f32.gmra.mxu0 %v1293
    %v1361 = vpop.f32.mrf.mxu0
    %v1362 = vadd.f32 0.0, %v1361
    %v1363 = vpop.f32.mrf.mxu0
    %1364 = vdwg.mxu0
    %1366 = vrot.lane.b32.xlu0 %v1289, 64
    %v1367 = vpop.permute.xlu0 %1366
    %v1368 = vsel %vm113, %v1367, 0
    %1370 = vmatprep.subr.mxu0 0.0
    %1371 = vmatpush1.msra.mxu0 0.0
    %1372 = vmatprep.subr.mxu0 0.0
    %1373 = vmatpush1.msra.mxu0 0.0
    %1374 = vmatprep.subr.mxu0 0.0
    %1375 = vmatpush1.msra.mxu0 0.0
    %1376 = vmatprep.subr.mxu0 0.0
    %1377 = vmatpush1.msra.mxu0 0.0
    %1378 = vmatprep.subr.mxu0 0.0
    %1379 = vmatpush1.msra.mxu0 0.0
    %1380 = vmatprep.subr.mxu0 0.0
    %1381 = vmatpush1.msra.mxu0 0.0
    %1382 = vmatprep.subr.mxu0 0.0
    %1383 = vmatpush1.msra.mxu0 0.0
    %1384 = vmatprep.subr.mxu0 0.0
    %1385 = vmatpush1.msra.mxu0 0.0
    %1386 = vmatprep.subr.mxu0 0.0
    %1387 = vmatpush1.msra.mxu0 0.0
    %1388 = vmatprep.subr.mxu0 0.0
    %1389 = vmatpush1.msra.mxu0 0.0
    %1390 = vmatprep.subr.mxu0 0.0
    %1391 = vmatpush1.msra.mxu0 0.0
    %1392 = vmatprep.subr.mxu0 0.0
    %1393 = vmatpush1.msra.mxu0 0.0
    %1394 = vmatprep.subr.mxu0 0.0
    %1395 = vmatpush1.msra.mxu0 %v211
    %1396 = vmatprep.subr.mxu0 0.0
    %1397 = vmatpush1.msra.mxu0 %v210
    %1398 = vmatprep.subr.mxu0 0.0
    %1399 = vmatpush1.msra.mxu0 %v209
    %1400 = vmatprep.subr.mxu0 0.0
    %1401 = vmatpush1.msra.mxu0 %v208
    %1402 = vmatprep.subr.mxu0 0.0
    %1403 = vmatpush2.msra.mxu0 0.0
    %1404 = vmatprep.subr.mxu0 0.0
    %1405 = vmatpush2.msra.mxu0 0.0
    %1406 = vmatprep.subr.mxu0 0.0
    %1407 = vmatpush2.msra.mxu0 0.0
    %1408 = vmatprep.subr.mxu0 0.0
    %1409 = vmatpush2.msra.mxu0 0.0
    %1410 = vmatprep.subr.mxu0 0.0
    %1411 = vmatpush2.msra.mxu0 0.0
    %1412 = vmatprep.subr.mxu0 0.0
    %1413 = vmatpush2.msra.mxu0 0.0
    %1414 = vmatprep.subr.mxu0 0.0
    %1415 = vmatpush2.msra.mxu0 0.0
    %1416 = vmatprep.subr.mxu0 0.0
    %1417 = vmatpush2.msra.mxu0 0.0
    %1418 = vmatprep.subr.mxu0 0.0
    %1419 = vmatpush2.msra.mxu0 0.0
    %1420 = vmatprep.subr.mxu0 0.0
    %1421 = vmatpush2.msra.mxu0 0.0
    %1422 = vmatprep.subr.mxu0 0.0
    %1423 = vmatpush2.msra.mxu0 0.0
    %1424 = vmatprep.subr.mxu0 0.0
    %1425 = vmatpush2.msra.mxu0 0.0
    %1426 = vmatprep.subr.mxu0 0.0
    %1427 = vmatpush2.msra.mxu0 0.0
    %1428 = vmatprep.subr.mxu0 0.0
    %1429 = vmatpush2.msra.mxu0 0.0
    %1430 = vmatprep.subr.mxu0 0.0
    %1431 = vmatpush2.msra.mxu0 0.0
    %1432 = vmatprep.subr.mxu0 0.0
    %1433 = vmatpush2.msra.mxu0 0.0
    %1434 = vmatprep.mubr.f32.mxu0 0.0
    %1435 = vmatmul.mubr.f32.gmra.mxu0 %v1368
    %v1436 = vpop.f32.mrf.mxu0
    %v1437 = vadd.f32 %v1362, %v1436
    %v1438 = vpop.f32.mrf.mxu0
    %1439 = vdwg.mxu0
    %v1440 = vadd.f32 %v1437, %v366
    %v1441 = vtanh.pop %v1440
    %v1442 = vmul.f32 %v1441, 0.5
    %v1443 = vadd.f32 %v1442, 0.5
    %v1444 = vmul.f32 %v1443, %v1186
    %1446 = vrot.lane.b32.xlu0 %v1441, 32
    %v1447 = vpop.permute.xlu0 %1446
    %v1449 = vmul.f32 %v1443, %v1447
    %1451 = vrot.lane.b32.xlu0 %v1449, 32
    %v1452 = vpop.permute.xlu0 %1451
    %v1454 = vadd.f32 %v1444, %v1452
    %v1455 = vtanh.pop %v1454
    %1457 = vrot.lane.b32.xlu0 %v1455, 32
    %v1458 = vpop.permute.xlu0 %1457
    %v1460 = vmul.f32 %v1443, %v1458
    %1461 = vset.pattern.permute.xlu0 5
    %1462 = vperm.xlu0 %1461, %v87
    %v1463 = vpop.permute.xlu0 %1462
    %v1465 = vmul.f32 %v1463, %v98
    %v1466 = vadd.f32 %v1465, %v106
    %1467 = vmatprep.subr.mxu0 0.0
    %1468 = vmatpush1.msra.mxu0 0.0
    %1469 = vmatprep.subr.mxu0 0.0
    %1470 = vmatpush1.msra.mxu0 0.0
    %1471 = vmatprep.subr.mxu0 0.0
    %1472 = vmatpush1.msra.mxu0 0.0
    %1473 = vmatprep.subr.mxu0 0.0
    %1474 = vmatpush1.msra.mxu0 0.0
    %1475 = vmatprep.subr.mxu0 0.0
    %1476 = vmatpush1.msra.mxu0 0.0
    %1477 = vmatprep.subr.mxu0 0.0
    %1478 = vmatpush1.msra.mxu0 0.0
    %1479 = vmatprep.subr.mxu0 0.0
    %1480 = vmatpush1.msra.mxu0 0.0
    %1481 = vmatprep.subr.mxu0 0.0
    %1482 = vmatpush1.msra.mxu0 0.0
    %1483 = vmatprep.subr.mxu0 0.0
    %1484 = vmatpush1.msra.mxu0 0.0
    %1485 = vmatprep.subr.mxu0 0.0
    %1486 = vmatpush1.msra.mxu0 0.0
    %1487 = vmatprep.subr.mxu0 0.0
    %1488 = vmatpush1.msra.mxu0 0.0
    %1489 = vmatprep.subr.mxu0 0.0
    %1490 = vmatpush1.msra.mxu0 0.0
    %1491 = vmatprep.subr.mxu0 0.0
    %1492 = vmatpush1.msra.mxu0 %v112
    %1493 = vmatprep.subr.mxu0 0.0
    %1494 = vmatpush1.msra.mxu0 %v111
    %1495 = vmatprep.subr.mxu0 0.0
    %1496 = vmatpush1.msra.mxu0 %v110
    %1497 = vmatprep.subr.mxu0 0.0
    %1498 = vmatpush1.msra.mxu0 %v109
    %1499 = vmatprep.subr.mxu0 0.0
    %1500 = vmatpush2.msra.mxu0 0.0
    %1501 = vmatprep.subr.mxu0 0.0
    %1502 = vmatpush2.msra.mxu0 0.0
    %1503 = vmatprep.subr.mxu0 0.0
    %1504 = vmatpush2.msra.mxu0 0.0
    %1505 = vmatprep.subr.mxu0 0.0
    %1506 = vmatpush2.msra.mxu0 0.0
    %1507 = vmatprep.subr.mxu0 0.0
    %1508 = vmatpush2.msra.mxu0 0.0
    %1509 = vmatprep.subr.mxu0 0.0
    %1510 = vmatpush2.msra.mxu0 0.0
    %1511 = vmatprep.subr.mxu0 0.0
    %1512 = vmatpush2.msra.mxu0 0.0
    %1513 = vmatprep.subr.mxu0 0.0
    %1514 = vmatpush2.msra.mxu0 0.0
    %1515 = vmatprep.subr.mxu0 0.0
    %1516 = vmatpush2.msra.mxu0 0.0
    %1517 = vmatprep.subr.mxu0 0.0
    %1518 = vmatpush2.msra.mxu0 0.0
    %1519 = vmatprep.subr.mxu0 0.0
    %1520 = vmatpush2.msra.mxu0 0.0
    %1521 = vmatprep.subr.mxu0 0.0
    %1522 = vmatpush2.msra.mxu0 0.0
    %1523 = vmatprep.subr.mxu0 0.0
    %1524 = vmatpush2.msra.mxu0 0.0
    %1525 = vmatprep.subr.mxu0 0.0
    %1526 = vmatpush2.msra.mxu0 0.0
    %1527 = vmatprep.subr.mxu0 0.0
    %1528 = vmatpush2.msra.mxu0 0.0
    %1529 = vmatprep.subr.mxu0 0.0
    %1530 = vmatpush2.msra.mxu0 0.0
    %1531 = vmatprep.mubr.f32.mxu0 0.0
    %1532 = vmatmul.mubr.f32.gmra.mxu0 %v1368
    %v1533 = vpop.f32.mrf.mxu0
    %v1534 = vadd.f32 0.0, %v1533
    %v1535 = vpop.f32.mrf.mxu0
    %1536 = vdwg.mxu0
    %v1537 = vadd.f32 %v1466, %v1534
    %v1538 = vtanh.pop %v1537
    %v1539 = vmul.f32 %v1538, 0.5
    %v1540 = vadd.f32 %v1539, 0.5
    %v1541 = vmul.f32 %v1540, %v1283
    %1543 = vrot.lane.b32.xlu0 %v1538, 32
    %v1544 = vpop.permute.xlu0 %1543
    %v1546 = vmul.f32 %v1540, %v1544
    %1548 = vrot.lane.b32.xlu0 %v1546, 32
    %v1549 = vpop.permute.xlu0 %1548
    %v1551 = vadd.f32 %v1541, %v1549
    %v1552 = vtanh.pop %v1551
    %1554 = vrot.lane.b32.xlu0 %v1552, 32
    %v1555 = vpop.permute.xlu0 %1554
    %v1557 = vmul.f32 %v1540, %v1555
    %1559 = vrot.lane.b32.xlu0 %v1460, 64
    %v1560 = vpop.permute.xlu0 %1559
    %v1561 = vsel %vm113, %v1560, 0
    %1563 = vmatprep.subr.mxu0 0.0
    %1564 = vmatpush1.msra.mxu0 0.0
    %1565 = vmatprep.subr.mxu0 0.0
    %1566 = vmatpush1.msra.mxu0 0.0
    %1567 = vmatprep.subr.mxu0 0.0
    %1568 = vmatpush1.msra.mxu0 0.0
    %1569 = vmatprep.subr.mxu0 0.0
    %1570 = vmatpush1.msra.mxu0 0.0
    %1571 = vmatprep.subr.mxu0 0.0
    %1572 = vmatpush1.msra.mxu0 0.0
    %1573 = vmatprep.subr.mxu0 0.0
    %1574 = vmatpush1.msra.mxu0 0.0
    %1575 = vmatprep.subr.mxu0 0.0
    %1576 = vmatpush1.msra.mxu0 0.0
    %1577 = vmatprep.subr.mxu0 0.0
    %1578 = vmatpush1.msra.mxu0 0.0
    %1579 = vmatprep.subr.mxu0 0.0
    %1580 = vmatpush1.msra.mxu0 0.0
    %1581 = vmatprep.subr.mxu0 0.0
    %1582 = vmatpush1.msra.mxu0 0.0
    %1583 = vmatprep.subr.mxu0 0.0
    %1584 = vmatpush1.msra.mxu0 0.0
    %1585 = vmatprep.subr.mxu0 0.0
    %1586 = vmatpush1.msra.mxu0 0.0
    %1587 = vmatprep.subr.mxu0 0.0
    %1588 = vmatpush1.msra.mxu0 %v215
    %1589 = vmatprep.subr.mxu0 0.0
    %1590 = vmatpush1.msra.mxu0 %v214
    %1591 = vmatprep.subr.mxu0 0.0
    %1592 = vmatpush1.msra.mxu0 %v213
    %1593 = vmatprep.subr.mxu0 0.0
    %1594 = vmatpush1.msra.mxu0 %v212
    %1595 = vmatprep.subr.mxu0 0.0
    %1596 = vmatpush2.msra.mxu0 0.0
    %1597 = vmatprep.subr.mxu0 0.0
    %1598 = vmatpush2.msra.mxu0 0.0
    %1599 = vmatprep.subr.mxu0 0.0
    %1600 = vmatpush2.msra.mxu0 0.0
    %1601 = vmatprep.subr.mxu0 0.0
    %1602 = vmatpush2.msra.mxu0 0.0
    %1603 = vmatprep.subr.mxu0 0.0
    %1604 = vmatpush2.msra.mxu0 0.0
    %1605 = vmatprep.subr.mxu0 0.0
    %1606 = vmatpush2.msra.mxu0 0.0
    %1607 = vmatprep.subr.mxu0 0.0
    %1608 = vmatpush2.msra.mxu0 0.0
    %1609 = vmatprep.subr.mxu0 0.0
    %1610 = vmatpush2.msra.mxu0 0.0
    %1611 = vmatprep.subr.mxu0 0.0
    %1612 = vmatpush2.msra.mxu0 0.0
    %1613 = vmatprep.subr.mxu0 0.0
    %1614 = vmatpush2.msra.mxu0 0.0
    %1615 = vmatprep.subr.mxu0 0.0
    %1616 = vmatpush2.msra.mxu0 0.0
    %1617 = vmatprep.subr.mxu0 0.0
    %1618 = vmatpush2.msra.mxu0 0.0
    %1619 = vmatprep.subr.mxu0 0.0
    %1620 = vmatpush2.msra.mxu0 0.0
    %1621 = vmatprep.subr.mxu0 0.0
    %1622 = vmatpush2.msra.mxu0 0.0
    %1623 = vmatprep.subr.mxu0 0.0
    %1624 = vmatpush2.msra.mxu0 0.0
    %1625 = vmatprep.subr.mxu0 0.0
    %1626 = vmatpush2.msra.mxu0 0.0
    %1627 = vmatprep.mubr.f32.mxu0 0.0
    %1628 = vmatmul.mubr.f32.gmra.mxu0 %v1561
    %v1629 = vpop.f32.mrf.mxu0
    %v1630 = vadd.f32 0.0, %v1629
    %v1631 = vpop.f32.mrf.mxu0
    %1632 = vdwg.mxu0
    %1634 = vrot.lane.b32.xlu0 %v1557, 64
    %v1635 = vpop.permute.xlu0 %1634
    %v1636 = vsel %vm113, %v1635, 0
    %1638 = vmatprep.subr.mxu0 0.0
    %1639 = vmatpush1.msra.mxu0 0.0
    %1640 = vmatprep.subr.mxu0 0.0
    %1641 = vmatpush1.msra.mxu0 0.0
    %1642 = vmatprep.subr.mxu0 0.0
    %1643 = vmatpush1.msra.mxu0 0.0
    %1644 = vmatprep.subr.mxu0 0.0
    %1645 = vmatpush1.msra.mxu0 0.0
    %1646 = vmatprep.subr.mxu0 0.0
    %1647 = vmatpush1.msra.mxu0 0.0
    %1648 = vmatprep.subr.mxu0 0.0
    %1649 = vmatpush1.msra.mxu0 0.0
    %1650 = vmatprep.subr.mxu0 0.0
    %1651 = vmatpush1.msra.mxu0 0.0
    %1652 = vmatprep.subr.mxu0 0.0
    %1653 = vmatpush1.msra.mxu0 0.0
    %1654 = vmatprep.subr.mxu0 0.0
    %1655 = vmatpush1.msra.mxu0 0.0
    %1656 = vmatprep.subr.mxu0 0.0
    %1657 = vmatpush1.msra.mxu0 0.0
    %1658 = vmatprep.subr.mxu0 0.0
    %1659 = vmatpush1.msra.mxu0 0.0
    %1660 = vmatprep.subr.mxu0 0.0
    %1661 = vmatpush1.msra.mxu0 0.0
    %1662 = vmatprep.subr.mxu0 0.0
    %1663 = vmatpush1.msra.mxu0 %v211
    %1664 = vmatprep.subr.mxu0 0.0
    %1665 = vmatpush1.msra.mxu0 %v210
    %1666 = vmatprep.subr.mxu0 0.0
    %1667 = vmatpush1.msra.mxu0 %v209
    %1668 = vmatprep.subr.mxu0 0.0
    %1669 = vmatpush1.msra.mxu0 %v208
    %1670 = vmatprep.subr.mxu0 0.0
    %1671 = vmatpush2.msra.mxu0 0.0
    %1672 = vmatprep.subr.mxu0 0.0
    %1673 = vmatpush2.msra.mxu0 0.0
    %1674 = vmatprep.subr.mxu0 0.0
    %1675 = vmatpush2.msra.mxu0 0.0
    %1676 = vmatprep.subr.mxu0 0.0
    %1677 = vmatpush2.msra.mxu0 0.0
    %1678 = vmatprep.subr.mxu0 0.0
    %1679 = vmatpush2.msra.mxu0 0.0
    %1680 = vmatprep.subr.mxu0 0.0
    %1681 = vmatpush2.msra.mxu0 0.0
    %1682 = vmatprep.subr.mxu0 0.0
    %1683 = vmatpush2.msra.mxu0 0.0
    %1684 = vmatprep.subr.mxu0 0.0
    %1685 = vmatpush2.msra.mxu0 0.0
    %1686 = vmatprep.subr.mxu0 0.0
    %1687 = vmatpush2.msra.mxu0 0.0
    %1688 = vmatprep.subr.mxu0 0.0
    %1689 = vmatpush2.msra.mxu0 0.0
    %1690 = vmatprep.subr.mxu0 0.0
    %1691 = vmatpush2.msra.mxu0 0.0
    %1692 = vmatprep.subr.mxu0 0.0
    %1693 = vmatpush2.msra.mxu0 0.0
    %1694 = vmatprep.subr.mxu0 0.0
    %1695 = vmatpush2.msra.mxu0 0.0
    %1696 = vmatprep.subr.mxu0 0.0
    %1697 = vmatpush2.msra.mxu0 0.0
    %1698 = vmatprep.subr.mxu0 0.0
    %1699 = vmatpush2.msra.mxu0 0.0
    %1700 = vmatprep.subr.mxu0 0.0
    %1701 = vmatpush2.msra.mxu0 0.0
    %1702 = vmatprep.mubr.f32.mxu0 0.0
    %1703 = vmatmul.mubr.f32.gmra.mxu0 %v1636
    %v1704 = vpop.f32.mrf.mxu0
    %v1705 = vadd.f32 %v1630, %v1704
    %v1706 = vpop.f32.mrf.mxu0
    %1707 = vdwg.mxu0
    %v1708 = vadd.f32 %v1705, %v366
    %v1709 = vtanh.pop %v1708
    %v1710 = vmul.f32 %v1709, 0.5
    %v1711 = vadd.f32 %v1710, 0.5
    %v1712 = vmul.f32 %v1711, %v1454
    %1714 = vrot.lane.b32.xlu0 %v1709, 32
    %v1715 = vpop.permute.xlu0 %1714
    %v1717 = vmul.f32 %v1711, %v1715
    %1719 = vrot.lane.b32.xlu0 %v1717, 32
    %v1720 = vpop.permute.xlu0 %1719
    %v1722 = vadd.f32 %v1712, %v1720
    %v1723 = vtanh.pop %v1722
    %1725 = vrot.lane.b32.xlu0 %v1723, 32
    %v1726 = vpop.permute.xlu0 %1725
    %v1728 = vmul.f32 %v1711, %v1726
    %1729 = vset.pattern.permute.xlu0 6
    %1730 = vperm.xlu0 %1729, %v87
    %v1731 = vpop.permute.xlu0 %1730
    %v1733 = vmul.f32 %v1731, %v98
    %v1734 = vadd.f32 %v1733, %v106
    %1735 = vmatprep.subr.mxu0 0.0
    %1736 = vmatpush1.msra.mxu0 0.0
    %1737 = vmatprep.subr.mxu0 0.0
    %1738 = vmatpush1.msra.mxu0 0.0
    %1739 = vmatprep.subr.mxu0 0.0
    %1740 = vmatpush1.msra.mxu0 0.0
    %1741 = vmatprep.subr.mxu0 0.0
    %1742 = vmatpush1.msra.mxu0 0.0
    %1743 = vmatprep.subr.mxu0 0.0
    %1744 = vmatpush1.msra.mxu0 0.0
    %1745 = vmatprep.subr.mxu0 0.0
    %1746 = vmatpush1.msra.mxu0 0.0
    %1747 = vmatprep.subr.mxu0 0.0
    %1748 = vmatpush1.msra.mxu0 0.0
    %1749 = vmatprep.subr.mxu0 0.0
    %1750 = vmatpush1.msra.mxu0 0.0
    %1751 = vmatprep.subr.mxu0 0.0
    %1752 = vmatpush1.msra.mxu0 0.0
    %1753 = vmatprep.subr.mxu0 0.0
    %1754 = vmatpush1.msra.mxu0 0.0
    %1755 = vmatprep.subr.mxu0 0.0
    %1756 = vmatpush1.msra.mxu0 0.0
    %1757 = vmatprep.subr.mxu0 0.0
    %1758 = vmatpush1.msra.mxu0 0.0
    %1759 = vmatprep.subr.mxu0 0.0
    %1760 = vmatpush1.msra.mxu0 %v112
    %1761 = vmatprep.subr.mxu0 0.0
    %1762 = vmatpush1.msra.mxu0 %v111
    %1763 = vmatprep.subr.mxu0 0.0
    %1764 = vmatpush1.msra.mxu0 %v110
    %1765 = vmatprep.subr.mxu0 0.0
    %1766 = vmatpush1.msra.mxu0 %v109
    %1767 = vmatprep.subr.mxu0 0.0
    %1768 = vmatpush2.msra.mxu0 0.0
    %1769 = vmatprep.subr.mxu0 0.0
    %1770 = vmatpush2.msra.mxu0 0.0
    %1771 = vmatprep.subr.mxu0 0.0
    %1772 = vmatpush2.msra.mxu0 0.0
    %1773 = vmatprep.subr.mxu0 0.0
    %1774 = vmatpush2.msra.mxu0 0.0
    %1775 = vmatprep.subr.mxu0 0.0
    %1776 = vmatpush2.msra.mxu0 0.0
    %1777 = vmatprep.subr.mxu0 0.0
    %1778 = vmatpush2.msra.mxu0 0.0
    %1779 = vmatprep.subr.mxu0 0.0
    %1780 = vmatpush2.msra.mxu0 0.0
    %1781 = vmatprep.subr.mxu0 0.0
    %1782 = vmatpush2.msra.mxu0 0.0
    %1783 = vmatprep.subr.mxu0 0.0
    %1784 = vmatpush2.msra.mxu0 0.0
    %1785 = vmatprep.subr.mxu0 0.0
    %1786 = vmatpush2.msra.mxu0 0.0
    %1787 = vmatprep.subr.mxu0 0.0
    %1788 = vmatpush2.msra.mxu0 0.0
    %1789 = vmatprep.subr.mxu0 0.0
    %1790 = vmatpush2.msra.mxu0 0.0
    %1791 = vmatprep.subr.mxu0 0.0
    %1792 = vmatpush2.msra.mxu0 0.0
    %1793 = vmatprep.subr.mxu0 0.0
    %1794 = vmatpush2.msra.mxu0 0.0
    %1795 = vmatprep.subr.mxu0 0.0
    %1796 = vmatpush2.msra.mxu0 0.0
    %1797 = vmatprep.subr.mxu0 0.0
    %1798 = vmatpush2.msra.mxu0 0.0
    %1799 = vmatprep.mubr.f32.mxu0 0.0
    %1800 = vmatmul.mubr.f32.gmra.mxu0 %v1636
    %v1801 = vpop.f32.mrf.mxu0
    %v1802 = vadd.f32 0.0, %v1801
    %v1803 = vpop.f32.mrf.mxu0
    %1804 = vdwg.mxu0
    %v1805 = vadd.f32 %v1734, %v1802
    %v1806 = vtanh.pop %v1805
    %v1807 = vmul.f32 %v1806, 0.5
    %v1808 = vadd.f32 %v1807, 0.5
    %v1809 = vmul.f32 %v1808, %v1551
    %1811 = vrot.lane.b32.xlu0 %v1806, 32
    %v1812 = vpop.permute.xlu0 %1811
    %v1814 = vmul.f32 %v1808, %v1812
    %1816 = vrot.lane.b32.xlu0 %v1814, 32
    %v1817 = vpop.permute.xlu0 %1816
    %v1819 = vadd.f32 %v1809, %v1817
    %v1820 = vtanh.pop %v1819
    %1822 = vrot.lane.b32.xlu0 %v1820, 32
    %v1823 = vpop.permute.xlu0 %1822
    %v1825 = vmul.f32 %v1808, %v1823
    %1827 = vrot.lane.b32.xlu0 %v1728, 64
    %v1828 = vpop.permute.xlu0 %1827
    %v1829 = vsel %vm113, %v1828, 0
    %1831 = vmatprep.subr.mxu0 0.0
    %1832 = vmatpush1.msra.mxu0 0.0
    %1833 = vmatprep.subr.mxu0 0.0
    %1834 = vmatpush1.msra.mxu0 0.0
    %1835 = vmatprep.subr.mxu0 0.0
    %1836 = vmatpush1.msra.mxu0 0.0
    %1837 = vmatprep.subr.mxu0 0.0
    %1838 = vmatpush1.msra.mxu0 0.0
    %1839 = vmatprep.subr.mxu0 0.0
    %1840 = vmatpush1.msra.mxu0 0.0
    %1841 = vmatprep.subr.mxu0 0.0
    %1842 = vmatpush1.msra.mxu0 0.0
    %1843 = vmatprep.subr.mxu0 0.0
    %1844 = vmatpush1.msra.mxu0 0.0
    %1845 = vmatprep.subr.mxu0 0.0
    %1846 = vmatpush1.msra.mxu0 0.0
    %1847 = vmatprep.subr.mxu0 0.0
    %1848 = vmatpush1.msra.mxu0 0.0
    %1849 = vmatprep.subr.mxu0 0.0
    %1850 = vmatpush1.msra.mxu0 0.0
    %1851 = vmatprep.subr.mxu0 0.0
    %1852 = vmatpush1.msra.mxu0 0.0
    %1853 = vmatprep.subr.mxu0 0.0
    %1854 = vmatpush1.msra.mxu0 0.0
    %1855 = vmatprep.subr.mxu0 0.0
    %1856 = vmatpush1.msra.mxu0 %v215
    %1857 = vmatprep.subr.mxu0 0.0
    %1858 = vmatpush1.msra.mxu0 %v214
    %1859 = vmatprep.subr.mxu0 0.0
    %1860 = vmatpush1.msra.mxu0 %v213
    %1861 = vmatprep.subr.mxu0 0.0
    %1862 = vmatpush1.msra.mxu0 %v212
    %1863 = vmatprep.subr.mxu0 0.0
    %1864 = vmatpush2.msra.mxu0 0.0
    %1865 = vmatprep.subr.mxu0 0.0
    %1866 = vmatpush2.msra.mxu0 0.0
    %1867 = vmatprep.subr.mxu0 0.0
    %1868 = vmatpush2.msra.mxu0 0.0
    %1869 = vmatprep.subr.mxu0 0.0
    %1870 = vmatpush2.msra.mxu0 0.0
    %1871 = vmatprep.subr.mxu0 0.0
    %1872 = vmatpush2.msra.mxu0 0.0
    %1873 = vmatprep.subr.mxu0 0.0
    %1874 = vmatpush2.msra.mxu0 0.0
    %1875 = vmatprep.subr.mxu0 0.0
    %1876 = vmatpush2.msra.mxu0 0.0
    %1877 = vmatprep.subr.mxu0 0.0
    %1878 = vmatpush2.msra.mxu0 0.0
    %1879 = vmatprep.subr.mxu0 0.0
    %1880 = vmatpush2.msra.mxu0 0.0
    %1881 = vmatprep.subr.mxu0 0.0
    %1882 = vmatpush2.msra.mxu0 0.0
    %1883 = vmatprep.subr.mxu0 0.0
    %1884 = vmatpush2.msra.mxu0 0.0
    %1885 = vmatprep.subr.mxu0 0.0
    %1886 = vmatpush2.msra.mxu0 0.0
    %1887 = vmatprep.subr.mxu0 0.0
    %1888 = vmatpush2.msra.mxu0 0.0
    %1889 = vmatprep.subr.mxu0 0.0
    %1890 = vmatpush2.msra.mxu0 0.0
    %1891 = vmatprep.subr.mxu0 0.0
    %1892 = vmatpush2.msra.mxu0 0.0
    %1893 = vmatprep.subr.mxu0 0.0
    %1894 = vmatpush2.msra.mxu0 0.0
    %1895 = vmatprep.mubr.f32.mxu0 0.0
    %1896 = vmatmul.mubr.f32.gmra.mxu0 %v1829
    %v1897 = vpop.f32.mrf.mxu0
    %v1898 = vadd.f32 0.0, %v1897
    %v1899 = vpop.f32.mrf.mxu0
    %1900 = vdwg.mxu0
    %1902 = vrot.lane.b32.xlu0 %v1825, 64
    %v1903 = vpop.permute.xlu0 %1902
    %v1904 = vsel %vm113, %v1903, 0
    %1906 = vmatprep.subr.mxu0 0.0
    %1907 = vmatpush1.msra.mxu0 0.0
    %1908 = vmatprep.subr.mxu0 0.0
    %1909 = vmatpush1.msra.mxu0 0.0
    %1910 = vmatprep.subr.mxu0 0.0
    %1911 = vmatpush1.msra.mxu0 0.0
    %1912 = vmatprep.subr.mxu0 0.0
    %1913 = vmatpush1.msra.mxu0 0.0
    %1914 = vmatprep.subr.mxu0 0.0
    %1915 = vmatpush1.msra.mxu0 0.0
    %1916 = vmatprep.subr.mxu0 0.0
    %1917 = vmatpush1.msra.mxu0 0.0
    %1918 = vmatprep.subr.mxu0 0.0
    %1919 = vmatpush1.msra.mxu0 0.0
    %1920 = vmatprep.subr.mxu0 0.0
    %1921 = vmatpush1.msra.mxu0 0.0
    %1922 = vmatprep.subr.mxu0 0.0
    %1923 = vmatpush1.msra.mxu0 0.0
    %1924 = vmatprep.subr.mxu0 0.0
    %1925 = vmatpush1.msra.mxu0 0.0
    %1926 = vmatprep.subr.mxu0 0.0
    %1927 = vmatpush1.msra.mxu0 0.0
    %1928 = vmatprep.subr.mxu0 0.0
    %1929 = vmatpush1.msra.mxu0 0.0
    %1930 = vmatprep.subr.mxu0 0.0
    %1931 = vmatpush1.msra.mxu0 %v211
    %1932 = vmatprep.subr.mxu0 0.0
    %1933 = vmatpush1.msra.mxu0 %v210
    %1934 = vmatprep.subr.mxu0 0.0
    %1935 = vmatpush1.msra.mxu0 %v209
    %1936 = vmatprep.subr.mxu0 0.0
    %1937 = vmatpush1.msra.mxu0 %v208
    %1938 = vmatprep.subr.mxu0 0.0
    %1939 = vmatpush2.msra.mxu0 0.0
    %1940 = vmatprep.subr.mxu0 0.0
    %1941 = vmatpush2.msra.mxu0 0.0
    %1942 = vmatprep.subr.mxu0 0.0
    %1943 = vmatpush2.msra.mxu0 0.0
    %1944 = vmatprep.subr.mxu0 0.0
    %1945 = vmatpush2.msra.mxu0 0.0
    %1946 = vmatprep.subr.mxu0 0.0
    %1947 = vmatpush2.msra.mxu0 0.0
    %1948 = vmatprep.subr.mxu0 0.0
    %1949 = vmatpush2.msra.mxu0 0.0
    %1950 = vmatprep.subr.mxu0 0.0
    %1951 = vmatpush2.msra.mxu0 0.0
    %1952 = vmatprep.subr.mxu0 0.0
    %1953 = vmatpush2.msra.mxu0 0.0
    %1954 = vmatprep.subr.mxu0 0.0
    %1955 = vmatpush2.msra.mxu0 0.0
    %1956 = vmatprep.subr.mxu0 0.0
    %1957 = vmatpush2.msra.mxu0 0.0
    %1958 = vmatprep.subr.mxu0 0.0
    %1959 = vmatpush2.msra.mxu0 0.0
    %1960 = vmatprep.subr.mxu0 0.0
    %1961 = vmatpush2.msra.mxu0 0.0
    %1962 = vmatprep.subr.mxu0 0.0
    %1963 = vmatpush2.msra.mxu0 0.0
    %1964 = vmatprep.subr.mxu0 0.0
    %1965 = vmatpush2.msra.mxu0 0.0
    %1966 = vmatprep.subr.mxu0 0.0
    %1967 = vmatpush2.msra.mxu0 0.0
    %1968 = vmatprep.subr.mxu0 0.0
    %1969 = vmatpush2.msra.mxu0 0.0
    %1970 = vmatprep.mubr.f32.mxu0 0.0
    %1971 = vmatmul.mubr.f32.gmra.mxu0 %v1904
    %v1972 = vpop.f32.mrf.mxu0
    %v1973 = vadd.f32 %v1898, %v1972
    %v1974 = vpop.f32.mrf.mxu0
    %1975 = vdwg.mxu0
    %v1976 = vadd.f32 %v1973, %v366
    %v1977 = vtanh.pop %v1976
    %v1978 = vmul.f32 %v1977, 0.5
    %v1979 = vadd.f32 %v1978, 0.5
    %v1980 = vmul.f32 %v1979, %v1722
    %1982 = vrot.lane.b32.xlu0 %v1977, 32
    %v1983 = vpop.permute.xlu0 %1982
    %v1985 = vmul.f32 %v1979, %v1983
    %1987 = vrot.lane.b32.xlu0 %v1985, 32
    %v1988 = vpop.permute.xlu0 %1987
    %v1990 = vadd.f32 %v1980, %v1988
    %v1991 = vtanh.pop %v1990
    %1993 = vrot.lane.b32.xlu0 %v1991, 32
    %v1994 = vpop.permute.xlu0 %1993
    %v1996 = vmul.f32 %v1979, %v1994
    %1997 = vset.pattern.permute.xlu0 7
    %1998 = vperm.xlu0 %1997, %v87
    %v1999 = vpop.permute.xlu0 %1998
    %v2001 = vmul.f32 %v1999, %v98
    %v2002 = vadd.f32 %v2001, %v106
    %2003 = vmatprep.subr.mxu0 0.0
    %2004 = vmatpush1.msra.mxu0 0.0
    %2005 = vmatprep.subr.mxu0 0.0
    %2006 = vmatpush1.msra.mxu0 0.0
    %2007 = vmatprep.subr.mxu0 0.0
    %2008 = vmatpush1.msra.mxu0 0.0
    %2009 = vmatprep.subr.mxu0 0.0
    %2010 = vmatpush1.msra.mxu0 0.0
    %2011 = vmatprep.subr.mxu0 0.0
    %2012 = vmatpush1.msra.mxu0 0.0
    %2013 = vmatprep.subr.mxu0 0.0
    %2014 = vmatpush1.msra.mxu0 0.0
    %2015 = vmatprep.subr.mxu0 0.0
    %2016 = vmatpush1.msra.mxu0 0.0
    %2017 = vmatprep.subr.mxu0 0.0
    %2018 = vmatpush1.msra.mxu0 0.0
    %2019 = vmatprep.subr.mxu0 0.0
    %2020 = vmatpush1.msra.mxu0 0.0
    %2021 = vmatprep.subr.mxu0 0.0
    %2022 = vmatpush1.msra.mxu0 0.0
    %2023 = vmatprep.subr.mxu0 0.0
    %2024 = vmatpush1.msra.mxu0 0.0
    %2025 = vmatprep.subr.mxu0 0.0
    %2026 = vmatpush1.msra.mxu0 0.0
    %2027 = vmatprep.subr.mxu0 0.0
    %2028 = vmatpush1.msra.mxu0 %v112
    %2029 = vmatprep.subr.mxu0 0.0
    %2030 = vmatpush1.msra.mxu0 %v111
    %2031 = vmatprep.subr.mxu0 0.0
    %2032 = vmatpush1.msra.mxu0 %v110
    %2033 = vmatprep.subr.mxu0 0.0
    %2034 = vmatpush1.msra.mxu0 %v109
    %2035 = vmatprep.subr.mxu0 0.0
    %2036 = vmatpush2.msra.mxu0 0.0
    %2037 = vmatprep.subr.mxu0 0.0
    %2038 = vmatpush2.msra.mxu0 0.0
    %2039 = vmatprep.subr.mxu0 0.0
    %2040 = vmatpush2.msra.mxu0 0.0
    %2041 = vmatprep.subr.mxu0 0.0
    %2042 = vmatpush2.msra.mxu0 0.0
    %2043 = vmatprep.subr.mxu0 0.0
    %2044 = vmatpush2.msra.mxu0 0.0
    %2045 = vmatprep.subr.mxu0 0.0
    %2046 = vmatpush2.msra.mxu0 0.0
    %2047 = vmatprep.subr.mxu0 0.0
    %2048 = vmatpush2.msra.mxu0 0.0
    %2049 = vmatprep.subr.mxu0 0.0
    %2050 = vmatpush2.msra.mxu0 0.0
    %2051 = vmatprep.subr.mxu0 0.0
    %2052 = vmatpush2.msra.mxu0 0.0
    %2053 = vmatprep.subr.mxu0 0.0
    %2054 = vmatpush2.msra.mxu0 0.0
    %2055 = vmatprep.subr.mxu0 0.0
    %2056 = vmatpush2.msra.mxu0 0.0
    %2057 = vmatprep.subr.mxu0 0.0
    %2058 = vmatpush2.msra.mxu0 0.0
    %2059 = vmatprep.subr.mxu0 0.0
    %2060 = vmatpush2.msra.mxu0 0.0
    %2061 = vmatprep.subr.mxu0 0.0
    %2062 = vmatpush2.msra.mxu0 0.0
    %2063 = vmatprep.subr.mxu0 0.0
    %2064 = vmatpush2.msra.mxu0 0.0
    %2065 = vmatprep.subr.mxu0 0.0
    %2066 = vmatpush2.msra.mxu0 0.0
    %2067 = vmatprep.mubr.f32.mxu0 0.0
    %2068 = vmatmul.mubr.f32.gmra.mxu0 %v1904
    %v2069 = vpop.f32.mrf.mxu0
    %v2070 = vadd.f32 0.0, %v2069
    %v2071 = vpop.f32.mrf.mxu0
    %2072 = vdwg.mxu0
    %v2073 = vadd.f32 %v2002, %v2070
    %v2074 = vtanh.pop %v2073
    %v2075 = vmul.f32 %v2074, 0.5
    %v2076 = vadd.f32 %v2075, 0.5
    %v2077 = vmul.f32 %v2076, %v1819
    %2079 = vrot.lane.b32.xlu0 %v2074, 32
    %v2080 = vpop.permute.xlu0 %2079
    %v2082 = vmul.f32 %v2076, %v2080
    %2084 = vrot.lane.b32.xlu0 %v2082, 32
    %v2085 = vpop.permute.xlu0 %2084
    %v2087 = vadd.f32 %v2077, %v2085
    %v2088 = vtanh.pop %v2087
    %2090 = vrot.lane.b32.xlu0 %v2088, 32
    %v2091 = vpop.permute.xlu0 %2090
    %v2093 = vmul.f32 %v2076, %v2091
    %2095 = vrot.lane.b32.xlu0 %v1996, 64
    %v2096 = vpop.permute.xlu0 %2095
    %v2097 = vsel %vm113, %v2096, 0
    %2099 = vmatprep.subr.mxu0 0.0
    %2100 = vmatpush1.msra.mxu0 0.0
    %2101 = vmatprep.subr.mxu0 0.0
    %2102 = vmatpush1.msra.mxu0 0.0
    %2103 = vmatprep.subr.mxu0 0.0
    %2104 = vmatpush1.msra.mxu0 0.0
    %2105 = vmatprep.subr.mxu0 0.0
    %2106 = vmatpush1.msra.mxu0 0.0
    %2107 = vmatprep.subr.mxu0 0.0
    %2108 = vmatpush1.msra.mxu0 0.0
    %2109 = vmatprep.subr.mxu0 0.0
    %2110 = vmatpush1.msra.mxu0 0.0
    %2111 = vmatprep.subr.mxu0 0.0
    %2112 = vmatpush1.msra.mxu0 0.0
    %2113 = vmatprep.subr.mxu0 0.0
    %2114 = vmatpush1.msra.mxu0 0.0
    %2115 = vmatprep.subr.mxu0 0.0
    %2116 = vmatpush1.msra.mxu0 0.0
    %2117 = vmatprep.subr.mxu0 0.0
    %2118 = vmatpush1.msra.mxu0 0.0
    %2119 = vmatprep.subr.mxu0 0.0
    %2120 = vmatpush1.msra.mxu0 0.0
    %2121 = vmatprep.subr.mxu0 0.0
    %2122 = vmatpush1.msra.mxu0 0.0
    %2123 = vmatprep.subr.mxu0 0.0
    %2124 = vmatpush1.msra.mxu0 %v215
    %2125 = vmatprep.subr.mxu0 0.0
    %2126 = vmatpush1.msra.mxu0 %v214
    %2127 = vmatprep.subr.mxu0 0.0
    %2128 = vmatpush1.msra.mxu0 %v213
    %2129 = vmatprep.subr.mxu0 0.0
    %2130 = vmatpush1.msra.mxu0 %v212
    %2131 = vmatprep.subr.mxu0 0.0
    %2132 = vmatpush2.msra.mxu0 0.0
    %2133 = vmatprep.subr.mxu0 0.0
    %2134 = vmatpush2.msra.mxu0 0.0
    %2135 = vmatprep.subr.mxu0 0.0
    %2136 = vmatpush2.msra.mxu0 0.0
    %2137 = vmatprep.subr.mxu0 0.0
    %2138 = vmatpush2.msra.mxu0 0.0
    %2139 = vmatprep.subr.mxu0 0.0
    %2140 = vmatpush2.msra.mxu0 0.0
    %2141 = vmatprep.subr.mxu0 0.0
    %2142 = vmatpush2.msra.mxu0 0.0
    %2143 = vmatprep.subr.mxu0 0.0
    %2144 = vmatpush2.msra.mxu0 0.0
    %2145 = vmatprep.subr.mxu0 0.0
    %2146 = vmatpush2.msra.mxu0 0.0
    %2147 = vmatprep.subr.mxu0 0.0
    %2148 = vmatpush2.msra.mxu0 0.0
    %2149 = vmatprep.subr.mxu0 0.0
    %2150 = vmatpush2.msra.mxu0 0.0
    %2151 = vmatprep.subr.mxu0 0.0
    %2152 = vmatpush2.msra.mxu0 0.0
    %2153 = vmatprep.subr.mxu0 0.0
    %2154 = vmatpush2.msra.mxu0 0.0
    %2155 = vmatprep.subr.mxu0 0.0
    %2156 = vmatpush2.msra.mxu0 0.0
    %2157 = vmatprep.subr.mxu0 0.0
    %2158 = vmatpush2.msra.mxu0 0.0
    %2159 = vmatprep.subr.mxu0 0.0
    %2160 = vmatpush2.msra.mxu0 0.0
    %2161 = vmatprep.subr.mxu0 0.0
    %2162 = vmatpush2.msra.mxu0 0.0
    %2163 = vmatprep.mubr.f32.mxu0 0.0
    %2164 = vmatmul.mubr.f32.gmra.mxu0 %v2097
    %v2165 = vpop.f32.mrf.mxu0
    %v2166 = vadd.f32 0.0, %v2165
    %v2167 = vpop.f32.mrf.mxu0
    %2168 = vdwg.mxu0
    %2170 = vrot.lane.b32.xlu0 %v2093, 64
    %v2171 = vpop.permute.xlu0 %2170
    %v2172 = vsel %vm113, %v2171, 0
    %2174 = vmatprep.subr.mxu0 0.0
    %2175 = vmatpush1.msra.mxu0 0.0
    %2176 = vmatprep.subr.mxu0 0.0
    %2177 = vmatpush1.msra.mxu0 0.0
    %2178 = vmatprep.subr.mxu0 0.0
    %2179 = vmatpush1.msra.mxu0 0.0
    %2180 = vmatprep.subr.mxu0 0.0
    %2181 = vmatpush1.msra.mxu0 0.0
    %2182 = vmatprep.subr.mxu0 0.0
    %2183 = vmatpush1.msra.mxu0 0.0
    %2184 = vmatprep.subr.mxu0 0.0
    %2185 = vmatpush1.msra.mxu0 0.0
    %2186 = vmatprep.subr.mxu0 0.0
    %2187 = vmatpush1.msra.mxu0 0.0
    %2188 = vmatprep.subr.mxu0 0.0
    %2189 = vmatpush1.msra.mxu0 0.0
    %2190 = vmatprep.subr.mxu0 0.0
    %2191 = vmatpush1.msra.mxu0 0.0
    %2192 = vmatprep.subr.mxu0 0.0
    %2193 = vmatpush1.msra.mxu0 0.0
    %2194 = vmatprep.subr.mxu0 0.0
    %2195 = vmatpush1.msra.mxu0 0.0
    %2196 = vmatprep.subr.mxu0 0.0
    %2197 = vmatpush1.msra.mxu0 0.0
    %2198 = vmatprep.subr.mxu0 0.0
    %2199 = vmatpush1.msra.mxu0 %v211
    %2200 = vmatprep.subr.mxu0 0.0
    %2201 = vmatpush1.msra.mxu0 %v210
    %2202 = vmatprep.subr.mxu0 0.0
    %2203 = vmatpush1.msra.mxu0 %v209
    %2204 = vmatprep.subr.mxu0 0.0
    %2205 = vmatpush1.msra.mxu0 %v208
    %2206 = vmatprep.subr.mxu0 0.0
    %2207 = vmatpush2.msra.mxu0 0.0
    %2208 = vmatprep.subr.mxu0 0.0
    %2209 = vmatpush2.msra.mxu0 0.0
    %2210 = vmatprep.subr.mxu0 0.0
    %2211 = vmatpush2.msra.mxu0 0.0
    %2212 = vmatprep.subr.mxu0 0.0
    %2213 = vmatpush2.msra.mxu0 0.0
    %2214 = vmatprep.subr.mxu0 0.0
    %2215 = vmatpush2.msra.mxu0 0.0
    %2216 = vmatprep.subr.mxu0 0.0
    %2217 = vmatpush2.msra.mxu0 0.0
    %2218 = vmatprep.subr.mxu0 0.0
    %2219 = vmatpush2.msra.mxu0 0.0
    %2220 = vmatprep.subr.mxu0 0.0
    %2221 = vmatpush2.msra.mxu0 0.0
    %2222 = vmatprep.subr.mxu0 0.0
    %2223 = vmatpush2.msra.mxu0 0.0
    %2224 = vmatprep.subr.mxu0 0.0
    %2225 = vmatpush2.msra.mxu0 0.0
    %2226 = vmatprep.subr.mxu0 0.0
    %2227 = vmatpush2.msra.mxu0 0.0
    %2228 = vmatprep.subr.mxu0 0.0
    %2229 = vmatpush2.msra.mxu0 0.0
    %2230 = vmatprep.subr.mxu0 0.0
    %2231 = vmatpush2.msra.mxu0 0.0
    %2232 = vmatprep.subr.mxu0 0.0
    %2233 = vmatpush2.msra.mxu0 0.0
    %2234 = vmatprep.subr.mxu0 0.0
    %2235 = vmatpush2.msra.mxu0 0.0
    %2236 = vmatprep.subr.mxu0 0.0
    %2237 = vmatpush2.msra.mxu0 0.0
    %2238 = vmatprep.mubr.f32.mxu0 0.0
    %2239 = vmatmul.mubr.f32.gmra.mxu0 %v2172
    %v2240 = vpop.f32.mrf.mxu0
    %v2241 = vadd.f32 %v2166, %v2240
    %v2242 = vpop.f32.mrf.mxu0
    %2243 = vdwg.mxu0
    %v2244 = vadd.f32 %v2241, %v366
    %v2245 = vtanh.pop %v2244
    %v2246 = vmul.f32 %v2245, 0.5
    %v2247 = vadd.f32 %v2246, 0.5
    %v2248 = vmul.f32 %v2247, %v1990
    %2250 = vrot.lane.b32.xlu0 %v2245, 32
    %v2251 = vpop.permute.xlu0 %2250
    %v2253 = vmul.f32 %v2247, %v2251
    %2255 = vrot.lane.b32.xlu0 %v2253, 32
    %v2256 = vpop.permute.xlu0 %2255
    %v2258 = vadd.f32 %v2248, %v2256
    %v2259 = vtanh.pop %v2258
    %2261 = vrot.lane.b32.xlu0 %v2259, 32
    %v2262 = vpop.permute.xlu0 %2261
    %v2264 = vmul.f32 %v2247, %v2262
    %2265 = vset.pattern.permute.xlu0 8
    %2266 = vperm.xlu0 %2265, %v87
    %v2267 = vpop.permute.xlu0 %2266
    %v2269 = vmul.f32 %v2267, %v98
    %v2270 = vadd.f32 %v2269, %v106
    %2271 = vmatprep.subr.mxu0 0.0
    %2272 = vmatpush1.msra.mxu0 0.0
    %2273 = vmatprep.subr.mxu0 0.0
    %2274 = vmatpush1.msra.mxu0 0.0
    %2275 = vmatprep.subr.mxu0 0.0
    %2276 = vmatpush1.msra.mxu0 0.0
    %2277 = vmatprep.subr.mxu0 0.0
    %2278 = vmatpush1.msra.mxu0 0.0
    %2279 = vmatprep.subr.mxu0 0.0
    %2280 = vmatpush1.msra.mxu0 0.0
    %2281 = vmatprep.subr.mxu0 0.0
    %2282 = vmatpush1.msra.mxu0 0.0
    %2283 = vmatprep.subr.mxu0 0.0
    %2284 = vmatpush1.msra.mxu0 0.0
    %2285 = vmatprep.subr.mxu0 0.0
    %2286 = vmatpush1.msra.mxu0 0.0
    %2287 = vmatprep.subr.mxu0 0.0
    %2288 = vmatpush1.msra.mxu0 0.0
    %2289 = vmatprep.subr.mxu0 0.0
    %2290 = vmatpush1.msra.mxu0 0.0
    %2291 = vmatprep.subr.mxu0 0.0
    %2292 = vmatpush1.msra.mxu0 0.0
    %2293 = vmatprep.subr.mxu0 0.0
    %2294 = vmatpush1.msra.mxu0 0.0
    %2295 = vmatprep.subr.mxu0 0.0
    %2296 = vmatpush1.msra.mxu0 %v112
    %2297 = vmatprep.subr.mxu0 0.0
    %2298 = vmatpush1.msra.mxu0 %v111
    %2299 = vmatprep.subr.mxu0 0.0
    %2300 = vmatpush1.msra.mxu0 %v110
    %2301 = vmatprep.subr.mxu0 0.0
    %2302 = vmatpush1.msra.mxu0 %v109
    %2303 = vmatprep.subr.mxu0 0.0
    %2304 = vmatpush2.msra.mxu0 0.0
    %2305 = vmatprep.subr.mxu0 0.0
    %2306 = vmatpush2.msra.mxu0 0.0
    %2307 = vmatprep.subr.mxu0 0.0
    %2308 = vmatpush2.msra.mxu0 0.0
    %2309 = vmatprep.subr.mxu0 0.0
    %2310 = vmatpush2.msra.mxu0 0.0
    %2311 = vmatprep.subr.mxu0 0.0
    %2312 = vmatpush2.msra.mxu0 0.0
    %2313 = vmatprep.subr.mxu0 0.0
    %2314 = vmatpush2.msra.mxu0 0.0
    %2315 = vmatprep.subr.mxu0 0.0
    %2316 = vmatpush2.msra.mxu0 0.0
    %2317 = vmatprep.subr.mxu0 0.0
    %2318 = vmatpush2.msra.mxu0 0.0
    %2319 = vmatprep.subr.mxu0 0.0
    %2320 = vmatpush2.msra.mxu0 0.0
    %2321 = vmatprep.subr.mxu0 0.0
    %2322 = vmatpush2.msra.mxu0 0.0
    %2323 = vmatprep.subr.mxu0 0.0
    %2324 = vmatpush2.msra.mxu0 0.0
    %2325 = vmatprep.subr.mxu0 0.0
    %2326 = vmatpush2.msra.mxu0 0.0
    %2327 = vmatprep.subr.mxu0 0.0
    %2328 = vmatpush2.msra.mxu0 0.0
    %2329 = vmatprep.subr.mxu0 0.0
    %2330 = vmatpush2.msra.mxu0 0.0
    %2331 = vmatprep.subr.mxu0 0.0
    %2332 = vmatpush2.msra.mxu0 0.0
    %2333 = vmatprep.subr.mxu0 0.0
    %2334 = vmatpush2.msra.mxu0 0.0
    %2335 = vmatprep.mubr.f32.mxu0 0.0
    %2336 = vmatmul.mubr.f32.gmra.mxu0 %v2172
    %v2337 = vpop.f32.mrf.mxu0
    %v2338 = vadd.f32 0.0, %v2337
    %v2339 = vpop.f32.mrf.mxu0
    %2340 = vdwg.mxu0
    %v2341 = vadd.f32 %v2270, %v2338
    %v2342 = vtanh.pop %v2341
    %v2343 = vmul.f32 %v2342, 0.5
    %v2344 = vadd.f32 %v2343, 0.5
    %v2345 = vmul.f32 %v2344, %v2087
    %2347 = vrot.lane.b32.xlu0 %v2342, 32
    %v2348 = vpop.permute.xlu0 %2347
    %v2350 = vmul.f32 %v2344, %v2348
    %2352 = vrot.lane.b32.xlu0 %v2350, 32
    %v2353 = vpop.permute.xlu0 %2352
    %v2355 = vadd.f32 %v2345, %v2353
    %v2356 = vtanh.pop %v2355
    %2358 = vrot.lane.b32.xlu0 %v2356, 32
    %v2359 = vpop.permute.xlu0 %2358
    %v2361 = vmul.f32 %v2344, %v2359
    %2363 = vrot.lane.b32.xlu0 %v2264, 64
    %v2364 = vpop.permute.xlu0 %2363
    %v2365 = vsel %vm113, %v2364, 0
    %2367 = vmatprep.subr.mxu0 0.0
    %2368 = vmatpush1.msra.mxu0 0.0
    %2369 = vmatprep.subr.mxu0 0.0
    %2370 = vmatpush1.msra.mxu0 0.0
    %2371 = vmatprep.subr.mxu0 0.0
    %2372 = vmatpush1.msra.mxu0 0.0
    %2373 = vmatprep.subr.mxu0 0.0
    %2374 = vmatpush1.msra.mxu0 0.0
    %2375 = vmatprep.subr.mxu0 0.0
    %2376 = vmatpush1.msra.mxu0 0.0
    %2377 = vmatprep.subr.mxu0 0.0
    %2378 = vmatpush1.msra.mxu0 0.0
    %2379 = vmatprep.subr.mxu0 0.0
    %2380 = vmatpush1.msra.mxu0 0.0
    %2381 = vmatprep.subr.mxu0 0.0
    %2382 = vmatpush1.msra.mxu0 0.0
    %2383 = vmatprep.subr.mxu0 0.0
    %2384 = vmatpush1.msra.mxu0 0.0
    %2385 = vmatprep.subr.mxu0 0.0
    %2386 = vmatpush1.msra.mxu0 0.0
    %2387 = vmatprep.subr.mxu0 0.0
    %2388 = vmatpush1.msra.mxu0 0.0
    %2389 = vmatprep.subr.mxu0 0.0
    %2390 = vmatpush1.msra.mxu0 0.0
    %2391 = vmatprep.subr.mxu0 0.0
    %2392 = vmatpush1.msra.mxu0 %v215
    %2393 = vmatprep.subr.mxu0 0.0
    %2394 = vmatpush1.msra.mxu0 %v214
    %2395 = vmatprep.subr.mxu0 0.0
    %2396 = vmatpush1.msra.mxu0 %v213
    %2397 = vmatprep.subr.mxu0 0.0
    %2398 = vmatpush1.msra.mxu0 %v212
    %2399 = vmatprep.subr.mxu0 0.0
    %2400 = vmatpush2.msra.mxu0 0.0
    %2401 = vmatprep.subr.mxu0 0.0
    %2402 = vmatpush2.msra.mxu0 0.0
    %2403 = vmatprep.subr.mxu0 0.0
    %2404 = vmatpush2.msra.mxu0 0.0
    %2405 = vmatprep.subr.mxu0 0.0
    %2406 = vmatpush2.msra.mxu0 0.0
    %2407 = vmatprep.subr.mxu0 0.0
    %2408 = vmatpush2.msra.mxu0 0.0
    %2409 = vmatprep.subr.mxu0 0.0
    %2410 = vmatpush2.msra.mxu0 0.0
    %2411 = vmatprep.subr.mxu0 0.0
    %2412 = vmatpush2.msra.mxu0 0.0
    %2413 = vmatprep.subr.mxu0 0.0
    %2414 = vmatpush2.msra.mxu0 0.0
    %2415 = vmatprep.subr.mxu0 0.0
    %2416 = vmatpush2.msra.mxu0 0.0
    %2417 = vmatprep.subr.mxu0 0.0
    %2418 = vmatpush2.msra.mxu0 0.0
    %2419 = vmatprep.subr.mxu0 0.0
    %2420 = vmatpush2.msra.mxu0 0.0
    %2421 = vmatprep.subr.mxu0 0.0
    %2422 = vmatpush2.msra.mxu0 0.0
    %2423 = vmatprep.subr.mxu0 0.0
    %2424 = vmatpush2.msra.mxu0 0.0
    %2425 = vmatprep.subr.mxu0 0.0
    %2426 = vmatpush2.msra.mxu0 0.0
    %2427 = vmatprep.subr.mxu0 0.0
    %2428 = vmatpush2.msra.mxu0 0.0
    %2429 = vmatprep.subr.mxu0 0.0
    %2430 = vmatpush2.msra.mxu0 0.0
    %2431 = vmatprep.mubr.f32.mxu0 0.0
    %2432 = vmatmul.mubr.f32.gmra.mxu0 %v2365
    %v2433 = vpop.f32.mrf.mxu0
    %v2434 = vadd.f32 0.0, %v2433
    %v2435 = vpop.f32.mrf.mxu0
    %2436 = vdwg.mxu0
    %2438 = vrot.lane.b32.xlu0 %v2361, 64
    %v2439 = vpop.permute.xlu0 %2438
    %v2440 = vsel %vm113, %v2439, 0
    %2442 = vmatprep.subr.mxu0 0.0
    %2443 = vmatpush1.msra.mxu0 0.0
    %2444 = vmatprep.subr.mxu0 0.0
    %2445 = vmatpush1.msra.mxu0 0.0
    %2446 = vmatprep.subr.mxu0 0.0
    %2447 = vmatpush1.msra.mxu0 0.0
    %2448 = vmatprep.subr.mxu0 0.0
    %2449 = vmatpush1.msra.mxu0 0.0
    %2450 = vmatprep.subr.mxu0 0.0
    %2451 = vmatpush1.msra.mxu0 0.0
    %2452 = vmatprep.subr.mxu0 0.0
    %2453 = vmatpush1.msra.mxu0 0.0
    %2454 = vmatprep.subr.mxu0 0.0
    %2455 = vmatpush1.msra.mxu0 0.0
    %2456 = vmatprep.subr.mxu0 0.0
    %2457 = vmatpush1.msra.mxu0 0.0
    %2458 = vmatprep.subr.mxu0 0.0
    %2459 = vmatpush1.msra.mxu0 0.0
    %2460 = vmatprep.subr.mxu0 0.0
    %2461 = vmatpush1.msra.mxu0 0.0
    %2462 = vmatprep.subr.mxu0 0.0
    %2463 = vmatpush1.msra.mxu0 0.0
    %2464 = vmatprep.subr.mxu0 0.0
    %2465 = vmatpush1.msra.mxu0 0.0
    %2466 = vmatprep.subr.mxu0 0.0
    %2467 = vmatpush1.msra.mxu0 %v211
    %2468 = vmatprep.subr.mxu0 0.0
    %2469 = vmatpush1.msra.mxu0 %v210
    %2470 = vmatprep.subr.mxu0 0.0
    %2471 = vmatpush1.msra.mxu0 %v209
    %2472 = vmatprep.subr.mxu0 0.0
    %2473 = vmatpush1.msra.mxu0 %v208
    %2474 = vmatprep.subr.mxu0 0.0
    %2475 = vmatpush2.msra.mxu0 0.0
    %2476 = vmatprep.subr.mxu0 0.0
    %2477 = vmatpush2.msra.mxu0 0.0
    %2478 = vmatprep.subr.mxu0 0.0
    %2479 = vmatpush2.msra.mxu0 0.0
    %2480 = vmatprep.subr.mxu0 0.0
    %2481 = vmatpush2.msra.mxu0 0.0
    %2482 = vmatprep.subr.mxu0 0.0
    %2483 = vmatpush2.msra.mxu0 0.0
    %2484 = vmatprep.subr.mxu0 0.0
    %2485 = vmatpush2.msra.mxu0 0.0
    %2486 = vmatprep.subr.mxu0 0.0
    %2487 = vmatpush2.msra.mxu0 0.0
    %2488 = vmatprep.subr.mxu0 0.0
    %2489 = vmatpush2.msra.mxu0 0.0
    %2490 = vmatprep.subr.mxu0 0.0
    %2491 = vmatpush2.msra.mxu0 0.0
    %2492 = vmatprep.subr.mxu0 0.0
    %2493 = vmatpush2.msra.mxu0 0.0
    %2494 = vmatprep.subr.mxu0 0.0
    %2495 = vmatpush2.msra.mxu0 0.0
    %2496 = vmatprep.subr.mxu0 0.0
    %2497 = vmatpush2.msra.mxu0 0.0
    %2498 = vmatprep.subr.mxu0 0.0
    %2499 = vmatpush2.msra.mxu0 0.0
    %2500 = vmatprep.subr.mxu0 0.0
    %2501 = vmatpush2.msra.mxu0 0.0
    %2502 = vmatprep.subr.mxu0 0.0
    %2503 = vmatpush2.msra.mxu0 0.0
    %2504 = vmatprep.subr.mxu0 0.0
    %2505 = vmatpush2.msra.mxu0 0.0
    %2506 = vmatprep.mubr.f32.mxu0 0.0
    %2507 = vmatmul.mubr.f32.gmra.mxu0 %v2440
    %v2508 = vpop.f32.mrf.mxu0
    %v2509 = vadd.f32 %v2434, %v2508
    %v2510 = vpop.f32.mrf.mxu0
    %2511 = vdwg.mxu0
    %v2512 = vadd.f32 %v2509, %v366
    %v2513 = vtanh.pop %v2512
    %v2514 = vmul.f32 %v2513, 0.5
    %v2515 = vadd.f32 %v2514, 0.5
    %v2516 = vmul.f32 %v2515, %v2258
    %2518 = vrot.lane.b32.xlu0 %v2513, 32
    %v2519 = vpop.permute.xlu0 %2518
    %v2521 = vmul.f32 %v2515, %v2519
    %2523 = vrot.lane.b32.xlu0 %v2521, 32
    %v2524 = vpop.permute.xlu0 %2523
    %v2526 = vadd.f32 %v2516, %v2524
    %v2527 = vtanh.pop %v2526
    %2529 = vrot.lane.b32.xlu0 %v2527, 32
    %v2530 = vpop.permute.xlu0 %2529
    %v2532 = vmul.f32 %v2515, %v2530
    %2533 = vset.pattern.permute.xlu0 9
    %2534 = vperm.xlu0 %2533, %v87
    %v2535 = vpop.permute.xlu0 %2534
    %v2537 = vmul.f32 %v2535, %v98
    %v2538 = vadd.f32 %v2537, %v106
    %2539 = vmatprep.subr.mxu0 0.0
    %2540 = vmatpush1.msra.mxu0 0.0
    %2541 = vmatprep.subr.mxu0 0.0
    %2542 = vmatpush1.msra.mxu0 0.0
    %2543 = vmatprep.subr.mxu0 0.0
    %2544 = vmatpush1.msra.mxu0 0.0
    %2545 = vmatprep.subr.mxu0 0.0
    %2546 = vmatpush1.msra.mxu0 0.0
    %2547 = vmatprep.subr.mxu0 0.0
    %2548 = vmatpush1.msra.mxu0 0.0
    %2549 = vmatprep.subr.mxu0 0.0
    %2550 = vmatpush1.msra.mxu0 0.0
    %2551 = vmatprep.subr.mxu0 0.0
    %2552 = vmatpush1.msra.mxu0 0.0
    %2553 = vmatprep.subr.mxu0 0.0
    %2554 = vmatpush1.msra.mxu0 0.0
    %2555 = vmatprep.subr.mxu0 0.0
    %2556 = vmatpush1.msra.mxu0 0.0
    %2557 = vmatprep.subr.mxu0 0.0
    %2558 = vmatpush1.msra.mxu0 0.0
    %2559 = vmatprep.subr.mxu0 0.0
    %2560 = vmatpush1.msra.mxu0 0.0
    %2561 = vmatprep.subr.mxu0 0.0
    %2562 = vmatpush1.msra.mxu0 0.0
    %2563 = vmatprep.subr.mxu0 0.0
    %2564 = vmatpush1.msra.mxu0 %v112
    %2565 = vmatprep.subr.mxu0 0.0
    %2566 = vmatpush1.msra.mxu0 %v111
    %2567 = vmatprep.subr.mxu0 0.0
    %2568 = vmatpush1.msra.mxu0 %v110
    %2569 = vmatprep.subr.mxu0 0.0
    %2570 = vmatpush1.msra.mxu0 %v109
    %2571 = vmatprep.subr.mxu0 0.0
    %2572 = vmatpush2.msra.mxu0 0.0
    %2573 = vmatprep.subr.mxu0 0.0
    %2574 = vmatpush2.msra.mxu0 0.0
    %2575 = vmatprep.subr.mxu0 0.0
    %2576 = vmatpush2.msra.mxu0 0.0
    %2577 = vmatprep.subr.mxu0 0.0
    %2578 = vmatpush2.msra.mxu0 0.0
    %2579 = vmatprep.subr.mxu0 0.0
    %2580 = vmatpush2.msra.mxu0 0.0
    %2581 = vmatprep.subr.mxu0 0.0
    %2582 = vmatpush2.msra.mxu0 0.0
    %2583 = vmatprep.subr.mxu0 0.0
    %2584 = vmatpush2.msra.mxu0 0.0
    %2585 = vmatprep.subr.mxu0 0.0
    %2586 = vmatpush2.msra.mxu0 0.0
    %2587 = vmatprep.subr.mxu0 0.0
    %2588 = vmatpush2.msra.mxu0 0.0
    %2589 = vmatprep.subr.mxu0 0.0
    %2590 = vmatpush2.msra.mxu0 0.0
    %2591 = vmatprep.subr.mxu0 0.0
    %2592 = vmatpush2.msra.mxu0 0.0
    %2593 = vmatprep.subr.mxu0 0.0
    %2594 = vmatpush2.msra.mxu0 0.0
    %2595 = vmatprep.subr.mxu0 0.0
    %2596 = vmatpush2.msra.mxu0 0.0
    %2597 = vmatprep.subr.mxu0 0.0
    %2598 = vmatpush2.msra.mxu0 0.0
    %2599 = vmatprep.subr.mxu0 0.0
    %2600 = vmatpush2.msra.mxu0 0.0
    %2601 = vmatprep.subr.mxu0 0.0
    %2602 = vmatpush2.msra.mxu0 0.0
    %2603 = vmatprep.mubr.f32.mxu0 0.0
    %2604 = vmatmul.mubr.f32.gmra.mxu0 %v2440
    %v2605 = vpop.f32.mrf.mxu0
    %v2606 = vadd.f32 0.0, %v2605
    %v2607 = vpop.f32.mrf.mxu0
    %2608 = vdwg.mxu0
    %v2609 = vadd.f32 %v2538, %v2606
    %v2610 = vtanh.pop %v2609
    %v2611 = vmul.f32 %v2610, 0.5
    %v2612 = vadd.f32 %v2611, 0.5
    %v2613 = vmul.f32 %v2612, %v2355
    %2615 = vrot.lane.b32.xlu0 %v2610, 32
    %v2616 = vpop.permute.xlu0 %2615
    %v2618 = vmul.f32 %v2612, %v2616
    %2620 = vrot.lane.b32.xlu0 %v2618, 32
    %v2621 = vpop.permute.xlu0 %2620
    %v2623 = vadd.f32 %v2613, %v2621
    %v2624 = vtanh.pop %v2623
    %2626 = vrot.lane.b32.xlu0 %v2624, 32
    %v2627 = vpop.permute.xlu0 %2626
    %v2629 = vmul.f32 %v2612, %v2627
    %2631 = vrot.lane.b32.xlu0 %v2532, 64
    %v2632 = vpop.permute.xlu0 %2631
    %v2633 = vsel %vm113, %v2632, 0
    %2635 = vmatprep.subr.mxu0 0.0
    %2636 = vmatpush1.msra.mxu0 0.0
    %2637 = vmatprep.subr.mxu0 0.0
    %2638 = vmatpush1.msra.mxu0 0.0
    %2639 = vmatprep.subr.mxu0 0.0
    %2640 = vmatpush1.msra.mxu0 0.0
    %2641 = vmatprep.subr.mxu0 0.0
    %2642 = vmatpush1.msra.mxu0 0.0
    %2643 = vmatprep.subr.mxu0 0.0
    %2644 = vmatpush1.msra.mxu0 0.0
    %2645 = vmatprep.subr.mxu0 0.0
    %2646 = vmatpush1.msra.mxu0 0.0
    %2647 = vmatprep.subr.mxu0 0.0
    %2648 = vmatpush1.msra.mxu0 0.0
    %2649 = vmatprep.subr.mxu0 0.0
    %2650 = vmatpush1.msra.mxu0 0.0
    %2651 = vmatprep.subr.mxu0 0.0
    %2652 = vmatpush1.msra.mxu0 0.0
    %2653 = vmatprep.subr.mxu0 0.0
    %2654 = vmatpush1.msra.mxu0 0.0
    %2655 = vmatprep.subr.mxu0 0.0
    %2656 = vmatpush1.msra.mxu0 0.0
    %2657 = vmatprep.subr.mxu0 0.0
    %2658 = vmatpush1.msra.mxu0 0.0
    %2659 = vmatprep.subr.mxu0 0.0
    %2660 = vmatpush1.msra.mxu0 %v215
    %2661 = vmatprep.subr.mxu0 0.0
    %2662 = vmatpush1.msra.mxu0 %v214
    %2663 = vmatprep.subr.mxu0 0.0
    %2664 = vmatpush1.msra.mxu0 %v213
    %2665 = vmatprep.subr.mxu0 0.0
    %2666 = vmatpush1.msra.mxu0 %v212
    %2667 = vmatprep.subr.mxu0 0.0
    %2668 = vmatpush2.msra.mxu0 0.0
    %2669 = vmatprep.subr.mxu0 0.0
    %2670 = vmatpush2.msra.mxu0 0.0
    %2671 = vmatprep.subr.mxu0 0.0
    %2672 = vmatpush2.msra.mxu0 0.0
    %2673 = vmatprep.subr.mxu0 0.0
    %2674 = vmatpush2.msra.mxu0 0.0
    %2675 = vmatprep.subr.mxu0 0.0
    %2676 = vmatpush2.msra.mxu0 0.0
    %2677 = vmatprep.subr.mxu0 0.0
    %2678 = vmatpush2.msra.mxu0 0.0
    %2679 = vmatprep.subr.mxu0 0.0
    %2680 = vmatpush2.msra.mxu0 0.0
    %2681 = vmatprep.subr.mxu0 0.0
    %2682 = vmatpush2.msra.mxu0 0.0
    %2683 = vmatprep.subr.mxu0 0.0
    %2684 = vmatpush2.msra.mxu0 0.0
    %2685 = vmatprep.subr.mxu0 0.0
    %2686 = vmatpush2.msra.mxu0 0.0
    %2687 = vmatprep.subr.mxu0 0.0
    %2688 = vmatpush2.msra.mxu0 0.0
    %2689 = vmatprep.subr.mxu0 0.0
    %2690 = vmatpush2.msra.mxu0 0.0
    %2691 = vmatprep.subr.mxu0 0.0
    %2692 = vmatpush2.msra.mxu0 0.0
    %2693 = vmatprep.subr.mxu0 0.0
    %2694 = vmatpush2.msra.mxu0 0.0
    %2695 = vmatprep.subr.mxu0 0.0
    %2696 = vmatpush2.msra.mxu0 0.0
    %2697 = vmatprep.subr.mxu0 0.0
    %2698 = vmatpush2.msra.mxu0 0.0
    %2699 = vmatprep.mubr.f32.mxu0 0.0
    %2700 = vmatmul.mubr.f32.gmra.mxu0 %v2633
    %v2701 = vpop.f32.mrf.mxu0
    %v2702 = vadd.f32 0.0, %v2701
    %v2703 = vpop.f32.mrf.mxu0
    %2704 = vdwg.mxu0
    %2706 = vrot.lane.b32.xlu0 %v2629, 64
    %v2707 = vpop.permute.xlu0 %2706
    %v2708 = vsel %vm113, %v2707, 0
    %2710 = vmatprep.subr.mxu0 0.0
    %2711 = vmatpush1.msra.mxu0 0.0
    %2712 = vmatprep.subr.mxu0 0.0
    %2713 = vmatpush1.msra.mxu0 0.0
    %2714 = vmatprep.subr.mxu0 0.0
    %2715 = vmatpush1.msra.mxu0 0.0
    %2716 = vmatprep.subr.mxu0 0.0
    %2717 = vmatpush1.msra.mxu0 0.0
    %2718 = vmatprep.subr.mxu0 0.0
    %2719 = vmatpush1.msra.mxu0 0.0
    %2720 = vmatprep.subr.mxu0 0.0
    %2721 = vmatpush1.msra.mxu0 0.0
    %2722 = vmatprep.subr.mxu0 0.0
    %2723 = vmatpush1.msra.mxu0 0.0
    %2724 = vmatprep.subr.mxu0 0.0
    %2725 = vmatpush1.msra.mxu0 0.0
    %2726 = vmatprep.subr.mxu0 0.0
    %2727 = vmatpush1.msra.mxu0 0.0
    %2728 = vmatprep.subr.mxu0 0.0
    %2729 = vmatpush1.msra.mxu0 0.0
    %2730 = vmatprep.subr.mxu0 0.0
    %2731 = vmatpush1.msra.mxu0 0.0
    %2732 = vmatprep.subr.mxu0 0.0
    %2733 = vmatpush1.msra.mxu0 0.0
    %2734 = vmatprep.subr.mxu0 0.0
    %2735 = vmatpush1.msra.mxu0 %v211
    %2736 = vmatprep.subr.mxu0 0.0
    %2737 = vmatpush1.msra.mxu0 %v210
    %2738 = vmatprep.subr.mxu0 0.0
    %2739 = vmatpush1.msra.mxu0 %v209
    %2740 = vmatprep.subr.mxu0 0.0
    %2741 = vmatpush1.msra.mxu0 %v208
    %2742 = vmatprep.subr.mxu0 0.0
    %2743 = vmatpush2.msra.mxu0 0.0
    %2744 = vmatprep.subr.mxu0 0.0
    %2745 = vmatpush2.msra.mxu0 0.0
    %2746 = vmatprep.subr.mxu0 0.0
    %2747 = vmatpush2.msra.mxu0 0.0
    %2748 = vmatprep.subr.mxu0 0.0
    %2749 = vmatpush2.msra.mxu0 0.0
    %2750 = vmatprep.subr.mxu0 0.0
    %2751 = vmatpush2.msra.mxu0 0.0
    %2752 = vmatprep.subr.mxu0 0.0
    %2753 = vmatpush2.msra.mxu0 0.0
    %2754 = vmatprep.subr.mxu0 0.0
    %2755 = vmatpush2.msra.mxu0 0.0
    %2756 = vmatprep.subr.mxu0 0.0
    %2757 = vmatpush2.msra.mxu0 0.0
    %2758 = vmatprep.subr.mxu0 0.0
    %2759 = vmatpush2.msra.mxu0 0.0
    %2760 = vmatprep.subr.mxu0 0.0
    %2761 = vmatpush2.msra.mxu0 0.0
    %2762 = vmatprep.subr.mxu0 0.0
    %2763 = vmatpush2.msra.mxu0 0.0
    %2764 = vmatprep.subr.mxu0 0.0
    %2765 = vmatpush2.msra.mxu0 0.0
    %2766 = vmatprep.subr.mxu0 0.0
    %2767 = vmatpush2.msra.mxu0 0.0
    %2768 = vmatprep.subr.mxu0 0.0
    %2769 = vmatpush2.msra.mxu0 0.0
    %2770 = vmatprep.subr.mxu0 0.0
    %2771 = vmatpush2.msra.mxu0 0.0
    %2772 = vmatprep.subr.mxu0 0.0
    %2773 = vmatpush2.msra.mxu0 0.0
    %2774 = vmatprep.mubr.f32.mxu0 0.0
    %2775 = vmatmul.mubr.f32.gmra.mxu0 %v2708
    %v2776 = vpop.f32.mrf.mxu0
    %v2777 = vadd.f32 %v2702, %v2776
    %v2778 = vpop.f32.mrf.mxu0
    %2779 = vdwg.mxu0
    %v2780 = vadd.f32 %v2777, %v366
    %v2781 = vtanh.pop %v2780
    %v2782 = vmul.f32 %v2781, 0.5
    %v2783 = vadd.f32 %v2782, 0.5
    %v2784 = vmul.f32 %v2783, %v2526
    %2786 = vrot.lane.b32.xlu0 %v2781, 32
    %v2787 = vpop.permute.xlu0 %2786
    %v2789 = vmul.f32 %v2783, %v2787
    %2791 = vrot.lane.b32.xlu0 %v2789, 32
    %v2792 = vpop.permute.xlu0 %2791
    %v2794 = vadd.f32 %v2784, %v2792
    %v2795 = vtanh.pop %v2794
    %2797 = vrot.lane.b32.xlu0 %v2795, 32
    %v2798 = vpop.permute.xlu0 %2797
    %v2800 = vmul.f32 %v2783, %v2798
    %2801 = vset.pattern.permute.xlu0 10
    %2802 = vperm.xlu0 %2801, %v87
    %v2803 = vpop.permute.xlu0 %2802
    %v2805 = vmul.f32 %v2803, %v98
    %v2806 = vadd.f32 %v2805, %v106
    %2807 = vmatprep.subr.mxu0 0.0
    %2808 = vmatpush1.msra.mxu0 0.0
    %2809 = vmatprep.subr.mxu0 0.0
    %2810 = vmatpush1.msra.mxu0 0.0
    %2811 = vmatprep.subr.mxu0 0.0
    %2812 = vmatpush1.msra.mxu0 0.0
    %2813 = vmatprep.subr.mxu0 0.0
    %2814 = vmatpush1.msra.mxu0 0.0
    %2815 = vmatprep.subr.mxu0 0.0
    %2816 = vmatpush1.msra.mxu0 0.0
    %2817 = vmatprep.subr.mxu0 0.0
    %2818 = vmatpush1.msra.mxu0 0.0
    %2819 = vmatprep.subr.mxu0 0.0
    %2820 = vmatpush1.msra.mxu0 0.0
    %2821 = vmatprep.subr.mxu0 0.0
    %2822 = vmatpush1.msra.mxu0 0.0
    %2823 = vmatprep.subr.mxu0 0.0
    %2824 = vmatpush1.msra.mxu0 0.0
    %2825 = vmatprep.subr.mxu0 0.0
    %2826 = vmatpush1.msra.mxu0 0.0
    %2827 = vmatprep.subr.mxu0 0.0
    %2828 = vmatpush1.msra.mxu0 0.0
    %2829 = vmatprep.subr.mxu0 0.0
    %2830 = vmatpush1.msra.mxu0 0.0
    %2831 = vmatprep.subr.mxu0 0.0
    %2832 = vmatpush1.msra.mxu0 %v112
    %2833 = vmatprep.subr.mxu0 0.0
    %2834 = vmatpush1.msra.mxu0 %v111
    %2835 = vmatprep.subr.mxu0 0.0
    %2836 = vmatpush1.msra.mxu0 %v110
    %2837 = vmatprep.subr.mxu0 0.0
    %2838 = vmatpush1.msra.mxu0 %v109
    %2839 = vmatprep.subr.mxu0 0.0
    %2840 = vmatpush2.msra.mxu0 0.0
    %2841 = vmatprep.subr.mxu0 0.0
    %2842 = vmatpush2.msra.mxu0 0.0
    %2843 = vmatprep.subr.mxu0 0.0
    %2844 = vmatpush2.msra.mxu0 0.0
    %2845 = vmatprep.subr.mxu0 0.0
    %2846 = vmatpush2.msra.mxu0 0.0
    %2847 = vmatprep.subr.mxu0 0.0
    %2848 = vmatpush2.msra.mxu0 0.0
    %2849 = vmatprep.subr.mxu0 0.0
    %2850 = vmatpush2.msra.mxu0 0.0
    %2851 = vmatprep.subr.mxu0 0.0
    %2852 = vmatpush2.msra.mxu0 0.0
    %2853 = vmatprep.subr.mxu0 0.0
    %2854 = vmatpush2.msra.mxu0 0.0
    %2855 = vmatprep.subr.mxu0 0.0
    %2856 = vmatpush2.msra.mxu0 0.0
    %2857 = vmatprep.subr.mxu0 0.0
    %2858 = vmatpush2.msra.mxu0 0.0
    %2859 = vmatprep.subr.mxu0 0.0
    %2860 = vmatpush2.msra.mxu0 0.0
    %2861 = vmatprep.subr.mxu0 0.0
    %2862 = vmatpush2.msra.mxu0 0.0
    %2863 = vmatprep.subr.mxu0 0.0
    %2864 = vmatpush2.msra.mxu0 0.0
    %2865 = vmatprep.subr.mxu0 0.0
    %2866 = vmatpush2.msra.mxu0 0.0
    %2867 = vmatprep.subr.mxu0 0.0
    %2868 = vmatpush2.msra.mxu0 0.0
    %2869 = vmatprep.subr.mxu0 0.0
    %2870 = vmatpush2.msra.mxu0 0.0
    %2871 = vmatprep.mubr.f32.mxu0 0.0
    %2872 = vmatmul.mubr.f32.gmra.mxu0 %v2708
    %v2873 = vpop.f32.mrf.mxu0
    %v2874 = vadd.f32 0.0, %v2873
    %v2875 = vpop.f32.mrf.mxu0
    %2876 = vdwg.mxu0
    %v2877 = vadd.f32 %v2806, %v2874
    %v2878 = vtanh.pop %v2877
    %v2879 = vmul.f32 %v2878, 0.5
    %v2880 = vadd.f32 %v2879, 0.5
    %v2881 = vmul.f32 %v2880, %v2623
    %2883 = vrot.lane.b32.xlu0 %v2878, 32
    %v2884 = vpop.permute.xlu0 %2883
    %v2886 = vmul.f32 %v2880, %v2884
    %2888 = vrot.lane.b32.xlu0 %v2886, 32
    %v2889 = vpop.permute.xlu0 %2888
    %v2891 = vadd.f32 %v2881, %v2889
    %v2892 = vtanh.pop %v2891
    %2894 = vrot.lane.b32.xlu0 %v2892, 32
    %v2895 = vpop.permute.xlu0 %2894
    %v2897 = vmul.f32 %v2880, %v2895
    %2899 = vrot.lane.b32.xlu0 %v2800, 64
    %v2900 = vpop.permute.xlu0 %2899
    %v2901 = vsel %vm113, %v2900, 0
    %2903 = vmatprep.subr.mxu0 0.0
    %2904 = vmatpush1.msra.mxu0 0.0
    %2905 = vmatprep.subr.mxu0 0.0
    %2906 = vmatpush1.msra.mxu0 0.0
    %2907 = vmatprep.subr.mxu0 0.0
    %2908 = vmatpush1.msra.mxu0 0.0
    %2909 = vmatprep.subr.mxu0 0.0
    %2910 = vmatpush1.msra.mxu0 0.0
    %2911 = vmatprep.subr.mxu0 0.0
    %2912 = vmatpush1.msra.mxu0 0.0
    %2913 = vmatprep.subr.mxu0 0.0
    %2914 = vmatpush1.msra.mxu0 0.0
    %2915 = vmatprep.subr.mxu0 0.0
    %2916 = vmatpush1.msra.mxu0 0.0
    %2917 = vmatprep.subr.mxu0 0.0
    %2918 = vmatpush1.msra.mxu0 0.0
    %2919 = vmatprep.subr.mxu0 0.0
    %2920 = vmatpush1.msra.mxu0 0.0
    %2921 = vmatprep.subr.mxu0 0.0
    %2922 = vmatpush1.msra.mxu0 0.0
    %2923 = vmatprep.subr.mxu0 0.0
    %2924 = vmatpush1.msra.mxu0 0.0
    %2925 = vmatprep.subr.mxu0 0.0
    %2926 = vmatpush1.msra.mxu0 0.0
    %2927 = vmatprep.subr.mxu0 0.0
    %2928 = vmatpush1.msra.mxu0 %v215
    %2929 = vmatprep.subr.mxu0 0.0
    %2930 = vmatpush1.msra.mxu0 %v214
    %2931 = vmatprep.subr.mxu0 0.0
    %2932 = vmatpush1.msra.mxu0 %v213
    %2933 = vmatprep.subr.mxu0 0.0
    %2934 = vmatpush1.msra.mxu0 %v212
    %2935 = vmatprep.subr.mxu0 0.0
    %2936 = vmatpush2.msra.mxu0 0.0
    %2937 = vmatprep.subr.mxu0 0.0
    %2938 = vmatpush2.msra.mxu0 0.0
    %2939 = vmatprep.subr.mxu0 0.0
    %2940 = vmatpush2.msra.mxu0 0.0
    %2941 = vmatprep.subr.mxu0 0.0
    %2942 = vmatpush2.msra.mxu0 0.0
    %2943 = vmatprep.subr.mxu0 0.0
    %2944 = vmatpush2.msra.mxu0 0.0
    %2945 = vmatprep.subr.mxu0 0.0
    %2946 = vmatpush2.msra.mxu0 0.0
    %2947 = vmatprep.subr.mxu0 0.0
    %2948 = vmatpush2.msra.mxu0 0.0
    %2949 = vmatprep.subr.mxu0 0.0
    %2950 = vmatpush2.msra.mxu0 0.0
    %2951 = vmatprep.subr.mxu0 0.0
    %2952 = vmatpush2.msra.mxu0 0.0
    %2953 = vmatprep.subr.mxu0 0.0
    %2954 = vmatpush2.msra.mxu0 0.0
    %2955 = vmatprep.subr.mxu0 0.0
    %2956 = vmatpush2.msra.mxu0 0.0
    %2957 = vmatprep.subr.mxu0 0.0
    %2958 = vmatpush2.msra.mxu0 0.0
    %2959 = vmatprep.subr.mxu0 0.0
    %2960 = vmatpush2.msra.mxu0 0.0
    %2961 = vmatprep.subr.mxu0 0.0
    %2962 = vmatpush2.msra.mxu0 0.0
    %2963 = vmatprep.subr.mxu0 0.0
    %2964 = vmatpush2.msra.mxu0 0.0
    %2965 = vmatprep.subr.mxu0 0.0
    %2966 = vmatpush2.msra.mxu0 0.0
    %2967 = vmatprep.mubr.f32.mxu0 0.0
    %2968 = vmatmul.mubr.f32.gmra.mxu0 %v2901
    %v2969 = vpop.f32.mrf.mxu0
    %v2970 = vadd.f32 0.0, %v2969
    %v2971 = vpop.f32.mrf.mxu0
    %2972 = vdwg.mxu0
    %2974 = vrot.lane.b32.xlu0 %v2897, 64
    %v2975 = vpop.permute.xlu0 %2974
    %v2976 = vsel %vm113, %v2975, 0
    %2978 = vmatprep.subr.mxu0 0.0
    %2979 = vmatpush1.msra.mxu0 0.0
    %2980 = vmatprep.subr.mxu0 0.0
    %2981 = vmatpush1.msra.mxu0 0.0
    %2982 = vmatprep.subr.mxu0 0.0
    %2983 = vmatpush1.msra.mxu0 0.0
    %2984 = vmatprep.subr.mxu0 0.0
    %2985 = vmatpush1.msra.mxu0 0.0
    %2986 = vmatprep.subr.mxu0 0.0
    %2987 = vmatpush1.msra.mxu0 0.0
    %2988 = vmatprep.subr.mxu0 0.0
    %2989 = vmatpush1.msra.mxu0 0.0
    %2990 = vmatprep.subr.mxu0 0.0
    %2991 = vmatpush1.msra.mxu0 0.0
    %2992 = vmatprep.subr.mxu0 0.0
    %2993 = vmatpush1.msra.mxu0 0.0
    %2994 = vmatprep.subr.mxu0 0.0
    %2995 = vmatpush1.msra.mxu0 0.0
    %2996 = vmatprep.subr.mxu0 0.0
    %2997 = vmatpush1.msra.mxu0 0.0
    %2998 = vmatprep.subr.mxu0 0.0
    %2999 = vmatpush1.msra.mxu0 0.0
    %3000 = vmatprep.subr.mxu0 0.0
    %3001 = vmatpush1.msra.mxu0 0.0
    %3002 = vmatprep.subr.mxu0 0.0
    %3003 = vmatpush1.msra.mxu0 %v211
    %3004 = vmatprep.subr.mxu0 0.0
    %3005 = vmatpush1.msra.mxu0 %v210
    %3006 = vmatprep.subr.mxu0 0.0
    %3007 = vmatpush1.msra.mxu0 %v209
    %3008 = vmatprep.subr.mxu0 0.0
    %3009 = vmatpush1.msra.mxu0 %v208
    %3010 = vmatprep.subr.mxu0 0.0
    %3011 = vmatpush2.msra.mxu0 0.0
    %3012 = vmatprep.subr.mxu0 0.0
    %3013 = vmatpush2.msra.mxu0 0.0
    %3014 = vmatprep.subr.mxu0 0.0
    %3015 = vmatpush2.msra.mxu0 0.0
    %3016 = vmatprep.subr.mxu0 0.0
    %3017 = vmatpush2.msra.mxu0 0.0
    %3018 = vmatprep.subr.mxu0 0.0
    %3019 = vmatpush2.msra.mxu0 0.0
    %3020 = vmatprep.subr.mxu0 0.0
    %3021 = vmatpush2.msra.mxu0 0.0
    %3022 = vmatprep.subr.mxu0 0.0
    %3023 = vmatpush2.msra.mxu0 0.0
    %3024 = vmatprep.subr.mxu0 0.0
    %3025 = vmatpush2.msra.mxu0 0.0
    %3026 = vmatprep.subr.mxu0 0.0
    %3027 = vmatpush2.msra.mxu0 0.0
    %3028 = vmatprep.subr.mxu0 0.0
    %3029 = vmatpush2.msra.mxu0 0.0
    %3030 = vmatprep.subr.mxu0 0.0
    %3031 = vmatpush2.msra.mxu0 0.0
    %3032 = vmatprep.subr.mxu0 0.0
    %3033 = vmatpush2.msra.mxu0 0.0
    %3034 = vmatprep.subr.mxu0 0.0
    %3035 = vmatpush2.msra.mxu0 0.0
    %3036 = vmatprep.subr.mxu0 0.0
    %3037 = vmatpush2.msra.mxu0 0.0
    %3038 = vmatprep.subr.mxu0 0.0
    %3039 = vmatpush2.msra.mxu0 0.0
    %3040 = vmatprep.subr.mxu0 0.0
    %3041 = vmatpush2.msra.mxu0 0.0
    %3042 = vmatprep.mubr.f32.mxu0 0.0
    %3043 = vmatmul.mubr.f32.gmra.mxu0 %v2976
    %v3044 = vpop.f32.mrf.mxu0
    %v3045 = vadd.f32 %v2970, %v3044
    %v3046 = vpop.f32.mrf.mxu0
    %3047 = vdwg.mxu0
    %v3048 = vadd.f32 %v3045, %v366
    %v3049 = vtanh.pop %v3048
    %v3050 = vmul.f32 %v3049, 0.5
    %v3051 = vadd.f32 %v3050, 0.5
    %v3052 = vmul.f32 %v3051, %v2794
    %3054 = vrot.lane.b32.xlu0 %v3049, 32
    %v3055 = vpop.permute.xlu0 %3054
    %v3057 = vmul.f32 %v3051, %v3055
    %3059 = vrot.lane.b32.xlu0 %v3057, 32
    %v3060 = vpop.permute.xlu0 %3059
    %v3062 = vadd.f32 %v3052, %v3060
    %v3063 = vtanh.pop %v3062
    %3065 = vrot.lane.b32.xlu0 %v3063, 32
    %v3066 = vpop.permute.xlu0 %3065
    %v3068 = vmul.f32 %v3051, %v3066
    %3069 = vset.pattern.permute.xlu0 11
    %3070 = vperm.xlu0 %3069, %v87
    %v3071 = vpop.permute.xlu0 %3070
    %v3073 = vmul.f32 %v3071, %v98
    %v3074 = vadd.f32 %v3073, %v106
    %3075 = vmatprep.subr.mxu0 0.0
    %3076 = vmatpush1.msra.mxu0 0.0
    %3077 = vmatprep.subr.mxu0 0.0
    %3078 = vmatpush1.msra.mxu0 0.0
    %3079 = vmatprep.subr.mxu0 0.0
    %3080 = vmatpush1.msra.mxu0 0.0
    %3081 = vmatprep.subr.mxu0 0.0
    %3082 = vmatpush1.msra.mxu0 0.0
    %3083 = vmatprep.subr.mxu0 0.0
    %3084 = vmatpush1.msra.mxu0 0.0
    %3085 = vmatprep.subr.mxu0 0.0
    %3086 = vmatpush1.msra.mxu0 0.0
    %3087 = vmatprep.subr.mxu0 0.0
    %3088 = vmatpush1.msra.mxu0 0.0
    %3089 = vmatprep.subr.mxu0 0.0
    %3090 = vmatpush1.msra.mxu0 0.0
    %3091 = vmatprep.subr.mxu0 0.0
    %3092 = vmatpush1.msra.mxu0 0.0
    %3093 = vmatprep.subr.mxu0 0.0
    %3094 = vmatpush1.msra.mxu0 0.0
    %3095 = vmatprep.subr.mxu0 0.0
    %3096 = vmatpush1.msra.mxu0 0.0
    %3097 = vmatprep.subr.mxu0 0.0
    %3098 = vmatpush1.msra.mxu0 0.0
    %3099 = vmatprep.subr.mxu0 0.0
    %3100 = vmatpush1.msra.mxu0 %v112
    %3101 = vmatprep.subr.mxu0 0.0
    %3102 = vmatpush1.msra.mxu0 %v111
    %3103 = vmatprep.subr.mxu0 0.0
    %3104 = vmatpush1.msra.mxu0 %v110
    %3105 = vmatprep.subr.mxu0 0.0
    %3106 = vmatpush1.msra.mxu0 %v109
    %3107 = vmatprep.subr.mxu0 0.0
    %3108 = vmatpush2.msra.mxu0 0.0
    %3109 = vmatprep.subr.mxu0 0.0
    %3110 = vmatpush2.msra.mxu0 0.0
    %3111 = vmatprep.subr.mxu0 0.0
    %3112 = vmatpush2.msra.mxu0 0.0
    %3113 = vmatprep.subr.mxu0 0.0
    %3114 = vmatpush2.msra.mxu0 0.0
    %3115 = vmatprep.subr.mxu0 0.0
    %3116 = vmatpush2.msra.mxu0 0.0
    %3117 = vmatprep.subr.mxu0 0.0
    %3118 = vmatpush2.msra.mxu0 0.0
    %3119 = vmatprep.subr.mxu0 0.0
    %3120 = vmatpush2.msra.mxu0 0.0
    %3121 = vmatprep.subr.mxu0 0.0
    %3122 = vmatpush2.msra.mxu0 0.0
    %3123 = vmatprep.subr.mxu0 0.0
    %3124 = vmatpush2.msra.mxu0 0.0
    %3125 = vmatprep.subr.mxu0 0.0
    %3126 = vmatpush2.msra.mxu0 0.0
    %3127 = vmatprep.subr.mxu0 0.0
    %3128 = vmatpush2.msra.mxu0 0.0
    %3129 = vmatprep.subr.mxu0 0.0
    %3130 = vmatpush2.msra.mxu0 0.0
    %3131 = vmatprep.subr.mxu0 0.0
    %3132 = vmatpush2.msra.mxu0 0.0
    %3133 = vmatprep.subr.mxu0 0.0
    %3134 = vmatpush2.msra.mxu0 0.0
    %3135 = vmatprep.subr.mxu0 0.0
    %3136 = vmatpush2.msra.mxu0 0.0
    %3137 = vmatprep.subr.mxu0 0.0
    %3138 = vmatpush2.msra.mxu0 0.0
    %3139 = vmatprep.mubr.f32.mxu0 0.0
    %3140 = vmatmul.mubr.f32.gmra.mxu0 %v2976
    %v3141 = vpop.f32.mrf.mxu0
    %v3142 = vadd.f32 0.0, %v3141
    %v3143 = vpop.f32.mrf.mxu0
    %3144 = vdwg.mxu0
    %v3145 = vadd.f32 %v3074, %v3142
    %v3146 = vtanh.pop %v3145
    %v3147 = vmul.f32 %v3146, 0.5
    %v3148 = vadd.f32 %v3147, 0.5
    %v3149 = vmul.f32 %v3148, %v2891
    %3151 = vrot.lane.b32.xlu0 %v3146, 32
    %v3152 = vpop.permute.xlu0 %3151
    %v3154 = vmul.f32 %v3148, %v3152
    %3156 = vrot.lane.b32.xlu0 %v3154, 32
    %v3157 = vpop.permute.xlu0 %3156
    %v3159 = vadd.f32 %v3149, %v3157
    %v3160 = vtanh.pop %v3159
    %3162 = vrot.lane.b32.xlu0 %v3160, 32
    %v3163 = vpop.permute.xlu0 %3162
    %v3165 = vmul.f32 %v3148, %v3163
    %3167 = vrot.lane.b32.xlu0 %v3068, 64
    %v3168 = vpop.permute.xlu0 %3167
    %v3169 = vsel %vm113, %v3168, 0
    %3171 = vmatprep.subr.mxu0 0.0
    %3172 = vmatpush1.msra.mxu0 0.0
    %3173 = vmatprep.subr.mxu0 0.0
    %3174 = vmatpush1.msra.mxu0 0.0
    %3175 = vmatprep.subr.mxu0 0.0
    %3176 = vmatpush1.msra.mxu0 0.0
    %3177 = vmatprep.subr.mxu0 0.0
    %3178 = vmatpush1.msra.mxu0 0.0
    %3179 = vmatprep.subr.mxu0 0.0
    %3180 = vmatpush1.msra.mxu0 0.0
    %3181 = vmatprep.subr.mxu0 0.0
    %3182 = vmatpush1.msra.mxu0 0.0
    %3183 = vmatprep.subr.mxu0 0.0
    %3184 = vmatpush1.msra.mxu0 0.0
    %3185 = vmatprep.subr.mxu0 0.0
    %3186 = vmatpush1.msra.mxu0 0.0
    %3187 = vmatprep.subr.mxu0 0.0
    %3188 = vmatpush1.msra.mxu0 0.0
    %3189 = vmatprep.subr.mxu0 0.0
    %3190 = vmatpush1.msra.mxu0 0.0
    %3191 = vmatprep.subr.mxu0 0.0
    %3192 = vmatpush1.msra.mxu0 0.0
    %3193 = vmatprep.subr.mxu0 0.0
    %3194 = vmatpush1.msra.mxu0 0.0
    %3195 = vmatprep.subr.mxu0 0.0
    %3196 = vmatpush1.msra.mxu0 %v215
    %3197 = vmatprep.subr.mxu0 0.0
    %3198 = vmatpush1.msra.mxu0 %v214
    %3199 = vmatprep.subr.mxu0 0.0
    %3200 = vmatpush1.msra.mxu0 %v213
    %3201 = vmatprep.subr.mxu0 0.0
    %3202 = vmatpush1.msra.mxu0 %v212
    %3203 = vmatprep.subr.mxu0 0.0
    %3204 = vmatpush2.msra.mxu0 0.0
    %3205 = vmatprep.subr.mxu0 0.0
    %3206 = vmatpush2.msra.mxu0 0.0
    %3207 = vmatprep.subr.mxu0 0.0
    %3208 = vmatpush2.msra.mxu0 0.0
    %3209 = vmatprep.subr.mxu0 0.0
    %3210 = vmatpush2.msra.mxu0 0.0
    %3211 = vmatprep.subr.mxu0 0.0
    %3212 = vmatpush2.msra.mxu0 0.0
    %3213 = vmatprep.subr.mxu0 0.0
    %3214 = vmatpush2.msra.mxu0 0.0
    %3215 = vmatprep.subr.mxu0 0.0
    %3216 = vmatpush2.msra.mxu0 0.0
    %3217 = vmatprep.subr.mxu0 0.0
    %3218 = vmatpush2.msra.mxu0 0.0
    %3219 = vmatprep.subr.mxu0 0.0
    %3220 = vmatpush2.msra.mxu0 0.0
    %3221 = vmatprep.subr.mxu0 0.0
    %3222 = vmatpush2.msra.mxu0 0.0
    %3223 = vmatprep.subr.mxu0 0.0
    %3224 = vmatpush2.msra.mxu0 0.0
    %3225 = vmatprep.subr.mxu0 0.0
    %3226 = vmatpush2.msra.mxu0 0.0
    %3227 = vmatprep.subr.mxu0 0.0
    %3228 = vmatpush2.msra.mxu0 0.0
    %3229 = vmatprep.subr.mxu0 0.0
    %3230 = vmatpush2.msra.mxu0 0.0
    %3231 = vmatprep.subr.mxu0 0.0
    %3232 = vmatpush2.msra.mxu0 0.0
    %3233 = vmatprep.subr.mxu0 0.0
    %3234 = vmatpush2.msra.mxu0 0.0
    %3235 = vmatprep.mubr.f32.mxu0 0.0
    %3236 = vmatmul.mubr.f32.gmra.mxu0 %v3169
    %v3237 = vpop.f32.mrf.mxu0
    %v3238 = vadd.f32 0.0, %v3237
    %v3239 = vpop.f32.mrf.mxu0
    %3240 = vdwg.mxu0
    %3242 = vrot.lane.b32.xlu0 %v3165, 64
    %v3243 = vpop.permute.xlu0 %3242
    %v3244 = vsel %vm113, %v3243, 0
    %3246 = vmatprep.subr.mxu0 0.0
    %3247 = vmatpush1.msra.mxu0 0.0
    %3248 = vmatprep.subr.mxu0 0.0
    %3249 = vmatpush1.msra.mxu0 0.0
    %3250 = vmatprep.subr.mxu0 0.0
    %3251 = vmatpush1.msra.mxu0 0.0
    %3252 = vmatprep.subr.mxu0 0.0
    %3253 = vmatpush1.msra.mxu0 0.0
    %3254 = vmatprep.subr.mxu0 0.0
    %3255 = vmatpush1.msra.mxu0 0.0
    %3256 = vmatprep.subr.mxu0 0.0
    %3257 = vmatpush1.msra.mxu0 0.0
    %3258 = vmatprep.subr.mxu0 0.0
    %3259 = vmatpush1.msra.mxu0 0.0
    %3260 = vmatprep.subr.mxu0 0.0
    %3261 = vmatpush1.msra.mxu0 0.0
    %3262 = vmatprep.subr.mxu0 0.0
    %3263 = vmatpush1.msra.mxu0 0.0
    %3264 = vmatprep.subr.mxu0 0.0
    %3265 = vmatpush1.msra.mxu0 0.0
    %3266 = vmatprep.subr.mxu0 0.0
    %3267 = vmatpush1.msra.mxu0 0.0
    %3268 = vmatprep.subr.mxu0 0.0
    %3269 = vmatpush1.msra.mxu0 0.0
    %3270 = vmatprep.subr.mxu0 0.0
    %3271 = vmatpush1.msra.mxu0 %v211
    %3272 = vmatprep.subr.mxu0 0.0
    %3273 = vmatpush1.msra.mxu0 %v210
    %3274 = vmatprep.subr.mxu0 0.0
    %3275 = vmatpush1.msra.mxu0 %v209
    %3276 = vmatprep.subr.mxu0 0.0
    %3277 = vmatpush1.msra.mxu0 %v208
    %3278 = vmatprep.subr.mxu0 0.0
    %3279 = vmatpush2.msra.mxu0 0.0
    %3280 = vmatprep.subr.mxu0 0.0
    %3281 = vmatpush2.msra.mxu0 0.0
    %3282 = vmatprep.subr.mxu0 0.0
    %3283 = vmatpush2.msra.mxu0 0.0
    %3284 = vmatprep.subr.mxu0 0.0
    %3285 = vmatpush2.msra.mxu0 0.0
    %3286 = vmatprep.subr.mxu0 0.0
    %3287 = vmatpush2.msra.mxu0 0.0
    %3288 = vmatprep.subr.mxu0 0.0
    %3289 = vmatpush2.msra.mxu0 0.0
    %3290 = vmatprep.subr.mxu0 0.0
    %3291 = vmatpush2.msra.mxu0 0.0
    %3292 = vmatprep.subr.mxu0 0.0
    %3293 = vmatpush2.msra.mxu0 0.0
    %3294 = vmatprep.subr.mxu0 0.0
    %3295 = vmatpush2.msra.mxu0 0.0
    %3296 = vmatprep.subr.mxu0 0.0
    %3297 = vmatpush2.msra.mxu0 0.0
    %3298 = vmatprep.subr.mxu0 0.0
    %3299 = vmatpush2.msra.mxu0 0.0
    %3300 = vmatprep.subr.mxu0 0.0
    %3301 = vmatpush2.msra.mxu0 0.0
    %3302 = vmatprep.subr.mxu0 0.0
    %3303 = vmatpush2.msra.mxu0 0.0
    %3304 = vmatprep.subr.mxu0 0.0
    %3305 = vmatpush2.msra.mxu0 0.0
    %3306 = vmatprep.subr.mxu0 0.0
    %3307 = vmatpush2.msra.mxu0 0.0
    %3308 = vmatprep.subr.mxu0 0.0
    %3309 = vmatpush2.msra.mxu0 0.0
    %3310 = vmatprep.mubr.f32.mxu0 0.0
    %3311 = vmatmul.mubr.f32.gmra.mxu0 %v3244
    %v3312 = vpop.f32.mrf.mxu0
    %v3313 = vadd.f32 %v3238, %v3312
    %v3314 = vpop.f32.mrf.mxu0
    %3315 = vdwg.mxu0
    %v3316 = vadd.f32 %v3313, %v366
    %v3317 = vtanh.pop %v3316
    %v3318 = vmul.f32 %v3317, 0.5
    %v3319 = vadd.f32 %v3318, 0.5
    %v3320 = vmul.f32 %v3319, %v3062
    %3322 = vrot.lane.b32.xlu0 %v3317, 32
    %v3323 = vpop.permute.xlu0 %3322
    %v3325 = vmul.f32 %v3319, %v3323
    %3327 = vrot.lane.b32.xlu0 %v3325, 32
    %v3328 = vpop.permute.xlu0 %3327
    %v3330 = vadd.f32 %v3320, %v3328
    %v3331 = vtanh.pop %v3330
    %3333 = vrot.lane.b32.xlu0 %v3331, 32
    %v3334 = vpop.permute.xlu0 %3333
    %v3336 = vmul.f32 %v3319, %v3334
    %3337 = vset.pattern.permute.xlu0 12
    %3338 = vperm.xlu0 %3337, %v87
    %v3339 = vpop.permute.xlu0 %3338
    %v3341 = vmul.f32 %v3339, %v98
    %v3342 = vadd.f32 %v3341, %v106
    %3343 = vmatprep.subr.mxu0 0.0
    %3344 = vmatpush1.msra.mxu0 0.0
    %3345 = vmatprep.subr.mxu0 0.0
    %3346 = vmatpush1.msra.mxu0 0.0
    %3347 = vmatprep.subr.mxu0 0.0
    %3348 = vmatpush1.msra.mxu0 0.0
    %3349 = vmatprep.subr.mxu0 0.0
    %3350 = vmatpush1.msra.mxu0 0.0
    %3351 = vmatprep.subr.mxu0 0.0
    %3352 = vmatpush1.msra.mxu0 0.0
    %3353 = vmatprep.subr.mxu0 0.0
    %3354 = vmatpush1.msra.mxu0 0.0
    %3355 = vmatprep.subr.mxu0 0.0
    %3356 = vmatpush1.msra.mxu0 0.0
    %3357 = vmatprep.subr.mxu0 0.0
    %3358 = vmatpush1.msra.mxu0 0.0
    %3359 = vmatprep.subr.mxu0 0.0
    %3360 = vmatpush1.msra.mxu0 0.0
    %3361 = vmatprep.subr.mxu0 0.0
    %3362 = vmatpush1.msra.mxu0 0.0
    %3363 = vmatprep.subr.mxu0 0.0
    %3364 = vmatpush1.msra.mxu0 0.0
    %3365 = vmatprep.subr.mxu0 0.0
    %3366 = vmatpush1.msra.mxu0 0.0
    %3367 = vmatprep.subr.mxu0 0.0
    %3368 = vmatpush1.msra.mxu0 %v112
    %3369 = vmatprep.subr.mxu0 0.0
    %3370 = vmatpush1.msra.mxu0 %v111
    %3371 = vmatprep.subr.mxu0 0.0
    %3372 = vmatpush1.msra.mxu0 %v110
    %3373 = vmatprep.subr.mxu0 0.0
    %3374 = vmatpush1.msra.mxu0 %v109
    %3375 = vmatprep.subr.mxu0 0.0
    %3376 = vmatpush2.msra.mxu0 0.0
    %3377 = vmatprep.subr.mxu0 0.0
    %3378 = vmatpush2.msra.mxu0 0.0
    %3379 = vmatprep.subr.mxu0 0.0
    %3380 = vmatpush2.msra.mxu0 0.0
    %3381 = vmatprep.subr.mxu0 0.0
    %3382 = vmatpush2.msra.mxu0 0.0
    %3383 = vmatprep.subr.mxu0 0.0
    %3384 = vmatpush2.msra.mxu0 0.0
    %3385 = vmatprep.subr.mxu0 0.0
    %3386 = vmatpush2.msra.mxu0 0.0
    %3387 = vmatprep.subr.mxu0 0.0
    %3388 = vmatpush2.msra.mxu0 0.0
    %3389 = vmatprep.subr.mxu0 0.0
    %3390 = vmatpush2.msra.mxu0 0.0
    %3391 = vmatprep.subr.mxu0 0.0
    %3392 = vmatpush2.msra.mxu0 0.0
    %3393 = vmatprep.subr.mxu0 0.0
    %3394 = vmatpush2.msra.mxu0 0.0
    %3395 = vmatprep.subr.mxu0 0.0
    %3396 = vmatpush2.msra.mxu0 0.0
    %3397 = vmatprep.subr.mxu0 0.0
    %3398 = vmatpush2.msra.mxu0 0.0
    %3399 = vmatprep.subr.mxu0 0.0
    %3400 = vmatpush2.msra.mxu0 0.0
    %3401 = vmatprep.subr.mxu0 0.0
    %3402 = vmatpush2.msra.mxu0 0.0
    %3403 = vmatprep.subr.mxu0 0.0
    %3404 = vmatpush2.msra.mxu0 0.0
    %3405 = vmatprep.subr.mxu0 0.0
    %3406 = vmatpush2.msra.mxu0 0.0
    %3407 = vmatprep.mubr.f32.mxu0 0.0
    %3408 = vmatmul.mubr.f32.gmra.mxu0 %v3244
    %v3409 = vpop.f32.mrf.mxu0
    %v3410 = vadd.f32 0.0, %v3409
    %v3411 = vpop.f32.mrf.mxu0
    %3412 = vdwg.mxu0
    %v3413 = vadd.f32 %v3342, %v3410
    %v3414 = vtanh.pop %v3413
    %v3415 = vmul.f32 %v3414, 0.5
    %v3416 = vadd.f32 %v3415, 0.5
    %v3417 = vmul.f32 %v3416, %v3159
    %3419 = vrot.lane.b32.xlu0 %v3414, 32
    %v3420 = vpop.permute.xlu0 %3419
    %v3422 = vmul.f32 %v3416, %v3420
    %3424 = vrot.lane.b32.xlu0 %v3422, 32
    %v3425 = vpop.permute.xlu0 %3424
    %v3427 = vadd.f32 %v3417, %v3425
    %v3428 = vtanh.pop %v3427
    %3430 = vrot.lane.b32.xlu0 %v3428, 32
    %v3431 = vpop.permute.xlu0 %3430
    %v3433 = vmul.f32 %v3416, %v3431
    %3435 = vrot.lane.b32.xlu0 %v3336, 64
    %v3436 = vpop.permute.xlu0 %3435
    %v3437 = vsel %vm113, %v3436, 0
    %3439 = vmatprep.subr.mxu0 0.0
    %3440 = vmatpush1.msra.mxu0 0.0
    %3441 = vmatprep.subr.mxu0 0.0
    %3442 = vmatpush1.msra.mxu0 0.0
    %3443 = vmatprep.subr.mxu0 0.0
    %3444 = vmatpush1.msra.mxu0 0.0
    %3445 = vmatprep.subr.mxu0 0.0
    %3446 = vmatpush1.msra.mxu0 0.0
    %3447 = vmatprep.subr.mxu0 0.0
    %3448 = vmatpush1.msra.mxu0 0.0
    %3449 = vmatprep.subr.mxu0 0.0
    %3450 = vmatpush1.msra.mxu0 0.0
    %3451 = vmatprep.subr.mxu0 0.0
    %3452 = vmatpush1.msra.mxu0 0.0
    %3453 = vmatprep.subr.mxu0 0.0
    %3454 = vmatpush1.msra.mxu0 0.0
    %3455 = vmatprep.subr.mxu0 0.0
    %3456 = vmatpush1.msra.mxu0 0.0
    %3457 = vmatprep.subr.mxu0 0.0
    %3458 = vmatpush1.msra.mxu0 0.0
    %3459 = vmatprep.subr.mxu0 0.0
    %3460 = vmatpush1.msra.mxu0 0.0
    %3461 = vmatprep.subr.mxu0 0.0
    %3462 = vmatpush1.msra.mxu0 0.0
    %3463 = vmatprep.subr.mxu0 0.0
    %3464 = vmatpush1.msra.mxu0 %v215
    %3465 = vmatprep.subr.mxu0 0.0
    %3466 = vmatpush1.msra.mxu0 %v214
    %3467 = vmatprep.subr.mxu0 0.0
    %3468 = vmatpush1.msra.mxu0 %v213
    %3469 = vmatprep.subr.mxu0 0.0
    %3470 = vmatpush1.msra.mxu0 %v212
    %3471 = vmatprep.subr.mxu0 0.0
    %3472 = vmatpush2.msra.mxu0 0.0
    %3473 = vmatprep.subr.mxu0 0.0
    %3474 = vmatpush2.msra.mxu0 0.0
    %3475 = vmatprep.subr.mxu0 0.0
    %3476 = vmatpush2.msra.mxu0 0.0
    %3477 = vmatprep.subr.mxu0 0.0
    %3478 = vmatpush2.msra.mxu0 0.0
    %3479 = vmatprep.subr.mxu0 0.0
    %3480 = vmatpush2.msra.mxu0 0.0
    %3481 = vmatprep.subr.mxu0 0.0
    %3482 = vmatpush2.msra.mxu0 0.0
    %3483 = vmatprep.subr.mxu0 0.0
    %3484 = vmatpush2.msra.mxu0 0.0
    %3485 = vmatprep.subr.mxu0 0.0
    %3486 = vmatpush2.msra.mxu0 0.0
    %3487 = vmatprep.subr.mxu0 0.0
    %3488 = vmatpush2.msra.mxu0 0.0
    %3489 = vmatprep.subr.mxu0 0.0
    %3490 = vmatpush2.msra.mxu0 0.0
    %3491 = vmatprep.subr.mxu0 0.0
    %3492 = vmatpush2.msra.mxu0 0.0
    %3493 = vmatprep.subr.mxu0 0.0
    %3494 = vmatpush2.msra.mxu0 0.0
    %3495 = vmatprep.subr.mxu0 0.0
    %3496 = vmatpush2.msra.mxu0 0.0
    %3497 = vmatprep.subr.mxu0 0.0
    %3498 = vmatpush2.msra.mxu0 0.0
    %3499 = vmatprep.subr.mxu0 0.0
    %3500 = vmatpush2.msra.mxu0 0.0
    %3501 = vmatprep.subr.mxu0 0.0
    %3502 = vmatpush2.msra.mxu0 0.0
    %3503 = vmatprep.mubr.f32.mxu0 0.0
    %3504 = vmatmul.mubr.f32.gmra.mxu0 %v3437
    %v3505 = vpop.f32.mrf.mxu0
    %v3506 = vadd.f32 0.0, %v3505
    %v3507 = vpop.f32.mrf.mxu0
    %3508 = vdwg.mxu0
    %3510 = vrot.lane.b32.xlu0 %v3433, 64
    %v3511 = vpop.permute.xlu0 %3510
    %v3512 = vsel %vm113, %v3511, 0
    %3514 = vmatprep.subr.mxu0 0.0
    %3515 = vmatpush1.msra.mxu0 0.0
    %3516 = vmatprep.subr.mxu0 0.0
    %3517 = vmatpush1.msra.mxu0 0.0
    %3518 = vmatprep.subr.mxu0 0.0
    %3519 = vmatpush1.msra.mxu0 0.0
    %3520 = vmatprep.subr.mxu0 0.0
    %3521 = vmatpush1.msra.mxu0 0.0
    %3522 = vmatprep.subr.mxu0 0.0
    %3523 = vmatpush1.msra.mxu0 0.0
    %3524 = vmatprep.subr.mxu0 0.0
    %3525 = vmatpush1.msra.mxu0 0.0
    %3526 = vmatprep.subr.mxu0 0.0
    %3527 = vmatpush1.msra.mxu0 0.0
    %3528 = vmatprep.subr.mxu0 0.0
    %3529 = vmatpush1.msra.mxu0 0.0
    %3530 = vmatprep.subr.mxu0 0.0
    %3531 = vmatpush1.msra.mxu0 0.0
    %3532 = vmatprep.subr.mxu0 0.0
    %3533 = vmatpush1.msra.mxu0 0.0
    %3534 = vmatprep.subr.mxu0 0.0
    %3535 = vmatpush1.msra.mxu0 0.0
    %3536 = vmatprep.subr.mxu0 0.0
    %3537 = vmatpush1.msra.mxu0 0.0
    %3538 = vmatprep.subr.mxu0 0.0
    %3539 = vmatpush1.msra.mxu0 %v211
    %3540 = vmatprep.subr.mxu0 0.0
    %3541 = vmatpush1.msra.mxu0 %v210
    %3542 = vmatprep.subr.mxu0 0.0
    %3543 = vmatpush1.msra.mxu0 %v209
    %3544 = vmatprep.subr.mxu0 0.0
    %3545 = vmatpush1.msra.mxu0 %v208
    %3546 = vmatprep.subr.mxu0 0.0
    %3547 = vmatpush2.msra.mxu0 0.0
    %3548 = vmatprep.subr.mxu0 0.0
    %3549 = vmatpush2.msra.mxu0 0.0
    %3550 = vmatprep.subr.mxu0 0.0
    %3551 = vmatpush2.msra.mxu0 0.0
    %3552 = vmatprep.subr.mxu0 0.0
    %3553 = vmatpush2.msra.mxu0 0.0
    %3554 = vmatprep.subr.mxu0 0.0
    %3555 = vmatpush2.msra.mxu0 0.0
    %3556 = vmatprep.subr.mxu0 0.0
    %3557 = vmatpush2.msra.mxu0 0.0
    %3558 = vmatprep.subr.mxu0 0.0
    %3559 = vmatpush2.msra.mxu0 0.0
    %3560 = vmatprep.subr.mxu0 0.0
    %3561 = vmatpush2.msra.mxu0 0.0
    %3562 = vmatprep.subr.mxu0 0.0
    %3563 = vmatpush2.msra.mxu0 0.0
    %3564 = vmatprep.subr.mxu0 0.0
    %3565 = vmatpush2.msra.mxu0 0.0
    %3566 = vmatprep.subr.mxu0 0.0
    %3567 = vmatpush2.msra.mxu0 0.0
    %3568 = vmatprep.subr.mxu0 0.0
    %3569 = vmatpush2.msra.mxu0 0.0
    %3570 = vmatprep.subr.mxu0 0.0
    %3571 = vmatpush2.msra.mxu0 0.0
    %3572 = vmatprep.subr.mxu0 0.0
    %3573 = vmatpush2.msra.mxu0 0.0
    %3574 = vmatprep.subr.mxu0 0.0
    %3575 = vmatpush2.msra.mxu0 0.0
    %3576 = vmatprep.subr.mxu0 0.0
    %3577 = vmatpush2.msra.mxu0 0.0
    %3578 = vmatprep.mubr.f32.mxu0 0.0
    %3579 = vmatmul.mubr.f32.gmra.mxu0 %v3512
    %v3580 = vpop.f32.mrf.mxu0
    %v3581 = vadd.f32 %v3506, %v3580
    %v3582 = vpop.f32.mrf.mxu0
    %3583 = vdwg.mxu0
    %v3584 = vadd.f32 %v3581, %v366
    %v3585 = vtanh.pop %v3584
    %v3586 = vmul.f32 %v3585, 0.5
    %v3587 = vadd.f32 %v3586, 0.5
    %v3588 = vmul.f32 %v3587, %v3330
    %3590 = vrot.lane.b32.xlu0 %v3585, 32
    %v3591 = vpop.permute.xlu0 %3590
    %v3593 = vmul.f32 %v3587, %v3591
    %3595 = vrot.lane.b32.xlu0 %v3593, 32
    %v3596 = vpop.permute.xlu0 %3595
    %v3598 = vadd.f32 %v3588, %v3596
    %v3599 = vtanh.pop %v3598
    %3601 = vrot.lane.b32.xlu0 %v3599, 32
    %v3602 = vpop.permute.xlu0 %3601
    %v3604 = vmul.f32 %v3587, %v3602
    %3605 = vset.pattern.permute.xlu0 13
    %3606 = vperm.xlu0 %3605, %v87
    %v3607 = vpop.permute.xlu0 %3606
    %v3609 = vmul.f32 %v3607, %v98
    %v3610 = vadd.f32 %v3609, %v106
    %3611 = vmatprep.subr.mxu0 0.0
    %3612 = vmatpush1.msra.mxu0 0.0
    %3613 = vmatprep.subr.mxu0 0.0
    %3614 = vmatpush1.msra.mxu0 0.0
    %3615 = vmatprep.subr.mxu0 0.0
    %3616 = vmatpush1.msra.mxu0 0.0
    %3617 = vmatprep.subr.mxu0 0.0
    %3618 = vmatpush1.msra.mxu0 0.0
    %3619 = vmatprep.subr.mxu0 0.0
    %3620 = vmatpush1.msra.mxu0 0.0
    %3621 = vmatprep.subr.mxu0 0.0
    %3622 = vmatpush1.msra.mxu0 0.0
    %3623 = vmatprep.subr.mxu0 0.0
    %3624 = vmatpush1.msra.mxu0 0.0
    %3625 = vmatprep.subr.mxu0 0.0
    %3626 = vmatpush1.msra.mxu0 0.0
    %3627 = vmatprep.subr.mxu0 0.0
    %3628 = vmatpush1.msra.mxu0 0.0
    %3629 = vmatprep.subr.mxu0 0.0
    %3630 = vmatpush1.msra.mxu0 0.0
    %3631 = vmatprep.subr.mxu0 0.0
    %3632 = vmatpush1.msra.mxu0 0.0
    %3633 = vmatprep.subr.mxu0 0.0
    %3634 = vmatpush1.msra.mxu0 0.0
    %3635 = vmatprep.subr.mxu0 0.0
    %3636 = vmatpush1.msra.mxu0 %v112
    %3637 = vmatprep.subr.mxu0 0.0
    %3638 = vmatpush1.msra.mxu0 %v111
    %3639 = vmatprep.subr.mxu0 0.0
    %3640 = vmatpush1.msra.mxu0 %v110
    %3641 = vmatprep.subr.mxu0 0.0
    %3642 = vmatpush1.msra.mxu0 %v109
    %3643 = vmatprep.subr.mxu0 0.0
    %3644 = vmatpush2.msra.mxu0 0.0
    %3645 = vmatprep.subr.mxu0 0.0
    %3646 = vmatpush2.msra.mxu0 0.0
    %3647 = vmatprep.subr.mxu0 0.0
    %3648 = vmatpush2.msra.mxu0 0.0
    %3649 = vmatprep.subr.mxu0 0.0
    %3650 = vmatpush2.msra.mxu0 0.0
    %3651 = vmatprep.subr.mxu0 0.0
    %3652 = vmatpush2.msra.mxu0 0.0
    %3653 = vmatprep.subr.mxu0 0.0
    %3654 = vmatpush2.msra.mxu0 0.0
    %3655 = vmatprep.subr.mxu0 0.0
    %3656 = vmatpush2.msra.mxu0 0.0
    %3657 = vmatprep.subr.mxu0 0.0
    %3658 = vmatpush2.msra.mxu0 0.0
    %3659 = vmatprep.subr.mxu0 0.0
    %3660 = vmatpush2.msra.mxu0 0.0
    %3661 = vmatprep.subr.mxu0 0.0
    %3662 = vmatpush2.msra.mxu0 0.0
    %3663 = vmatprep.subr.mxu0 0.0
    %3664 = vmatpush2.msra.mxu0 0.0
    %3665 = vmatprep.subr.mxu0 0.0
    %3666 = vmatpush2.msra.mxu0 0.0
    %3667 = vmatprep.subr.mxu0 0.0
    %3668 = vmatpush2.msra.mxu0 0.0
    %3669 = vmatprep.subr.mxu0 0.0
    %3670 = vmatpush2.msra.mxu0 0.0
    %3671 = vmatprep.subr.mxu0 0.0
    %3672 = vmatpush2.msra.mxu0 0.0
    %3673 = vmatprep.subr.mxu0 0.0
    %3674 = vmatpush2.msra.mxu0 0.0
    %3675 = vmatprep.mubr.f32.mxu0 0.0
    %3676 = vmatmul.mubr.f32.gmra.mxu0 %v3512
    %v3677 = vpop.f32.mrf.mxu0
    %v3678 = vadd.f32 0.0, %v3677
    %v3679 = vpop.f32.mrf.mxu0
    %3680 = vdwg.mxu0
    %v3681 = vadd.f32 %v3610, %v3678
    %v3682 = vtanh.pop %v3681
    %v3683 = vmul.f32 %v3682, 0.5
    %v3684 = vadd.f32 %v3683, 0.5
    %v3685 = vmul.f32 %v3684, %v3427
    %3687 = vrot.lane.b32.xlu0 %v3682, 32
    %v3688 = vpop.permute.xlu0 %3687
    %v3690 = vmul.f32 %v3684, %v3688
    %3692 = vrot.lane.b32.xlu0 %v3690, 32
    %v3693 = vpop.permute.xlu0 %3692
    %v3695 = vadd.f32 %v3685, %v3693
    %v3696 = vtanh.pop %v3695
    %3698 = vrot.lane.b32.xlu0 %v3696, 32
    %v3699 = vpop.permute.xlu0 %3698
    %v3701 = vmul.f32 %v3684, %v3699
    %3703 = vrot.lane.b32.xlu0 %v3604, 64
    %v3704 = vpop.permute.xlu0 %3703
    %v3705 = vsel %vm113, %v3704, 0
    %3707 = vmatprep.subr.mxu0 0.0
    %3708 = vmatpush1.msra.mxu0 0.0
    %3709 = vmatprep.subr.mxu0 0.0
    %3710 = vmatpush1.msra.mxu0 0.0
    %3711 = vmatprep.subr.mxu0 0.0
    %3712 = vmatpush1.msra.mxu0 0.0
    %3713 = vmatprep.subr.mxu0 0.0
    %3714 = vmatpush1.msra.mxu0 0.0
    %3715 = vmatprep.subr.mxu0 0.0
    %3716 = vmatpush1.msra.mxu0 0.0
    %3717 = vmatprep.subr.mxu0 0.0
    %3718 = vmatpush1.msra.mxu0 0.0
    %3719 = vmatprep.subr.mxu0 0.0
    %3720 = vmatpush1.msra.mxu0 0.0
    %3721 = vmatprep.subr.mxu0 0.0
    %3722 = vmatpush1.msra.mxu0 0.0
    %3723 = vmatprep.subr.mxu0 0.0
    %3724 = vmatpush1.msra.mxu0 0.0
    %3725 = vmatprep.subr.mxu0 0.0
    %3726 = vmatpush1.msra.mxu0 0.0
    %3727 = vmatprep.subr.mxu0 0.0
    %3728 = vmatpush1.msra.mxu0 0.0
    %3729 = vmatprep.subr.mxu0 0.0
    %3730 = vmatpush1.msra.mxu0 0.0
    %3731 = vmatprep.subr.mxu0 0.0
    %3732 = vmatpush1.msra.mxu0 %v215
    %3733 = vmatprep.subr.mxu0 0.0
    %3734 = vmatpush1.msra.mxu0 %v214
    %3735 = vmatprep.subr.mxu0 0.0
    %3736 = vmatpush1.msra.mxu0 %v213
    %3737 = vmatprep.subr.mxu0 0.0
    %3738 = vmatpush1.msra.mxu0 %v212
    %3739 = vmatprep.subr.mxu0 0.0
    %3740 = vmatpush2.msra.mxu0 0.0
    %3741 = vmatprep.subr.mxu0 0.0
    %3742 = vmatpush2.msra.mxu0 0.0
    %3743 = vmatprep.subr.mxu0 0.0
    %3744 = vmatpush2.msra.mxu0 0.0
    %3745 = vmatprep.subr.mxu0 0.0
    %3746 = vmatpush2.msra.mxu0 0.0
    %3747 = vmatprep.subr.mxu0 0.0
    %3748 = vmatpush2.msra.mxu0 0.0
    %3749 = vmatprep.subr.mxu0 0.0
    %3750 = vmatpush2.msra.mxu0 0.0
    %3751 = vmatprep.subr.mxu0 0.0
    %3752 = vmatpush2.msra.mxu0 0.0
    %3753 = vmatprep.subr.mxu0 0.0
    %3754 = vmatpush2.msra.mxu0 0.0
    %3755 = vmatprep.subr.mxu0 0.0
    %3756 = vmatpush2.msra.mxu0 0.0
    %3757 = vmatprep.subr.mxu0 0.0
    %3758 = vmatpush2.msra.mxu0 0.0
    %3759 = vmatprep.subr.mxu0 0.0
    %3760 = vmatpush2.msra.mxu0 0.0
    %3761 = vmatprep.subr.mxu0 0.0
    %3762 = vmatpush2.msra.mxu0 0.0
    %3763 = vmatprep.subr.mxu0 0.0
    %3764 = vmatpush2.msra.mxu0 0.0
    %3765 = vmatprep.subr.mxu0 0.0
    %3766 = vmatpush2.msra.mxu0 0.0
    %3767 = vmatprep.subr.mxu0 0.0
    %3768 = vmatpush2.msra.mxu0 0.0
    %3769 = vmatprep.subr.mxu0 0.0
    %3770 = vmatpush2.msra.mxu0 0.0
    %3771 = vmatprep.mubr.f32.mxu0 0.0
    %3772 = vmatmul.mubr.f32.gmra.mxu0 %v3705
    %v3773 = vpop.f32.mrf.mxu0
    %v3774 = vadd.f32 0.0, %v3773
    %v3775 = vpop.f32.mrf.mxu0
    %3776 = vdwg.mxu0
    %3778 = vrot.lane.b32.xlu0 %v3701, 64
    %v3779 = vpop.permute.xlu0 %3778
    %v3780 = vsel %vm113, %v3779, 0
    %3782 = vmatprep.subr.mxu0 0.0
    %3783 = vmatpush1.msra.mxu0 0.0
    %3784 = vmatprep.subr.mxu0 0.0
    %3785 = vmatpush1.msra.mxu0 0.0
    %3786 = vmatprep.subr.mxu0 0.0
    %3787 = vmatpush1.msra.mxu0 0.0
    %3788 = vmatprep.subr.mxu0 0.0
    %3789 = vmatpush1.msra.mxu0 0.0
    %3790 = vmatprep.subr.mxu0 0.0
    %3791 = vmatpush1.msra.mxu0 0.0
    %3792 = vmatprep.subr.mxu0 0.0
    %3793 = vmatpush1.msra.mxu0 0.0
    %3794 = vmatprep.subr.mxu0 0.0
    %3795 = vmatpush1.msra.mxu0 0.0
    %3796 = vmatprep.subr.mxu0 0.0
    %3797 = vmatpush1.msra.mxu0 0.0
    %3798 = vmatprep.subr.mxu0 0.0
    %3799 = vmatpush1.msra.mxu0 0.0
    %3800 = vmatprep.subr.mxu0 0.0
    %3801 = vmatpush1.msra.mxu0 0.0
    %3802 = vmatprep.subr.mxu0 0.0
    %3803 = vmatpush1.msra.mxu0 0.0
    %3804 = vmatprep.subr.mxu0 0.0
    %3805 = vmatpush1.msra.mxu0 0.0
    %3806 = vmatprep.subr.mxu0 0.0
    %3807 = vmatpush1.msra.mxu0 %v211
    %3808 = vmatprep.subr.mxu0 0.0
    %3809 = vmatpush1.msra.mxu0 %v210
    %3810 = vmatprep.subr.mxu0 0.0
    %3811 = vmatpush1.msra.mxu0 %v209
    %3812 = vmatprep.subr.mxu0 0.0
    %3813 = vmatpush1.msra.mxu0 %v208
    %3814 = vmatprep.subr.mxu0 0.0
    %3815 = vmatpush2.msra.mxu0 0.0
    %3816 = vmatprep.subr.mxu0 0.0
    %3817 = vmatpush2.msra.mxu0 0.0
    %3818 = vmatprep.subr.mxu0 0.0
    %3819 = vmatpush2.msra.mxu0 0.0
    %3820 = vmatprep.subr.mxu0 0.0
    %3821 = vmatpush2.msra.mxu0 0.0
    %3822 = vmatprep.subr.mxu0 0.0
    %3823 = vmatpush2.msra.mxu0 0.0
    %3824 = vmatprep.subr.mxu0 0.0
    %3825 = vmatpush2.msra.mxu0 0.0
    %3826 = vmatprep.subr.mxu0 0.0
    %3827 = vmatpush2.msra.mxu0 0.0
    %3828 = vmatprep.subr.mxu0 0.0
    %3829 = vmatpush2.msra.mxu0 0.0
    %3830 = vmatprep.subr.mxu0 0.0
    %3831 = vmatpush2.msra.mxu0 0.0
    %3832 = vmatprep.subr.mxu0 0.0
    %3833 = vmatpush2.msra.mxu0 0.0
    %3834 = vmatprep.subr.mxu0 0.0
    %3835 = vmatpush2.msra.mxu0 0.0
    %3836 = vmatprep.subr.mxu0 0.0
    %3837 = vmatpush2.msra.mxu0 0.0
    %3838 = vmatprep.subr.mxu0 0.0
    %3839 = vmatpush2.msra.mxu0 0.0
    %3840 = vmatprep.subr.mxu0 0.0
    %3841 = vmatpush2.msra.mxu0 0.0
    %3842 = vmatprep.subr.mxu0 0.0
    %3843 = vmatpush2.msra.mxu0 0.0
    %3844 = vmatprep.subr.mxu0 0.0
    %3845 = vmatpush2.msra.mxu0 0.0
    %3846 = vmatprep.mubr.f32.mxu0 0.0
    %3847 = vmatmul.mubr.f32.gmra.mxu0 %v3780
    %v3848 = vpop.f32.mrf.mxu0
    %v3849 = vadd.f32 %v3774, %v3848
    %v3850 = vpop.f32.mrf.mxu0
    %3851 = vdwg.mxu0
    %v3852 = vadd.f32 %v3849, %v366
    %v3853 = vtanh.pop %v3852
    %v3854 = vmul.f32 %v3853, 0.5
    %v3855 = vadd.f32 %v3854, 0.5
    %v3856 = vmul.f32 %v3855, %v3598
    %3858 = vrot.lane.b32.xlu0 %v3853, 32
    %v3859 = vpop.permute.xlu0 %3858
    %v3861 = vmul.f32 %v3855, %v3859
    %3863 = vrot.lane.b32.xlu0 %v3861, 32
    %v3864 = vpop.permute.xlu0 %3863
    %v3866 = vadd.f32 %v3856, %v3864
    %v3867 = vtanh.pop %v3866
    %3869 = vrot.lane.b32.xlu0 %v3867, 32
    %v3870 = vpop.permute.xlu0 %3869
    %v3872 = vmul.f32 %v3855, %v3870
    %3873 = vset.pattern.permute.xlu0 14
    %3874 = vperm.xlu0 %3873, %v87
    %v3875 = vpop.permute.xlu0 %3874
    %v3877 = vmul.f32 %v3875, %v98
    %v3878 = vadd.f32 %v3877, %v106
    %3879 = vmatprep.subr.mxu0 0.0
    %3880 = vmatpush1.msra.mxu0 0.0
    %3881 = vmatprep.subr.mxu0 0.0
    %3882 = vmatpush1.msra.mxu0 0.0
    %3883 = vmatprep.subr.mxu0 0.0
    %3884 = vmatpush1.msra.mxu0 0.0
    %3885 = vmatprep.subr.mxu0 0.0
    %3886 = vmatpush1.msra.mxu0 0.0
    %3887 = vmatprep.subr.mxu0 0.0
    %3888 = vmatpush1.msra.mxu0 0.0
    %3889 = vmatprep.subr.mxu0 0.0
    %3890 = vmatpush1.msra.mxu0 0.0
    %3891 = vmatprep.subr.mxu0 0.0
    %3892 = vmatpush1.msra.mxu0 0.0
    %3893 = vmatprep.subr.mxu0 0.0
    %3894 = vmatpush1.msra.mxu0 0.0
    %3895 = vmatprep.subr.mxu0 0.0
    %3896 = vmatpush1.msra.mxu0 0.0
    %3897 = vmatprep.subr.mxu0 0.0
    %3898 = vmatpush1.msra.mxu0 0.0
    %3899 = vmatprep.subr.mxu0 0.0
    %3900 = vmatpush1.msra.mxu0 0.0
    %3901 = vmatprep.subr.mxu0 0.0
    %3902 = vmatpush1.msra.mxu0 0.0
    %3903 = vmatprep.subr.mxu0 0.0
    %3904 = vmatpush1.msra.mxu0 %v112
    %3905 = vmatprep.subr.mxu0 0.0
    %3906 = vmatpush1.msra.mxu0 %v111
    %3907 = vmatprep.subr.mxu0 0.0
    %3908 = vmatpush1.msra.mxu0 %v110
    %3909 = vmatprep.subr.mxu0 0.0
    %3910 = vmatpush1.msra.mxu0 %v109
    %3911 = vmatprep.subr.mxu0 0.0
    %3912 = vmatpush2.msra.mxu0 0.0
    %3913 = vmatprep.subr.mxu0 0.0
    %3914 = vmatpush2.msra.mxu0 0.0
    %3915 = vmatprep.subr.mxu0 0.0
    %3916 = vmatpush2.msra.mxu0 0.0
    %3917 = vmatprep.subr.mxu0 0.0
    %3918 = vmatpush2.msra.mxu0 0.0
    %3919 = vmatprep.subr.mxu0 0.0
    %3920 = vmatpush2.msra.mxu0 0.0
    %3921 = vmatprep.subr.mxu0 0.0
    %3922 = vmatpush2.msra.mxu0 0.0
    %3923 = vmatprep.subr.mxu0 0.0
    %3924 = vmatpush2.msra.mxu0 0.0
    %3925 = vmatprep.subr.mxu0 0.0
    %3926 = vmatpush2.msra.mxu0 0.0
    %3927 = vmatprep.subr.mxu0 0.0
    %3928 = vmatpush2.msra.mxu0 0.0
    %3929 = vmatprep.subr.mxu0 0.0
    %3930 = vmatpush2.msra.mxu0 0.0
    %3931 = vmatprep.subr.mxu0 0.0
    %3932 = vmatpush2.msra.mxu0 0.0
    %3933 = vmatprep.subr.mxu0 0.0
    %3934 = vmatpush2.msra.mxu0 0.0
    %3935 = vmatprep.subr.mxu0 0.0
    %3936 = vmatpush2.msra.mxu0 0.0
    %3937 = vmatprep.subr.mxu0 0.0
    %3938 = vmatpush2.msra.mxu0 0.0
    %3939 = vmatprep.subr.mxu0 0.0
    %3940 = vmatpush2.msra.mxu0 0.0
    %3941 = vmatprep.subr.mxu0 0.0
    %3942 = vmatpush2.msra.mxu0 0.0
    %3943 = vmatprep.mubr.f32.mxu0 0.0
    %3944 = vmatmul.mubr.f32.gmra.mxu0 %v3780
    %v3945 = vpop.f32.mrf.mxu0
    %v3946 = vadd.f32 0.0, %v3945
    %v3947 = vpop.f32.mrf.mxu0
    %3948 = vdwg.mxu0
    %v3949 = vadd.f32 %v3878, %v3946
    %v3950 = vtanh.pop %v3949
    %v3951 = vmul.f32 %v3950, 0.5
    %v3952 = vadd.f32 %v3951, 0.5
    %v3953 = vmul.f32 %v3952, %v3695
    %3955 = vrot.lane.b32.xlu0 %v3950, 32
    %v3956 = vpop.permute.xlu0 %3955
    %v3958 = vmul.f32 %v3952, %v3956
    %3960 = vrot.lane.b32.xlu0 %v3958, 32
    %v3961 = vpop.permute.xlu0 %3960
    %v3963 = vadd.f32 %v3953, %v3961
    %v3964 = vtanh.pop %v3963
    %3966 = vrot.lane.b32.xlu0 %v3964, 32
    %v3967 = vpop.permute.xlu0 %3966
    %v3969 = vmul.f32 %v3952, %v3967
    %3971 = vrot.lane.b32.xlu0 %v3872, 64
    %v3972 = vpop.permute.xlu0 %3971
    %v3973 = vsel %vm113, %v3972, 0
    %3975 = vmatprep.subr.mxu0 0.0
    %3976 = vmatpush1.msra.mxu0 0.0
    %3977 = vmatprep.subr.mxu0 0.0
    %3978 = vmatpush1.msra.mxu0 0.0
    %3979 = vmatprep.subr.mxu0 0.0
    %3980 = vmatpush1.msra.mxu0 0.0
    %3981 = vmatprep.subr.mxu0 0.0
    %3982 = vmatpush1.msra.mxu0 0.0
    %3983 = vmatprep.subr.mxu0 0.0
    %3984 = vmatpush1.msra.mxu0 0.0
    %3985 = vmatprep.subr.mxu0 0.0
    %3986 = vmatpush1.msra.mxu0 0.0
    %3987 = vmatprep.subr.mxu0 0.0
    %3988 = vmatpush1.msra.mxu0 0.0
    %3989 = vmatprep.subr.mxu0 0.0
    %3990 = vmatpush1.msra.mxu0 0.0
    %3991 = vmatprep.subr.mxu0 0.0
    %3992 = vmatpush1.msra.mxu0 0.0
    %3993 = vmatprep.subr.mxu0 0.0
    %3994 = vmatpush1.msra.mxu0 0.0
    %3995 = vmatprep.subr.mxu0 0.0
    %3996 = vmatpush1.msra.mxu0 0.0
    %3997 = vmatprep.subr.mxu0 0.0
    %3998 = vmatpush1.msra.mxu0 0.0
    %3999 = vmatprep.subr.mxu0 0.0
    %4000 = vmatpush1.msra.mxu0 %v215
    %4001 = vmatprep.subr.mxu0 0.0
    %4002 = vmatpush1.msra.mxu0 %v214
    %4003 = vmatprep.subr.mxu0 0.0
    %4004 = vmatpush1.msra.mxu0 %v213
    %4005 = vmatprep.subr.mxu0 0.0
    %4006 = vmatpush1.msra.mxu0 %v212
    %4007 = vmatprep.subr.mxu0 0.0
    %4008 = vmatpush2.msra.mxu0 0.0
    %4009 = vmatprep.subr.mxu0 0.0
    %4010 = vmatpush2.msra.mxu0 0.0
    %4011 = vmatprep.subr.mxu0 0.0
    %4012 = vmatpush2.msra.mxu0 0.0
    %4013 = vmatprep.subr.mxu0 0.0
    %4014 = vmatpush2.msra.mxu0 0.0
    %4015 = vmatprep.subr.mxu0 0.0
    %4016 = vmatpush2.msra.mxu0 0.0
    %4017 = vmatprep.subr.mxu0 0.0
    %4018 = vmatpush2.msra.mxu0 0.0
    %4019 = vmatprep.subr.mxu0 0.0
    %4020 = vmatpush2.msra.mxu0 0.0
    %4021 = vmatprep.subr.mxu0 0.0
    %4022 = vmatpush2.msra.mxu0 0.0
    %4023 = vmatprep.subr.mxu0 0.0
    %4024 = vmatpush2.msra.mxu0 0.0
    %4025 = vmatprep.subr.mxu0 0.0
    %4026 = vmatpush2.msra.mxu0 0.0
    %4027 = vmatprep.subr.mxu0 0.0
    %4028 = vmatpush2.msra.mxu0 0.0
    %4029 = vmatprep.subr.mxu0 0.0
    %4030 = vmatpush2.msra.mxu0 0.0
    %4031 = vmatprep.subr.mxu0 0.0
    %4032 = vmatpush2.msra.mxu0 0.0
    %4033 = vmatprep.subr.mxu0 0.0
    %4034 = vmatpush2.msra.mxu0 0.0
    %4035 = vmatprep.subr.mxu0 0.0
    %4036 = vmatpush2.msra.mxu0 0.0
    %4037 = vmatprep.subr.mxu0 0.0
    %4038 = vmatpush2.msra.mxu0 0.0
    %4039 = vmatprep.mubr.f32.mxu0 0.0
    %4040 = vmatmul.mubr.f32.gmra.mxu0 %v3973
    %v4041 = vpop.f32.mrf.mxu0
    %v4042 = vadd.f32 0.0, %v4041
    %v4043 = vpop.f32.mrf.mxu0
    %4044 = vdwg.mxu0
    %4046 = vrot.lane.b32.xlu0 %v3969, 64
    %v4047 = vpop.permute.xlu0 %4046
    %v4048 = vsel %vm113, %v4047, 0
    %4050 = vmatprep.subr.mxu0 0.0
    %4051 = vmatpush1.msra.mxu0 0.0
    %4052 = vmatprep.subr.mxu0 0.0
    %4053 = vmatpush1.msra.mxu0 0.0
    %4054 = vmatprep.subr.mxu0 0.0
    %4055 = vmatpush1.msra.mxu0 0.0
    %4056 = vmatprep.subr.mxu0 0.0
    %4057 = vmatpush1.msra.mxu0 0.0
    %4058 = vmatprep.subr.mxu0 0.0
    %4059 = vmatpush1.msra.mxu0 0.0
    %4060 = vmatprep.subr.mxu0 0.0
    %4061 = vmatpush1.msra.mxu0 0.0
    %4062 = vmatprep.subr.mxu0 0.0
    %4063 = vmatpush1.msra.mxu0 0.0
    %4064 = vmatprep.subr.mxu0 0.0
    %4065 = vmatpush1.msra.mxu0 0.0
    %4066 = vmatprep.subr.mxu0 0.0
    %4067 = vmatpush1.msra.mxu0 0.0
    %4068 = vmatprep.subr.mxu0 0.0
    %4069 = vmatpush1.msra.mxu0 0.0
    %4070 = vmatprep.subr.mxu0 0.0
    %4071 = vmatpush1.msra.mxu0 0.0
    %4072 = vmatprep.subr.mxu0 0.0
    %4073 = vmatpush1.msra.mxu0 0.0
    %4074 = vmatprep.subr.mxu0 0.0
    %4075 = vmatpush1.msra.mxu0 %v211
    %4076 = vmatprep.subr.mxu0 0.0
    %4077 = vmatpush1.msra.mxu0 %v210
    %4078 = vmatprep.subr.mxu0 0.0
    %4079 = vmatpush1.msra.mxu0 %v209
    %4080 = vmatprep.subr.mxu0 0.0
    %4081 = vmatpush1.msra.mxu0 %v208
    %4082 = vmatprep.subr.mxu0 0.0
    %4083 = vmatpush2.msra.mxu0 0.0
    %4084 = vmatprep.subr.mxu0 0.0
    %4085 = vmatpush2.msra.mxu0 0.0
    %4086 = vmatprep.subr.mxu0 0.0
    %4087 = vmatpush2.msra.mxu0 0.0
    %4088 = vmatprep.subr.mxu0 0.0
    %4089 = vmatpush2.msra.mxu0 0.0
    %4090 = vmatprep.subr.mxu0 0.0
    %4091 = vmatpush2.msra.mxu0 0.0
    %4092 = vmatprep.subr.mxu0 0.0
    %4093 = vmatpush2.msra.mxu0 0.0
    %4094 = vmatprep.subr.mxu0 0.0
    %4095 = vmatpush2.msra.mxu0 0.0
    %4096 = vmatprep.subr.mxu0 0.0
    %4097 = vmatpush2.msra.mxu0 0.0
    %4098 = vmatprep.subr.mxu0 0.0
    %4099 = vmatpush2.msra.mxu0 0.0
    %4100 = vmatprep.subr.mxu0 0.0
    %4101 = vmatpush2.msra.mxu0 0.0
    %4102 = vmatprep.subr.mxu0 0.0
    %4103 = vmatpush2.msra.mxu0 0.0
    %4104 = vmatprep.subr.mxu0 0.0
    %4105 = vmatpush2.msra.mxu0 0.0
    %4106 = vmatprep.subr.mxu0 0.0
    %4107 = vmatpush2.msra.mxu0 0.0
    %4108 = vmatprep.subr.mxu0 0.0
    %4109 = vmatpush2.msra.mxu0 0.0
    %4110 = vmatprep.subr.mxu0 0.0
    %4111 = vmatpush2.msra.mxu0 0.0
    %4112 = vmatprep.subr.mxu0 0.0
    %4113 = vmatpush2.msra.mxu0 0.0
    %4114 = vmatprep.mubr.f32.mxu0 0.0
    %4115 = vmatmul.mubr.f32.gmra.mxu0 %v4048
    %v4116 = vpop.f32.mrf.mxu0
    %v4117 = vadd.f32 %v4042, %v4116
    %v4118 = vpop.f32.mrf.mxu0
    %4119 = vdwg.mxu0
    %v4120 = vadd.f32 %v4117, %v366
    %v4121 = vtanh.pop %v4120
    %v4122 = vmul.f32 %v4121, 0.5
    %v4123 = vadd.f32 %v4122, 0.5
    %v4124 = vmul.f32 %v4123, %v3866
    %4126 = vrot.lane.b32.xlu0 %v4121, 32
    %v4127 = vpop.permute.xlu0 %4126
    %v4129 = vmul.f32 %v4123, %v4127
    %4131 = vrot.lane.b32.xlu0 %v4129, 32
    %v4132 = vpop.permute.xlu0 %4131
    %v4134 = vadd.f32 %v4124, %v4132
    %v4135 = vtanh.pop %v4134
    %4137 = vrot.lane.b32.xlu0 %v4135, 32
    %v4138 = vpop.permute.xlu0 %4137
    %v4140 = vmul.f32 %v4123, %v4138
    %4141 = vset.pattern.permute.xlu0 15
    %4142 = vperm.xlu0 %4141, %v87
    %v4143 = vpop.permute.xlu0 %4142
    %v4145 = vmul.f32 %v4143, %v98
    %v4146 = vadd.f32 %v4145, %v106
    %4147 = vmatprep.subr.mxu0 0.0
    %4148 = vmatpush1.msra.mxu0 0.0
    %4149 = vmatprep.subr.mxu0 0.0
    %4150 = vmatpush1.msra.mxu0 0.0
    %4151 = vmatprep.subr.mxu0 0.0
    %4152 = vmatpush1.msra.mxu0 0.0
    %4153 = vmatprep.subr.mxu0 0.0
    %4154 = vmatpush1.msra.mxu0 0.0
    %4155 = vmatprep.subr.mxu0 0.0
    %4156 = vmatpush1.msra.mxu0 0.0
    %4157 = vmatprep.subr.mxu0 0.0
    %4158 = vmatpush1.msra.mxu0 0.0
    %4159 = vmatprep.subr.mxu0 0.0
    %4160 = vmatpush1.msra.mxu0 0.0
    %4161 = vmatprep.subr.mxu0 0.0
    %4162 = vmatpush1.msra.mxu0 0.0
    %4163 = vmatprep.subr.mxu0 0.0
    %4164 = vmatpush1.msra.mxu0 0.0
    %4165 = vmatprep.subr.mxu0 0.0
    %4166 = vmatpush1.msra.mxu0 0.0
    %4167 = vmatprep.subr.mxu0 0.0
    %4168 = vmatpush1.msra.mxu0 0.0
    %4169 = vmatprep.subr.mxu0 0.0
    %4170 = vmatpush1.msra.mxu0 0.0
    %4171 = vmatprep.subr.mxu0 0.0
    %4172 = vmatpush1.msra.mxu0 %v112
    %4173 = vmatprep.subr.mxu0 0.0
    %4174 = vmatpush1.msra.mxu0 %v111
    %4175 = vmatprep.subr.mxu0 0.0
    %4176 = vmatpush1.msra.mxu0 %v110
    %4177 = vmatprep.subr.mxu0 0.0
    %4178 = vmatpush1.msra.mxu0 %v109
    %4179 = vmatprep.subr.mxu0 0.0
    %4180 = vmatpush2.msra.mxu0 0.0
    %4181 = vmatprep.subr.mxu0 0.0
    %4182 = vmatpush2.msra.mxu0 0.0
    %4183 = vmatprep.subr.mxu0 0.0
    %4184 = vmatpush2.msra.mxu0 0.0
    %4185 = vmatprep.subr.mxu0 0.0
    %4186 = vmatpush2.msra.mxu0 0.0
    %4187 = vmatprep.subr.mxu0 0.0
    %4188 = vmatpush2.msra.mxu0 0.0
    %4189 = vmatprep.subr.mxu0 0.0
    %4190 = vmatpush2.msra.mxu0 0.0
    %4191 = vmatprep.subr.mxu0 0.0
    %4192 = vmatpush2.msra.mxu0 0.0
    %4193 = vmatprep.subr.mxu0 0.0
    %4194 = vmatpush2.msra.mxu0 0.0
    %4195 = vmatprep.subr.mxu0 0.0
    %4196 = vmatpush2.msra.mxu0 0.0
    %4197 = vmatprep.subr.mxu0 0.0
    %4198 = vmatpush2.msra.mxu0 0.0
    %4199 = vmatprep.subr.mxu0 0.0
    %4200 = vmatpush2.msra.mxu0 0.0
    %4201 = vmatprep.subr.mxu0 0.0
    %4202 = vmatpush2.msra.mxu0 0.0
    %4203 = vmatprep.subr.mxu0 0.0
    %4204 = vmatpush2.msra.mxu0 0.0
    %4205 = vmatprep.subr.mxu0 0.0
    %4206 = vmatpush2.msra.mxu0 0.0
    %4207 = vmatprep.subr.mxu0 0.0
    %4208 = vmatpush2.msra.mxu0 0.0
    %4209 = vmatprep.subr.mxu0 0.0
    %4210 = vmatpush2.msra.mxu0 0.0
    %4211 = vmatprep.mubr.f32.mxu0 0.0
    %4212 = vmatmul.mubr.f32.gmra.mxu0 %v4048
    %v4213 = vpop.f32.mrf.mxu0
    %v4214 = vadd.f32 0.0, %v4213
    %v4215 = vpop.f32.mrf.mxu0
    %4216 = vdwg.mxu0
    %v4217 = vadd.f32 %v4146, %v4214
    %v4218 = vtanh.pop %v4217
    %v4219 = vmul.f32 %v4218, 0.5
    %v4220 = vadd.f32 %v4219, 0.5
    %v4221 = vmul.f32 %v4220, %v3963
    %4223 = vrot.lane.b32.xlu0 %v4218, 32
    %v4224 = vpop.permute.xlu0 %4223
    %v4226 = vmul.f32 %v4220, %v4224
    %4228 = vrot.lane.b32.xlu0 %v4226, 32
    %v4229 = vpop.permute.xlu0 %4228
    %v4231 = vadd.f32 %v4221, %v4229
    %v4232 = vtanh.pop %v4231
    %4234 = vrot.lane.b32.xlu0 %v4232, 32
    %v4235 = vpop.permute.xlu0 %4234
    %v4237 = vmul.f32 %v4220, %v4235
    %4239 = vrot.lane.b32.xlu0 %v4140, 64
    %v4240 = vpop.permute.xlu0 %4239
    %v4241 = vsel %vm113, %v4240, 0
    %4243 = vmatprep.subr.mxu0 0.0
    %4244 = vmatpush1.msra.mxu0 0.0
    %4245 = vmatprep.subr.mxu0 0.0
    %4246 = vmatpush1.msra.mxu0 0.0
    %4247 = vmatprep.subr.mxu0 0.0
    %4248 = vmatpush1.msra.mxu0 0.0
    %4249 = vmatprep.subr.mxu0 0.0
    %4250 = vmatpush1.msra.mxu0 0.0
    %4251 = vmatprep.subr.mxu0 0.0
    %4252 = vmatpush1.msra.mxu0 0.0
    %4253 = vmatprep.subr.mxu0 0.0
    %4254 = vmatpush1.msra.mxu0 0.0
    %4255 = vmatprep.subr.mxu0 0.0
    %4256 = vmatpush1.msra.mxu0 0.0
    %4257 = vmatprep.subr.mxu0 0.0
    %4258 = vmatpush1.msra.mxu0 0.0
    %4259 = vmatprep.subr.mxu0 0.0
    %4260 = vmatpush1.msra.mxu0 0.0
    %4261 = vmatprep.subr.mxu0 0.0
    %4262 = vmatpush1.msra.mxu0 0.0
    %4263 = vmatprep.subr.mxu0 0.0
    %4264 = vmatpush1.msra.mxu0 0.0
    %4265 = vmatprep.subr.mxu0 0.0
    %4266 = vmatpush1.msra.mxu0 0.0
    %4267 = vmatprep.subr.mxu0 0.0
    %4268 = vmatpush1.msra.mxu0 %v215
    %4269 = vmatprep.subr.mxu0 0.0
    %4270 = vmatpush1.msra.mxu0 %v214
    %4271 = vmatprep.subr.mxu0 0.0
    %4272 = vmatpush1.msra.mxu0 %v213
    %4273 = vmatprep.subr.mxu0 0.0
    %4274 = vmatpush1.msra.mxu0 %v212
    %4275 = vmatprep.subr.mxu0 0.0
    %4276 = vmatpush2.msra.mxu0 0.0
    %4277 = vmatprep.subr.mxu0 0.0
    %4278 = vmatpush2.msra.mxu0 0.0
    %4279 = vmatprep.subr.mxu0 0.0
    %4280 = vmatpush2.msra.mxu0 0.0
    %4281 = vmatprep.subr.mxu0 0.0
    %4282 = vmatpush2.msra.mxu0 0.0
    %4283 = vmatprep.subr.mxu0 0.0
    %4284 = vmatpush2.msra.mxu0 0.0
    %4285 = vmatprep.subr.mxu0 0.0
    %4286 = vmatpush2.msra.mxu0 0.0
    %4287 = vmatprep.subr.mxu0 0.0
    %4288 = vmatpush2.msra.mxu0 0.0
    %4289 = vmatprep.subr.mxu0 0.0
    %4290 = vmatpush2.msra.mxu0 0.0
    %4291 = vmatprep.subr.mxu0 0.0
    %4292 = vmatpush2.msra.mxu0 0.0
    %4293 = vmatprep.subr.mxu0 0.0
    %4294 = vmatpush2.msra.mxu0 0.0
    %4295 = vmatprep.subr.mxu0 0.0
    %4296 = vmatpush2.msra.mxu0 0.0
    %4297 = vmatprep.subr.mxu0 0.0
    %4298 = vmatpush2.msra.mxu0 0.0
    %4299 = vmatprep.subr.mxu0 0.0
    %4300 = vmatpush2.msra.mxu0 0.0
    %4301 = vmatprep.subr.mxu0 0.0
    %4302 = vmatpush2.msra.mxu0 0.0
    %4303 = vmatprep.subr.mxu0 0.0
    %4304 = vmatpush2.msra.mxu0 0.0
    %4305 = vmatprep.subr.mxu0 0.0
    %4306 = vmatpush2.msra.mxu0 0.0
    %4307 = vmatprep.mubr.f32.mxu0 0.0
    %4308 = vmatmul.mubr.f32.gmra.mxu0 %v4241
    %v4309 = vpop.f32.mrf.mxu0
    %v4310 = vadd.f32 0.0, %v4309
    %v4311 = vpop.f32.mrf.mxu0
    %4312 = vdwg.mxu0
    %4314 = vrot.lane.b32.xlu0 %v4237, 64
    %v4315 = vpop.permute.xlu0 %4314
    %v4316 = vsel %vm113, %v4315, 0
    %4318 = vmatprep.subr.mxu0 0.0
    %4319 = vmatpush1.msra.mxu0 0.0
    %4320 = vmatprep.subr.mxu0 0.0
    %4321 = vmatpush1.msra.mxu0 0.0
    %4322 = vmatprep.subr.mxu0 0.0
    %4323 = vmatpush1.msra.mxu0 0.0
    %4324 = vmatprep.subr.mxu0 0.0
    %4325 = vmatpush1.msra.mxu0 0.0
    %4326 = vmatprep.subr.mxu0 0.0
    %4327 = vmatpush1.msra.mxu0 0.0
    %4328 = vmatprep.subr.mxu0 0.0
    %4329 = vmatpush1.msra.mxu0 0.0
    %4330 = vmatprep.subr.mxu0 0.0
    %4331 = vmatpush1.msra.mxu0 0.0
    %4332 = vmatprep.subr.mxu0 0.0
    %4333 = vmatpush1.msra.mxu0 0.0
    %4334 = vmatprep.subr.mxu0 0.0
    %4335 = vmatpush1.msra.mxu0 0.0
    %4336 = vmatprep.subr.mxu0 0.0
    %4337 = vmatpush1.msra.mxu0 0.0
    %4338 = vmatprep.subr.mxu0 0.0
    %4339 = vmatpush1.msra.mxu0 0.0
    %4340 = vmatprep.subr.mxu0 0.0
    %4341 = vmatpush1.msra.mxu0 0.0
    %4342 = vmatprep.subr.mxu0 0.0
    %4343 = vmatpush1.msra.mxu0 %v211
    %4344 = vmatprep.subr.mxu0 0.0
    %4345 = vmatpush1.msra.mxu0 %v210
    %4346 = vmatprep.subr.mxu0 0.0
    %4347 = vmatpush1.msra.mxu0 %v209
    %4348 = vmatprep.subr.mxu0 0.0
    %4349 = vmatpush1.msra.mxu0 %v208
    %4350 = vmatprep.subr.mxu0 0.0
    %4351 = vmatpush2.msra.mxu0 0.0
    %4352 = vmatprep.subr.mxu0 0.0
    %4353 = vmatpush2.msra.mxu0 0.0
    %4354 = vmatprep.subr.mxu0 0.0
    %4355 = vmatpush2.msra.mxu0 0.0
    %4356 = vmatprep.subr.mxu0 0.0
    %4357 = vmatpush2.msra.mxu0 0.0
    %4358 = vmatprep.subr.mxu0 0.0
    %4359 = vmatpush2.msra.mxu0 0.0
    %4360 = vmatprep.subr.mxu0 0.0
    %4361 = vmatpush2.msra.mxu0 0.0
    %4362 = vmatprep.subr.mxu0 0.0
    %4363 = vmatpush2.msra.mxu0 0.0
    %4364 = vmatprep.subr.mxu0 0.0
    %4365 = vmatpush2.msra.mxu0 0.0
    %4366 = vmatprep.subr.mxu0 0.0
    %4367 = vmatpush2.msra.mxu0 0.0
    %4368 = vmatprep.subr.mxu0 0.0
    %4369 = vmatpush2.msra.mxu0 0.0
    %4370 = vmatprep.subr.mxu0 0.0
    %4371 = vmatpush2.msra.mxu0 0.0
    %4372 = vmatprep.subr.mxu0 0.0
    %4373 = vmatpush2.msra.mxu0 0.0
    %4374 = vmatprep.subr.mxu0 0.0
    %4375 = vmatpush2.msra.mxu0 0.0
    %4376 = vmatprep.subr.mxu0 0.0
    %4377 = vmatpush2.msra.mxu0 0.0
    %4378 = vmatprep.subr.mxu0 0.0
    %4379 = vmatpush2.msra.mxu0 0.0
    %4380 = vmatprep.subr.mxu0 0.0
    %4381 = vmatpush2.msra.mxu0 0.0
    %4382 = vmatprep.mubr.f32.mxu0 0.0
    %4383 = vmatmul.mubr.f32.gmra.mxu0 %v4316
    %v4384 = vpop.f32.mrf.mxu0
    %v4385 = vadd.f32 %v4310, %v4384
    %v4386 = vpop.f32.mrf.mxu0
    %4387 = vdwg.mxu0
    %v4388 = vadd.f32 %v4385, %v366
    %v4389 = vtanh.pop %v4388
    %v4390 = vmul.f32 %v4389, 0.5
    %v4391 = vadd.f32 %v4390, 0.5
    %v4392 = vmul.f32 %v4391, %v4134
    %4394 = vrot.lane.b32.xlu0 %v4389, 32
    %v4395 = vpop.permute.xlu0 %4394
    %v4397 = vmul.f32 %v4391, %v4395
    %4399 = vrot.lane.b32.xlu0 %v4397, 32
    %v4400 = vpop.permute.xlu0 %4399
    %v4402 = vadd.f32 %v4392, %v4400
    %v4403 = vtanh.pop %v4402
    %4405 = vrot.lane.b32.xlu0 %v4403, 32
    %v4406 = vpop.permute.xlu0 %4405
    %v4408 = vmul.f32 %v4391, %v4406
    %v4409 = vld [vmem:[#allocation7] sm:$0xff]
    %v4410 = vld [vmem:[#allocation7 + $0x8] sm:$0xff]
    %v4411 = vld [vmem:[#allocation7 + $0x10] sm:$0xff]
    %v4412 = vld [vmem:[#allocation7 + $0x18] sm:$0xff]
    %v4413 = vld [vmem:[%s8] sm:$0x1]
    %v4415 = vlaneseq
    %v4416 = vshrl.u32 %v4415, 7
    %v4417 = vsub.s32 0, %v4416
    %v4418 = vrot.slane %v4413, %v4417
    %4421 = vrot.lane.b32.xlu0 %v4408, 64
    %v4422 = vpop.permute.xlu0 %4421
    %v4423 = vsel %vm113, %v4422, 0
    %4425 = vmatprep.subr.mxu0 0.0
    %4426 = vmatpush1.msra.mxu0 0.0
    %4427 = vmatprep.subr.mxu0 0.0
    %4428 = vmatpush1.msra.mxu0 0.0
    %4429 = vmatprep.subr.mxu0 0.0
    %4430 = vmatpush1.msra.mxu0 0.0
    %4431 = vmatprep.subr.mxu0 0.0
    %4432 = vmatpush1.msra.mxu0 0.0
    %4433 = vmatprep.subr.mxu0 0.0
    %4434 = vmatpush1.msra.mxu0 0.0
    %4435 = vmatprep.subr.mxu0 0.0
    %4436 = vmatpush1.msra.mxu0 0.0
    %4437 = vmatprep.subr.mxu0 0.0
    %4438 = vmatpush1.msra.mxu0 0.0
    %4439 = vmatprep.subr.mxu0 0.0
    %4440 = vmatpush1.msra.mxu0 0.0
    %4441 = vmatprep.subr.mxu0 0.0
    %4442 = vmatpush1.msra.mxu0 0.0
    %4443 = vmatprep.subr.mxu0 0.0
    %4444 = vmatpush1.msra.mxu0 0.0
    %4445 = vmatprep.subr.mxu0 0.0
    %4446 = vmatpush1.msra.mxu0 0.0
    %4447 = vmatprep.subr.mxu0 0.0
    %4448 = vmatpush1.msra.mxu0 0.0
    %4449 = vmatprep.subr.mxu0 0.0
    %4450 = vmatpush1.msra.mxu0 %v4412
    %4451 = vmatprep.subr.mxu0 0.0
    %4452 = vmatpush1.msra.mxu0 %v4411
    %4453 = vmatprep.subr.mxu0 0.0
    %4454 = vmatpush1.msra.mxu0 %v4410
    %4455 = vmatprep.subr.mxu0 0.0
    %4456 = vmatpush1.msra.mxu0 %v4409
    %4457 = vmatprep.subr.mxu0 0.0
    %4458 = vmatpush2.msra.mxu0 0.0
    %4459 = vmatprep.subr.mxu0 0.0
    %4460 = vmatpush2.msra.mxu0 0.0
    %4461 = vmatprep.subr.mxu0 0.0
    %4462 = vmatpush2.msra.mxu0 0.0
    %4463 = vmatprep.subr.mxu0 0.0
    %4464 = vmatpush2.msra.mxu0 0.0
    %4465 = vmatprep.subr.mxu0 0.0
    %4466 = vmatpush2.msra.mxu0 0.0
    %4467 = vmatprep.subr.mxu0 0.0
    %4468 = vmatpush2.msra.mxu0 0.0
    %4469 = vmatprep.subr.mxu0 0.0
    %4470 = vmatpush2.msra.mxu0 0.0
    %4471 = vmatprep.subr.mxu0 0.0
    %4472 = vmatpush2.msra.mxu0 0.0
    %4473 = vmatprep.subr.mxu0 0.0
    %4474 = vmatpush2.msra.mxu0 0.0
    %4475 = vmatprep.subr.mxu0 0.0
    %4476 = vmatpush2.msra.mxu0 0.0
    %4477 = vmatprep.subr.mxu0 0.0
    %4478 = vmatpush2.msra.mxu0 0.0
    %4479 = vmatprep.subr.mxu0 0.0
    %4480 = vmatpush2.msra.mxu0 0.0
    %4481 = vmatprep.subr.mxu0 0.0
    %4482 = vmatpush2.msra.mxu0 0.0
    %4483 = vmatprep.subr.mxu0 0.0
    %4484 = vmatpush2.msra.mxu0 0.0
    %4485 = vmatprep.subr.mxu0 0.0
    %4486 = vmatpush2.msra.mxu0 0.0
    %4487 = vmatprep.subr.mxu0 0.0
    %4488 = vmatpush2.msra.mxu0 0.0
    %4489 = vmatprep.mubr.f32.mxu0 0.0
    %4490 = vmatmul.mubr.f32.gmra.mxu0 %v4423
    %v4491 = vpop.f32.mrf.mxu0
    %v4492 = vadd.f32 %v4418, %v4491
    %v4493 = vpop.f32.mrf.mxu0
    %4494 = vdwg.mxu0
    %4495 = vst [vmem:[%s9] sm:$0xff] %v4492
    // Predicated region
    $region54: #{forward.1} parent=1 // pred_check
      _
    $region55: #{forward.1} parent=1 // pred_check_branch
      %4497 = sbr.rel (0) target = $region57
    $region56: #{forward.1} parent=1 // pred_region
      _
    $region57: #{forward.1} parent=1 // pred_fallthru
      _
    // Predicated region
    $region58: #{forward.1} parent=1 // pred_check
      _
    $region59: #{forward.1} parent=1 // pred_check_branch
      %4499 = sbr.rel (0) target = $region61
    $region60: #{forward.1} parent=1 // pred_region
      _
    $region61: #{forward.1} parent=1 // pred_fallthru
      _
    %4500 = vsyncpa [#allocation3], 1
    %4501 = vsyncpa [#allocation5], 1
    %4502 = vsyncpa [#allocation8], 1

</llo_original>
